<compile_context>
chip_gen: v6e
topology: v6e:2x2x1
jax: 0.10.0
libtpu: 0.0.40
codegen_flags: <defaults>
</compile_context>

<pallas_src>
import functools
import math

import jax
import jax.numpy as jnp
from jax.experimental import pallas as pl
from jax.experimental.pallas import tpu as pltpu


# ----------------------------------------------------------------------------
# Pallas kernel: one graph per grid step; all n_steps of message passing + GRU,
# then readout + softmax.
# ----------------------------------------------------------------------------
def ggnn_kernel(
    scalar_pre_ref,   # (N*N, H1)  per-graph, loop-invariant scalar-feature term
    rep_ij_ref,       # (N*N, 2N)  [one-hot(i) | one-hot(j)] per pair row
    rep_j_t_ref,      # (N, N*N)   transpose of the one-hot(j) map (sum over i)
    w_sd_ref,         # (sd, 2*H1 + Hr)   [W1_hi | W1_hj | R1]
    w_msg_ref,        # (H1, H1 + md)     [W2 | W3]
    w_gru_ref,        # (md+sd, 4*sd)     fused GRU block weight
    w_ro_ref,         # (Hr, Hr + 2)      [R2 | R3]
    bias_ref,         # (9, bw) row-stacked biases
    out_ref,          # (N, 2) softmax output for this graph
    *, n_steps, n, sd, md, h1, hr,
):
    def dot(a, b):
        return jnp.dot(a, b, preferred_element_type=jnp.float32)

    nn_pairs = n * n

    scalar_pre = scalar_pre_ref[...]
    rep_ij = rep_ij_ref[...]
    rep_j_t = rep_j_t_ref[...]

    # static slices of the packed weight slabs
    w1_cat = w_sd_ref[:, : 2 * h1]               # (sd, 2*H1) = [W1_hi | W1_hj]
    r1_w = w_sd_ref[:, 2 * h1 : 2 * h1 + hr]     # (sd, Hr)
    w2 = w_msg_ref[:, :h1]                       # (H1, H1)
    w3 = w_msg_ref[:, h1 : h1 + md]              # (H1, md)
    w_gru = w_gru_ref[...]                       # (md+sd, 4*sd)
    r2_w = w_ro_ref[:, :hr]                      # (Hr, Hr)
    r3_w = w_ro_ref[:, hr : hr + 2]              # (Hr, 2)

    # biases (row-stacked slab); hoist the broadcasts used inside the loop
    b2 = jnp.broadcast_to(bias_ref[0:1, :h1], (nn_pairs, h1))
    b3 = jnp.broadcast_to(bias_ref[1:2, :md], (nn_pairs, md))
    br = jnp.broadcast_to(bias_ref[2:3, :sd], (n, sd))
    bz = jnp.broadcast_to(bias_ref[3:4, :sd], (n, sd))
    bin_ = jnp.broadcast_to(bias_ref[4:5, :sd], (n, sd))
    bhn = jnp.broadcast_to(bias_ref[5:6, :sd], (n, sd))
    rb1 = bias_ref[6:7, :hr]
    rb2 = bias_ref[7:8, :hr]
    rb3 = bias_ref[8:9, :2]

    h = jnp.zeros((n, sd), jnp.float32)

    # n_steps is static -> fully unrolled; h lives in vregs across steps.
    for _ in range(n_steps):
        # message-passing MLP, reassociated:
        #   z1 = relu(rep_i @ (h @ W1_hi) + rep_j @ (h @ W1_hj) + scalar_pre)
        hw = dot(h, w1_cat)                                        # (N, 2*H1)
        hw_stack = jnp.concatenate([hw[:, :h1], hw[:, h1:]], axis=0)  # (2N, H1)
        z1 = jnp.maximum(dot(rep_ij, hw_stack) + scalar_pre, 0.0)  # (N*N, H1)
        z2 = jnp.maximum(dot(z1, w2) + b2, 0.0)                    # (N*N, H1)
        msg = dot(z2, w3) + b3                                     # (N*N, md)

        # message_i[j] = sum_i message_i_j[i, j, :]
        x = dot(rep_j_t, msg)                                      # (N, md)

        # GRUCell(input=x, hidden=h) via one fused matmul.
        xh = jnp.concatenate([x, h], axis=1)                       # (N, md+sd)
        g = dot(xh, w_gru)                                         # (N, 4*sd)
        r = jax.nn.sigmoid(g[:, :sd] + br)
        z = jax.nn.sigmoid(g[:, sd : 2 * sd] + bz)
        ng = jnp.tanh(g[:, 2 * sd : 3 * sd] + bin_
                      + r * (g[:, 3 * sd : 4 * sd] + bhn))
        h = (1.0 - z) * ng + z * h

    # readout MLP + softmax(dim=1)
    a1 = jnp.maximum(dot(h, r1_w) + rb1, 0.0)
    a2 = jnp.maximum(dot(a1, r2_w) + rb2, 0.0)
    logits = dot(a2, r3_w) + rb3                                   # (N, 2)
    m = jnp.max(logits, axis=1, keepdims=True)
    e = jnp.exp(logits - m)
    out_ref[...] = e / jnp.sum(e, axis=1, keepdims=True)


# ----------------------------------------------------------------------------
# Batched wrapper: parameter packing (plain JAX glue) + pallas_call over graphs
# ----------------------------------------------------------------------------
def ggnn_forward_pallas_batched(J, b, params, n_steps):
    """J: (B, n, n), b: (B, n) -> (B, n, 2)."""
    B, n, _ = J.shape
    sd = params["weight_hh"].shape[1]
    md = params["weight_ih"].shape[1]
    h1 = params["W1"].shape[1]
    hr = params["R1"].shape[1]
    nn_pairs = n * n

    # one-hot replication maps (pair row p = i*n + j)
    eye = jnp.eye(n, dtype=jnp.float32)
    rep_i = jnp.repeat(eye, n, axis=0)                 # row p -> one-hot(i)
    rep_j = jnp.tile(eye, (n, 1))                      # row p -> one-hot(j)
    rep_ij = jnp.concatenate([rep_i, rep_j], axis=1)   # (N*N, 2N)
    rep_j_t = rep_j.T                                  # (N, N*N)

    W1 = params["W1"]                                  # (2*sd + 3, H1)
    w1_hi, w1_hj = W1[:sd], W1[sd : 2 * sd]
    w1_cat = jnp.concatenate([w1_hi, w1_hj], axis=1)   # (sd, 2*H1)

    # loop-invariant scalar-feature contribution to layer-1 pre-activation
    jf = J.reshape(B, nn_pairs, 1).astype(jnp.float32)
    bi = jnp.repeat(b, n, axis=1).reshape(B, nn_pairs, 1).astype(jnp.float32)
    bj = jnp.tile(b, (1, n)).reshape(B, nn_pairs, 1).astype(jnp.float32)
    scalar_pre = (jf * W1[2 * sd]
                  + bi * W1[2 * sd + 1]
                  + bj * W1[2 * sd + 2]
                  + params["bias1"])                   # (B, N*N, H1)

    # fused GRU block weight: columns [r | z | i_n | h_n]
    wih_t = params["weight_ih"].T                      # (md, 3*sd)
    whh_t = params["weight_hh"].T                      # (sd, 3*sd)
    zi = jnp.zeros((md, sd), jnp.float32)
    zh = jnp.zeros((sd, sd), jnp.float32)
    w_gru = jnp.concatenate([
        jnp.concatenate([wih_t[:, :sd], wih_t[:, sd:2 * sd], wih_t[:, 2 * sd:], zi], axis=1),
        jnp.concatenate([whh_t[:, :sd], whh_t[:, sd:2 * sd], zh, whh_t[:, 2 * sd:]], axis=1),
    ], axis=0)                                         # (md+sd, 4*sd)

    # packed weight slabs
    w_sd = jnp.concatenate([w1_cat, params["R1"]], axis=1)           # (sd, 2*H1+Hr)
    w_msg = jnp.concatenate([params["W2"], params["W3"]], axis=1)    # (H1, H1+md)
    w_ro = jnp.concatenate([params["R2"], params["R3"]], axis=1)     # (Hr, Hr+2)

    # row-stacked bias slab
    bw = max(h1, hr, md, sd, 2)
    bih, bhh = params["bias_ih"], params["bias_hh"]

    def pad_row(v):
        return jnp.pad(v, (0, bw - v.shape[0]))[None, :]

    biases = jnp.concatenate([
        pad_row(params["bias2"]),                    # 0: b2   (H1)
        pad_row(params["bias3"]),                    # 1: b3   (md)
        pad_row(bih[:sd] + bhh[:sd]),                # 2: br   (sd)
        pad_row(bih[sd:2 * sd] + bhh[sd:2 * sd]),    # 3: bz   (sd)
        pad_row(bih[2 * sd:]),                       # 4: b_in (sd)
        pad_row(bhh[2 * sd:]),                       # 5: b_hn (sd)
        pad_row(params["rbias1"]),                   # 6: rb1  (Hr)
        pad_row(params["rbias2"]),                   # 7: rb2  (Hr)
        pad_row(params["rbias3"]),                   # 8: rb3  (2)
    ], axis=0).astype(jnp.float32)                   # (9, bw)

    kernel = functools.partial(
        ggnn_kernel, n_steps=n_steps, n=n, sd=sd, md=md, h1=h1, hr=hr)

    return pl.pallas_call(
        kernel,
        out_shape=jax.ShapeDtypeStruct((B, n, 2), jnp.float32),
        grid_spec=pltpu.PrefetchScalarGridSpec(
            num_scalar_prefetch=0,
            grid=(B,),
            in_specs=[
                pl.BlockSpec((None, nn_pairs, h1), lambda g: (g, 0, 0)),  # scalar_pre
                pl.BlockSpec((nn_pairs, 2 * n), lambda g: (0, 0)),        # rep_ij
                pl.BlockSpec((n, nn_pairs), lambda g: (0, 0)),            # rep_j_t
                pl.BlockSpec((sd, 2 * h1 + hr), lambda g: (0, 0)),        # w_sd
                pl.BlockSpec((h1, h1 + md), lambda g: (0, 0)),            # w_msg
                pl.BlockSpec((md + sd, 4 * sd), lambda g: (0, 0)),        # w_gru
                pl.BlockSpec((hr, hr + 2), lambda g: (0, 0)),             # w_ro
                pl.BlockSpec((9, bw), lambda g: (0, 0)),                  # biases
            ],
            out_specs=pl.BlockSpec((None, n, 2), lambda g: (g, 0, 0)),
        ),
        compiler_params=pltpu.CompilerParams(
            dimension_semantics=("parallel",)),
    )(scalar_pre, rep_ij, rep_j_t, w_sd, w_msg, w_gru, w_ro, biases)


def ggnn_forward_pallas(J, b, params, n_steps):
    """Single-graph interface matching the PyTorch module's forward(J, b)."""
    return ggnn_forward_pallas_batched(J[None], b[None], params, n_steps)[0]


# ----------------------------------------------------------------------------
# Pure-JAX reference (mirrors the PyTorch forward exactly)
# ----------------------------------------------------------------------------
def ggnn_forward_ref(J, b, params, n_steps):
    n = J.shape[0]
    sd = params["weight_hh"].shape[1]
    h = jnp.zeros((n, sd), jnp.float32)

    def relu(x):
        return jnp.maximum(x, 0.0)

    for _ in range(n_steps):
        feat = jnp.concatenate(
            [jnp.broadcast_to(h[:, None, :], (n, n, sd)),
             jnp.broadcast_to(h[None, :, :], (n, n, sd)),
             J[:, :, None],
             jnp.broadcast_to(b[:, None, None], (n, n, 1)),
             jnp.broadcast_to(b[None, :, None], (n, n, 1))], axis=-1)
        z1 = relu(feat @ params["W1"] + params["bias1"])
        z2 = relu(z1 @ params["W2"] + params["bias2"])
        msg = z2 @ params["W3"] + params["bias3"]       # (n, n, md)
        x = msg.sum(axis=0)                             # (n, md)

        gi = x @ params["weight_ih"].T + params["bias_ih"]
        gh = h @ params["weight_hh"].T + params["bias_hh"]
        i_r, i_z, i_n = gi[:, :sd], gi[:, sd:2 * sd], gi[:, 2 * sd:]
        h_r, h_z, h_n = gh[:, :sd], gh[:, sd:2 * sd], gh[:, 2 * sd:]
        r = jax.nn.sigmoid(i_r + h_r)
        z = jax.nn.sigmoid(i_z + h_z)
        ng = jnp.tanh(i_n + r * h_n)
        h = (1.0 - z) * ng + z * h

    a1 = relu(h @ params["R1"] + params["rbias1"])
    a2 = relu(a1 @ params["R2"] + params["rbias2"])
    logits = a2 @ params["R3"] + params["rbias3"]
    return jax.nn.softmax(logits, axis=1)


# ----------------------------------------------------------------------------
if __name__ == "__main__":
    n_nodes = 8
    state_dim = 32
    message_dim = 32
    hidden_unit_message_dim = 64
    hidden_unit_readout_dim = 64
    n_steps = 5
    batch = 4

    key = jax.random.PRNGKey(0)
    ks = jax.random.split(key, 12)

    def lin_w(k, fan_in, fan_out):
        # matches torch init: weight ~ N(0, 0.1), bias = 0  (stored as (in, out))
        return 0.1 * jax.random.normal(k, (fan_in, fan_out), jnp.float32)

    lim = 1.0 / math.sqrt(state_dim)
    params = {
        "W1": lin_w(ks[0], 2 * state_dim + 3, hidden_unit_message_dim),
        "bias1": jnp.zeros((hidden_unit_message_dim,), jnp.float32),
        "W2": lin_w(ks[1], hidden_unit_message_dim, hidden_unit_message_dim),
        "bias2": jnp.zeros((hidden_unit_message_dim,), jnp.float32),
        "W3": lin_w(ks[2], hidden_unit_message_dim, message_dim),
        "bias3": jnp.zeros((message_dim,), jnp.float32),
        "R1": lin_w(ks[3], state_dim, hidden_unit_readout_dim),
        "rbias1": jnp.zeros((hidden_unit_readout_dim,), jnp.float32),
        "R2": lin_w(ks[4], hidden_unit_readout_dim, hidden_unit_readout_dim),
        "rbias2": jnp.zeros((hidden_unit_readout_dim,), jnp.float32),
        "R3": lin_w(ks[5], hidden_unit_readout_dim, 2),
        "rbias3": jnp.zeros((2,), jnp.float32),
        # GRUCell params (torch default uniform init, gate order [r, z, n])
        "weight_ih": jax.random.uniform(ks[6], (3 * state_dim, message_dim),
                                        jnp.float32, -lim, lim),
        "weight_hh": jax.random.uniform(ks[7], (3 * state_dim, state_dim),
                                        jnp.float32, -lim, lim),
        "bias_ih": jax.random.uniform(ks[8], (3 * state_dim,), jnp.float32, -lim, lim),
        "bias_hh": jax.random.uniform(ks[9], (3 * state_dim,), jnp.float32, -lim, lim),
    }

    J = jax.random.normal(ks[10], (batch, n_nodes, n_nodes), jnp.float32)
    b = jax.random.normal(ks[11], (batch, n_nodes), jnp.float32)

    # batched path (grid over graphs, "parallel" axis)
    out = jax.block_until_ready(ggnn_forward_pallas_batched(J, b, params, n_steps))
    assert out.shape == (batch, n_nodes, 2)
    for g in range(batch):
        ref = ggnn_forward_ref(J[g], b[g], params, n_steps)
        assert bool(jnp.allclose(out[g], ref, atol=1e-4, rtol=1e-4)), (g, out[g], ref)

    # single-graph interface (matches the PyTorch module's forward signature)
    out0 = jax.block_until_ready(ggnn_forward_pallas(J[0], b[0], params, n_steps))
    ref0 = ggnn_forward_ref(J[0], b[0], params, n_steps)
    assert out0.shape == (n_nodes, 2)
    assert bool(jnp.allclose(out0, ref0, atol=1e-4, rtol=1e-4)), (out0, ref0)

    print("KERNEL_OK")
</pallas_src>

<mosaic_0001>
module attributes {stable_mosaic.version = 11 : i64} {
  func.func @ggnn_kernel(%arg0: i32, %arg1: memref<1x64x64xf32, #tpu.memory_space<vmem>>, %arg2: memref<64x16xf32, #tpu.memory_space<vmem>>, %arg3: memref<8x64xf32, #tpu.memory_space<vmem>>, %arg4: memref<32x192xf32, #tpu.memory_space<vmem>>, %arg5: memref<64x96xf32, #tpu.memory_space<vmem>>, %arg6: memref<64x128xf32, #tpu.memory_space<vmem>>, %arg7: memref<64x66xf32, #tpu.memory_space<vmem>>, %arg8: memref<9x64xf32, #tpu.memory_space<vmem>>, %arg9: memref<1x8x2xf32, #tpu.memory_space<vmem>>) attributes {dimension_semantics = [#tpu.dimension_semantics<parallel>], iteration_bounds = array<i64: 4>, scalar_prefetch = 0 : i64, scratch_operands = 0 : i64, tpu.core_type = #tpu.core_type<tc>, window_params = [{transform_indices = @transform_0, window_bounds = array<i64: 1, 64, 64>}, {pipeline_mode = #tpu.pipeline_mode<synchronous>, transform_indices = @transform_1, window_bounds = array<i64: 64, 16>}, {pipeline_mode = #tpu.pipeline_mode<synchronous>, transform_indices = @transform_2, window_bounds = array<i64: 8, 64>}, {pipeline_mode = #tpu.pipeline_mode<synchronous>, transform_indices = @transform_3, window_bounds = array<i64: 32, 192>}, {pipeline_mode = #tpu.pipeline_mode<synchronous>, transform_indices = @transform_4, window_bounds = array<i64: 64, 96>}, {pipeline_mode = #tpu.pipeline_mode<synchronous>, transform_indices = @transform_5, window_bounds = array<i64: 64, 128>}, {pipeline_mode = #tpu.pipeline_mode<synchronous>, transform_indices = @transform_6, window_bounds = array<i64: 64, 66>}, {pipeline_mode = #tpu.pipeline_mode<synchronous>, transform_indices = @transform_7, window_bounds = array<i64: 9, 64>}, {transform_indices = @transform_8, window_bounds = array<i64: 1, 8, 2>}]} {
    %c0 = arith.constant 0 : index
    %c0_0 = arith.constant 0 : index
    %c0_1 = arith.constant 0 : index
    %0 = vector.load %arg1[%c0, %c0_0, %c0_1] : memref<1x64x64xf32, #tpu.memory_space<vmem>>, vector<1x64x64xf32>
    %1 = vector.shape_cast %0 : vector<1x64x64xf32> to vector<64x64xf32>
    %c0_2 = arith.constant 0 : index
    %c0_3 = arith.constant 0 : index
    %2 = vector.load %arg2[%c0_2, %c0_3] : memref<64x16xf32, #tpu.memory_space<vmem>>, vector<64x16xf32>
    %c0_4 = arith.constant 0 : index
    %c0_5 = arith.constant 0 : index
    %3 = vector.load %arg3[%c0_4, %c0_5] : memref<8x64xf32, #tpu.memory_space<vmem>>, vector<8x64xf32>
    %c0_6 = arith.constant 0 : index
    %c0_7 = arith.constant 0 : index
    %4 = vector.load %arg4[%c0_6, %c0_7] : memref<32x192xf32, #tpu.memory_space<vmem>>, vector<32x128xf32>
    %c0_8 = arith.constant 0 : index
    %c128 = arith.constant 128 : index
    %5 = vector.load %arg4[%c0_8, %c128] : memref<32x192xf32, #tpu.memory_space<vmem>>, vector<32x64xf32>
    %c0_9 = arith.constant 0 : index
    %c0_10 = arith.constant 0 : index
    %6 = vector.load %arg5[%c0_9, %c0_10] : memref<64x96xf32, #tpu.memory_space<vmem>>, vector<64x64xf32>
    %c0_11 = arith.constant 0 : index
    %c64 = arith.constant 64 : index
    %7 = vector.load %arg5[%c0_11, %c64] : memref<64x96xf32, #tpu.memory_space<vmem>>, vector<64x32xf32>
    %c0_12 = arith.constant 0 : index
    %c0_13 = arith.constant 0 : index
    %8 = vector.load %arg6[%c0_12, %c0_13] : memref<64x128xf32, #tpu.memory_space<vmem>>, vector<64x128xf32>
    %c0_14 = arith.constant 0 : index
    %c0_15 = arith.constant 0 : index
    %9 = vector.load %arg7[%c0_14, %c0_15] : memref<64x66xf32, #tpu.memory_space<vmem>>, vector<64x64xf32>
    %c0_16 = arith.constant 0 : index
    %c64_17 = arith.constant 64 : index
    %10 = vector.load %arg7[%c0_16, %c64_17] : memref<64x66xf32, #tpu.memory_space<vmem>>, vector<64x2xf32>
    %c0_18 = arith.constant 0 : index
    %c0_19 = arith.constant 0 : index
    %11 = vector.load %arg8[%c0_18, %c0_19] : memref<9x64xf32, #tpu.memory_space<vmem>>, vector<1x64xf32>
    %12 = vector.shape_cast %11 : vector<1x64xf32> to vector<1x64xf32>
    %13 = vector.broadcast %12 : vector<1x64xf32> to vector<64x64xf32>
    %c1 = arith.constant 1 : index
    %c0_20 = arith.constant 0 : index
    %14 = vector.load %arg8[%c1, %c0_20] : memref<9x64xf32, #tpu.memory_space<vmem>>, vector<1x32xf32>
    %15 = vector.shape_cast %14 : vector<1x32xf32> to vector<1x32xf32>
    %16 = vector.broadcast %15 : vector<1x32xf32> to vector<64x32xf32>
    %c2 = arith.constant 2 : index
    %c0_21 = arith.constant 0 : index
    %17 = vector.load %arg8[%c2, %c0_21] : memref<9x64xf32, #tpu.memory_space<vmem>>, vector<1x32xf32>
    %18 = vector.shape_cast %17 : vector<1x32xf32> to vector<1x32xf32>
    %19 = vector.broadcast %18 : vector<1x32xf32> to vector<8x32xf32>
    %c3 = arith.constant 3 : index
    %c0_22 = arith.constant 0 : index
    %20 = vector.load %arg8[%c3, %c0_22] : memref<9x64xf32, #tpu.memory_space<vmem>>, vector<1x32xf32>
    %21 = vector.shape_cast %20 : vector<1x32xf32> to vector<1x32xf32>
    %22 = vector.broadcast %21 : vector<1x32xf32> to vector<8x32xf32>
    %c4 = arith.constant 4 : index
    %c0_23 = arith.constant 0 : index
    %23 = vector.load %arg8[%c4, %c0_23] : memref<9x64xf32, #tpu.memory_space<vmem>>, vector<1x32xf32>
    %24 = vector.shape_cast %23 : vector<1x32xf32> to vector<1x32xf32>
    %25 = vector.broadcast %24 : vector<1x32xf32> to vector<8x32xf32>
    %c5 = arith.constant 5 : index
    %c0_24 = arith.constant 0 : index
    %26 = vector.load %arg8[%c5, %c0_24] : memref<9x64xf32, #tpu.memory_space<vmem>>, vector<1x32xf32>
    %27 = vector.shape_cast %26 : vector<1x32xf32> to vector<1x32xf32>
    %28 = vector.broadcast %27 : vector<1x32xf32> to vector<8x32xf32>
    %c6 = arith.constant 6 : index
    %c0_25 = arith.constant 0 : index
    %29 = vector.load %arg8[%c6, %c0_25] : memref<9x64xf32, #tpu.memory_space<vmem>>, vector<1x64xf32>
    %c7 = arith.constant 7 : index
    %c0_26 = arith.constant 0 : index
    %30 = vector.load %arg8[%c7, %c0_26] : memref<9x64xf32, #tpu.memory_space<vmem>>, vector<1x64xf32>
    %c8 = arith.constant 8 : index
    %c0_27 = arith.constant 0 : index
    %31 = vector.load %arg8[%c8, %c0_27] : memref<9x64xf32, #tpu.memory_space<vmem>>, vector<1x2xf32>
    %cst = arith.constant 0.000000e+00 : f32
    %32 = vector.broadcast %cst : f32 to vector<8x32xf32>
    %cst_28 = arith.constant dense<0.000000e+00> : vector<8x128xf32>
    %33 = tpu.matmul %32, %4, %cst_28 {dimension_numbers = #tpu.dot_dimension_numbers<[1], [0], [0], [1], [0, 0, 1, 1], [], []>} : vector<8x32xf32>, vector<32x128xf32>, vector<8x128xf32> -> vector<8x128xf32>
    %34 = vector.extract_strided_slice %33 {offsets = [0, 0], sizes = [8, 64], strides = [1, 1]} : vector<8x128xf32> to vector<8x64xf32>
    %35 = vector.extract_strided_slice %33 {offsets = [0, 64], sizes = [8, 64], strides = [1, 1]} : vector<8x128xf32> to vector<8x64xf32>
    %36 = tpu.concatenate %34, %35 in 0 : vector<8x64xf32>, vector<8x64xf32> -> vector<16x64xf32>
    %cst_29 = arith.constant dense<0.000000e+00> : vector<64x64xf32>
    %37 = tpu.matmul %2, %36, %cst_29 {dimension_numbers = #tpu.dot_dimension_numbers<[1], [0], [0], [1], [0, 0, 1, 1], [], []>} : vector<64x16xf32>, vector<16x64xf32>, vector<64x64xf32> -> vector<64x64xf32>
    %38 = arith.addf %37, %1 : vector<64x64xf32>
    %cst_30 = arith.constant 0.000000e+00 : f32
    %39 = vector.broadcast %cst_30 : f32 to vector<64x64xf32>
    %40 = arith.maximumf %38, %39 : vector<64x64xf32>
    %cst_31 = arith.constant dense<0.000000e+00> : vector<64x64xf32>
    %41 = tpu.matmul %40, %6, %cst_31 {dimension_numbers = #tpu.dot_dimension_numbers<[1], [0], [0], [1], [0, 0, 1, 1], [], []>} : vector<64x64xf32>, vector<64x64xf32>, vector<64x64xf32> -> vector<64x64xf32>
    %42 = arith.addf %41, %13 : vector<64x64xf32>
    %cst_32 = arith.constant 0.000000e+00 : f32
    %43 = vector.broadcast %cst_32 : f32 to vector<64x64xf32>
    %44 = arith.maximumf %42, %43 : vector<64x64xf32>
    %cst_33 = arith.constant dense<0.000000e+00> : vector<64x32xf32>
    %45 = tpu.matmul %44, %7, %cst_33 {dimension_numbers = #tpu.dot_dimension_numbers<[1], [0], [0], [1], [0, 0, 1, 1], [], []>} : vector<64x64xf32>, vector<64x32xf32>, vector<64x32xf32> -> vector<64x32xf32>
    %46 = arith.addf %45, %16 : vector<64x32xf32>
    %cst_34 = arith.constant dense<0.000000e+00> : vector<8x32xf32>
    %47 = tpu.matmul %3, %46, %cst_34 {dimension_numbers = #tpu.dot_dimension_numbers<[1], [0], [0], [1], [0, 0, 1, 1], [], []>} : vector<8x64xf32>, vector<64x32xf32>, vector<8x32xf32> -> vector<8x32xf32>
    %48 = tpu.concatenate %47, %32 in 1 : vector<8x32xf32>, vector<8x32xf32> -> vector<8x64xf32>
    %cst_35 = arith.constant dense<0.000000e+00> : vector<8x128xf32>
    %49 = tpu.matmul %48, %8, %cst_35 {dimension_numbers = #tpu.dot_dimension_numbers<[1], [0], [0], [1], [0, 0, 1, 1], [], []>} : vector<8x64xf32>, vector<64x128xf32>, vector<8x128xf32> -> vector<8x128xf32>
    %50 = vector.extract_strided_slice %49 {offsets = [0, 0], sizes = [8, 32], strides = [1, 1]} : vector<8x128xf32> to vector<8x32xf32>
    %51 = arith.addf %50, %19 : vector<8x32xf32>
    %52 = arith.negf %51 : vector<8x32xf32>
    %53 = math.exp %52 : vector<8x32xf32>
    %cst_36 = arith.constant 1.000000e+00 : f32
    %54 = vector.broadcast %cst_36 : f32 to vector<8x32xf32>
    %55 = arith.addf %54, %53 : vector<8x32xf32>
    %56 = arith.divf %54, %55 : vector<8x32xf32>
    %57 = vector.extract_strided_slice %49 {offsets = [0, 32], sizes = [8, 32], strides = [1, 1]} : vector<8x128xf32> to vector<8x32xf32>
    %58 = arith.addf %57, %22 : vector<8x32xf32>
    %59 = arith.negf %58 : vector<8x32xf32>
    %60 = math.exp %59 : vector<8x32xf32>
    %cst_37 = arith.constant 1.000000e+00 : f32
    %61 = vector.broadcast %cst_37 : f32 to vector<8x32xf32>
    %62 = arith.addf %61, %60 : vector<8x32xf32>
    %63 = arith.divf %61, %62 : vector<8x32xf32>
    %64 = vector.extract_strided_slice %49 {offsets = [0, 64], sizes = [8, 32], strides = [1, 1]} : vector<8x128xf32> to vector<8x32xf32>
    %65 = arith.addf %64, %25 : vector<8x32xf32>
    %66 = vector.extract_strided_slice %49 {offsets = [0, 96], sizes = [8, 32], strides = [1, 1]} : vector<8x128xf32> to vector<8x32xf32>
    %67 = arith.addf %66, %28 : vector<8x32xf32>
    %68 = arith.mulf %56, %67 : vector<8x32xf32>
    %69 = arith.addf %65, %68 : vector<8x32xf32>
    %70 = math.tanh %69 : vector<8x32xf32>
    %cst_38 = arith.constant 1.000000e+00 : f32
    %71 = vector.broadcast %cst_38 : f32 to vector<8x32xf32>
    %72 = arith.subf %71, %63 : vector<8x32xf32>
    %73 = arith.mulf %72, %70 : vector<8x32xf32>
    %74 = arith.mulf %63, %32 : vector<8x32xf32>
    %75 = arith.addf %73, %74 : vector<8x32xf32>
    %cst_39 = arith.constant dense<0.000000e+00> : vector<8x128xf32>
    %76 = tpu.matmul %75, %4, %cst_39 {dimension_numbers = #tpu.dot_dimension_numbers<[1], [0], [0], [1], [0, 0, 1, 1], [], []>} : vector<8x32xf32>, vector<32x128xf32>, vector<8x128xf32> -> vector<8x128xf32>
    %77 = vector.extract_strided_slice %76 {offsets = [0, 0], sizes = [8, 64], strides = [1, 1]} : vector<8x128xf32> to vector<8x64xf32>
    %78 = vector.extract_strided_slice %76 {offsets = [0, 64], sizes = [8, 64], strides = [1, 1]} : vector<8x128xf32> to vector<8x64xf32>
    %79 = tpu.concatenate %77, %78 in 0 : vector<8x64xf32>, vector<8x64xf32> -> vector<16x64xf32>
    %cst_40 = arith.constant dense<0.000000e+00> : vector<64x64xf32>
    %80 = tpu.matmul %2, %79, %cst_40 {dimension_numbers = #tpu.dot_dimension_numbers<[1], [0], [0], [1], [0, 0, 1, 1], [], []>} : vector<64x16xf32>, vector<16x64xf32>, vector<64x64xf32> -> vector<64x64xf32>
    %81 = arith.addf %80, %1 : vector<64x64xf32>
    %cst_41 = arith.constant 0.000000e+00 : f32
    %82 = vector.broadcast %cst_41 : f32 to vector<64x64xf32>
    %83 = arith.maximumf %81, %82 : vector<64x64xf32>
    %cst_42 = arith.constant dense<0.000000e+00> : vector<64x64xf32>
    %84 = tpu.matmul %83, %6, %cst_42 {dimension_numbers = #tpu.dot_dimension_numbers<[1], [0], [0], [1], [0, 0, 1, 1], [], []>} : vector<64x64xf32>, vector<64x64xf32>, vector<64x64xf32> -> vector<64x64xf32>
    %85 = arith.addf %84, %13 : vector<64x64xf32>
    %cst_43 = arith.constant 0.000000e+00 : f32
    %86 = vector.broadcast %cst_43 : f32 to vector<64x64xf32>
    %87 = arith.maximumf %85, %86 : vector<64x64xf32>
    %cst_44 = arith.constant dense<0.000000e+00> : vector<64x32xf32>
    %88 = tpu.matmul %87, %7, %cst_44 {dimension_numbers = #tpu.dot_dimension_numbers<[1], [0], [0], [1], [0, 0, 1, 1], [], []>} : vector<64x64xf32>, vector<64x32xf32>, vector<64x32xf32> -> vector<64x32xf32>
    %89 = arith.addf %88, %16 : vector<64x32xf32>
    %cst_45 = arith.constant dense<0.000000e+00> : vector<8x32xf32>
    %90 = tpu.matmul %3, %89, %cst_45 {dimension_numbers = #tpu.dot_dimension_numbers<[1], [0], [0], [1], [0, 0, 1, 1], [], []>} : vector<8x64xf32>, vector<64x32xf32>, vector<8x32xf32> -> vector<8x32xf32>
    %91 = tpu.concatenate %90, %75 in 1 : vector<8x32xf32>, vector<8x32xf32> -> vector<8x64xf32>
    %cst_46 = arith.constant dense<0.000000e+00> : vector<8x128xf32>
    %92 = tpu.matmul %91, %8, %cst_46 {dimension_numbers = #tpu.dot_dimension_numbers<[1], [0], [0], [1], [0, 0, 1, 1], [], []>} : vector<8x64xf32>, vector<64x128xf32>, vector<8x128xf32> -> vector<8x128xf32>
    %93 = vector.extract_strided_slice %92 {offsets = [0, 0], sizes = [8, 32], strides = [1, 1]} : vector<8x128xf32> to vector<8x32xf32>
    %94 = arith.addf %93, %19 : vector<8x32xf32>
    %95 = arith.negf %94 : vector<8x32xf32>
    %96 = math.exp %95 : vector<8x32xf32>
    %cst_47 = arith.constant 1.000000e+00 : f32
    %97 = vector.broadcast %cst_47 : f32 to vector<8x32xf32>
    %98 = arith.addf %97, %96 : vector<8x32xf32>
    %99 = arith.divf %97, %98 : vector<8x32xf32>
    %100 = vector.extract_strided_slice %92 {offsets = [0, 32], sizes = [8, 32], strides = [1, 1]} : vector<8x128xf32> to vector<8x32xf32>
    %101 = arith.addf %100, %22 : vector<8x32xf32>
    %102 = arith.negf %101 : vector<8x32xf32>
    %103 = math.exp %102 : vector<8x32xf32>
    %cst_48 = arith.constant 1.000000e+00 : f32
    %104 = vector.broadcast %cst_48 : f32 to vector<8x32xf32>
    %105 = arith.addf %104, %103 : vector<8x32xf32>
    %106 = arith.divf %104, %105 : vector<8x32xf32>
    %107 = vector.extract_strided_slice %92 {offsets = [0, 64], sizes = [8, 32], strides = [1, 1]} : vector<8x128xf32> to vector<8x32xf32>
    %108 = arith.addf %107, %25 : vector<8x32xf32>
    %109 = vector.extract_strided_slice %92 {offsets = [0, 96], sizes = [8, 32], strides = [1, 1]} : vector<8x128xf32> to vector<8x32xf32>
    %110 = arith.addf %109, %28 : vector<8x32xf32>
    %111 = arith.mulf %99, %110 : vector<8x32xf32>
    %112 = arith.addf %108, %111 : vector<8x32xf32>
    %113 = math.tanh %112 : vector<8x32xf32>
    %cst_49 = arith.constant 1.000000e+00 : f32
    %114 = vector.broadcast %cst_49 : f32 to vector<8x32xf32>
    %115 = arith.subf %114, %106 : vector<8x32xf32>
    %116 = arith.mulf %115, %113 : vector<8x32xf32>
    %117 = arith.mulf %106, %75 : vector<8x32xf32>
    %118 = arith.addf %116, %117 : vector<8x32xf32>
    %cst_50 = arith.constant dense<0.000000e+00> : vector<8x128xf32>
    %119 = tpu.matmul %118, %4, %cst_50 {dimension_numbers = #tpu.dot_dimension_numbers<[1], [0], [0], [1], [0, 0, 1, 1], [], []>} : vector<8x32xf32>, vector<32x128xf32>, vector<8x128xf32> -> vector<8x128xf32>
    %120 = vector.extract_strided_slice %119 {offsets = [0, 0], sizes = [8, 64], strides = [1, 1]} : vector<8x128xf32> to vector<8x64xf32>
    %121 = vector.extract_strided_slice %119 {offsets = [0, 64], sizes = [8, 64], strides = [1, 1]} : vector<8x128xf32> to vector<8x64xf32>
    %122 = tpu.concatenate %120, %121 in 0 : vector<8x64xf32>, vector<8x64xf32> -> vector<16x64xf32>
    %cst_51 = arith.constant dense<0.000000e+00> : vector<64x64xf32>
    %123 = tpu.matmul %2, %122, %cst_51 {dimension_numbers = #tpu.dot_dimension_numbers<[1], [0], [0], [1], [0, 0, 1, 1], [], []>} : vector<64x16xf32>, vector<16x64xf32>, vector<64x64xf32> -> vector<64x64xf32>
    %124 = arith.addf %123, %1 : vector<64x64xf32>
    %cst_52 = arith.constant 0.000000e+00 : f32
    %125 = vector.broadcast %cst_52 : f32 to vector<64x64xf32>
    %126 = arith.maximumf %124, %125 : vector<64x64xf32>
    %cst_53 = arith.constant dense<0.000000e+00> : vector<64x64xf32>
    %127 = tpu.matmul %126, %6, %cst_53 {dimension_numbers = #tpu.dot_dimension_numbers<[1], [0], [0], [1], [0, 0, 1, 1], [], []>} : vector<64x64xf32>, vector<64x64xf32>, vector<64x64xf32> -> vector<64x64xf32>
    %128 = arith.addf %127, %13 : vector<64x64xf32>
    %cst_54 = arith.constant 0.000000e+00 : f32
    %129 = vector.broadcast %cst_54 : f32 to vector<64x64xf32>
    %130 = arith.maximumf %128, %129 : vector<64x64xf32>
    %cst_55 = arith.constant dense<0.000000e+00> : vector<64x32xf32>
    %131 = tpu.matmul %130, %7, %cst_55 {dimension_numbers = #tpu.dot_dimension_numbers<[1], [0], [0], [1], [0, 0, 1, 1], [], []>} : vector<64x64xf32>, vector<64x32xf32>, vector<64x32xf32> -> vector<64x32xf32>
    %132 = arith.addf %131, %16 : vector<64x32xf32>
    %cst_56 = arith.constant dense<0.000000e+00> : vector<8x32xf32>
    %133 = tpu.matmul %3, %132, %cst_56 {dimension_numbers = #tpu.dot_dimension_numbers<[1], [0], [0], [1], [0, 0, 1, 1], [], []>} : vector<8x64xf32>, vector<64x32xf32>, vector<8x32xf32> -> vector<8x32xf32>
    %134 = tpu.concatenate %133, %118 in 1 : vector<8x32xf32>, vector<8x32xf32> -> vector<8x64xf32>
    %cst_57 = arith.constant dense<0.000000e+00> : vector<8x128xf32>
    %135 = tpu.matmul %134, %8, %cst_57 {dimension_numbers = #tpu.dot_dimension_numbers<[1], [0], [0], [1], [0, 0, 1, 1], [], []>} : vector<8x64xf32>, vector<64x128xf32>, vector<8x128xf32> -> vector<8x128xf32>
    %136 = vector.extract_strided_slice %135 {offsets = [0, 0], sizes = [8, 32], strides = [1, 1]} : vector<8x128xf32> to vector<8x32xf32>
    %137 = arith.addf %136, %19 : vector<8x32xf32>
    %138 = arith.negf %137 : vector<8x32xf32>
    %139 = math.exp %138 : vector<8x32xf32>
    %cst_58 = arith.constant 1.000000e+00 : f32
    %140 = vector.broadcast %cst_58 : f32 to vector<8x32xf32>
    %141 = arith.addf %140, %139 : vector<8x32xf32>
    %142 = arith.divf %140, %141 : vector<8x32xf32>
    %143 = vector.extract_strided_slice %135 {offsets = [0, 32], sizes = [8, 32], strides = [1, 1]} : vector<8x128xf32> to vector<8x32xf32>
    %144 = arith.addf %143, %22 : vector<8x32xf32>
    %145 = arith.negf %144 : vector<8x32xf32>
    %146 = math.exp %145 : vector<8x32xf32>
    %cst_59 = arith.constant 1.000000e+00 : f32
    %147 = vector.broadcast %cst_59 : f32 to vector<8x32xf32>
    %148 = arith.addf %147, %146 : vector<8x32xf32>
    %149 = arith.divf %147, %148 : vector<8x32xf32>
    %150 = vector.extract_strided_slice %135 {offsets = [0, 64], sizes = [8, 32], strides = [1, 1]} : vector<8x128xf32> to vector<8x32xf32>
    %151 = arith.addf %150, %25 : vector<8x32xf32>
    %152 = vector.extract_strided_slice %135 {offsets = [0, 96], sizes = [8, 32], strides = [1, 1]} : vector<8x128xf32> to vector<8x32xf32>
    %153 = arith.addf %152, %28 : vector<8x32xf32>
    %154 = arith.mulf %142, %153 : vector<8x32xf32>
    %155 = arith.addf %151, %154 : vector<8x32xf32>
    %156 = math.tanh %155 : vector<8x32xf32>
    %cst_60 = arith.constant 1.000000e+00 : f32
    %157 = vector.broadcast %cst_60 : f32 to vector<8x32xf32>
    %158 = arith.subf %157, %149 : vector<8x32xf32>
    %159 = arith.mulf %158, %156 : vector<8x32xf32>
    %160 = arith.mulf %149, %118 : vector<8x32xf32>
    %161 = arith.addf %159, %160 : vector<8x32xf32>
    %cst_61 = arith.constant dense<0.000000e+00> : vector<8x128xf32>
    %162 = tpu.matmul %161, %4, %cst_61 {dimension_numbers = #tpu.dot_dimension_numbers<[1], [0], [0], [1], [0, 0, 1, 1], [], []>} : vector<8x32xf32>, vector<32x128xf32>, vector<8x128xf32> -> vector<8x128xf32>
    %163 = vector.extract_strided_slice %162 {offsets = [0, 0], sizes = [8, 64], strides = [1, 1]} : vector<8x128xf32> to vector<8x64xf32>
    %164 = vector.extract_strided_slice %162 {offsets = [0, 64], sizes = [8, 64], strides = [1, 1]} : vector<8x128xf32> to vector<8x64xf32>
    %165 = tpu.concatenate %163, %164 in 0 : vector<8x64xf32>, vector<8x64xf32> -> vector<16x64xf32>
    %cst_62 = arith.constant dense<0.000000e+00> : vector<64x64xf32>
    %166 = tpu.matmul %2, %165, %cst_62 {dimension_numbers = #tpu.dot_dimension_numbers<[1], [0], [0], [1], [0, 0, 1, 1], [], []>} : vector<64x16xf32>, vector<16x64xf32>, vector<64x64xf32> -> vector<64x64xf32>
    %167 = arith.addf %166, %1 : vector<64x64xf32>
    %cst_63 = arith.constant 0.000000e+00 : f32
    %168 = vector.broadcast %cst_63 : f32 to vector<64x64xf32>
    %169 = arith.maximumf %167, %168 : vector<64x64xf32>
    %cst_64 = arith.constant dense<0.000000e+00> : vector<64x64xf32>
    %170 = tpu.matmul %169, %6, %cst_64 {dimension_numbers = #tpu.dot_dimension_numbers<[1], [0], [0], [1], [0, 0, 1, 1], [], []>} : vector<64x64xf32>, vector<64x64xf32>, vector<64x64xf32> -> vector<64x64xf32>
    %171 = arith.addf %170, %13 : vector<64x64xf32>
    %cst_65 = arith.constant 0.000000e+00 : f32
    %172 = vector.broadcast %cst_65 : f32 to vector<64x64xf32>
    %173 = arith.maximumf %171, %172 : vector<64x64xf32>
    %cst_66 = arith.constant dense<0.000000e+00> : vector<64x32xf32>
    %174 = tpu.matmul %173, %7, %cst_66 {dimension_numbers = #tpu.dot_dimension_numbers<[1], [0], [0], [1], [0, 0, 1, 1], [], []>} : vector<64x64xf32>, vector<64x32xf32>, vector<64x32xf32> -> vector<64x32xf32>
    %175 = arith.addf %174, %16 : vector<64x32xf32>
    %cst_67 = arith.constant dense<0.000000e+00> : vector<8x32xf32>
    %176 = tpu.matmul %3, %175, %cst_67 {dimension_numbers = #tpu.dot_dimension_numbers<[1], [0], [0], [1], [0, 0, 1, 1], [], []>} : vector<8x64xf32>, vector<64x32xf32>, vector<8x32xf32> -> vector<8x32xf32>
    %177 = tpu.concatenate %176, %161 in 1 : vector<8x32xf32>, vector<8x32xf32> -> vector<8x64xf32>
    %cst_68 = arith.constant dense<0.000000e+00> : vector<8x128xf32>
    %178 = tpu.matmul %177, %8, %cst_68 {dimension_numbers = #tpu.dot_dimension_numbers<[1], [0], [0], [1], [0, 0, 1, 1], [], []>} : vector<8x64xf32>, vector<64x128xf32>, vector<8x128xf32> -> vector<8x128xf32>
    %179 = vector.extract_strided_slice %178 {offsets = [0, 0], sizes = [8, 32], strides = [1, 1]} : vector<8x128xf32> to vector<8x32xf32>
    %180 = arith.addf %179, %19 : vector<8x32xf32>
    %181 = arith.negf %180 : vector<8x32xf32>
    %182 = math.exp %181 : vector<8x32xf32>
    %cst_69 = arith.constant 1.000000e+00 : f32
    %183 = vector.broadcast %cst_69 : f32 to vector<8x32xf32>
    %184 = arith.addf %183, %182 : vector<8x32xf32>
    %185 = arith.divf %183, %184 : vector<8x32xf32>
    %186 = vector.extract_strided_slice %178 {offsets = [0, 32], sizes = [8, 32], strides = [1, 1]} : vector<8x128xf32> to vector<8x32xf32>
    %187 = arith.addf %186, %22 : vector<8x32xf32>
    %188 = arith.negf %187 : vector<8x32xf32>
    %189 = math.exp %188 : vector<8x32xf32>
    %cst_70 = arith.constant 1.000000e+00 : f32
    %190 = vector.broadcast %cst_70 : f32 to vector<8x32xf32>
    %191 = arith.addf %190, %189 : vector<8x32xf32>
    %192 = arith.divf %190, %191 : vector<8x32xf32>
    %193 = vector.extract_strided_slice %178 {offsets = [0, 64], sizes = [8, 32], strides = [1, 1]} : vector<8x128xf32> to vector<8x32xf32>
    %194 = arith.addf %193, %25 : vector<8x32xf32>
    %195 = vector.extract_strided_slice %178 {offsets = [0, 96], sizes = [8, 32], strides = [1, 1]} : vector<8x128xf32> to vector<8x32xf32>
    %196 = arith.addf %195, %28 : vector<8x32xf32>
    %197 = arith.mulf %185, %196 : vector<8x32xf32>
    %198 = arith.addf %194, %197 : vector<8x32xf32>
    %199 = math.tanh %198 : vector<8x32xf32>
    %cst_71 = arith.constant 1.000000e+00 : f32
    %200 = vector.broadcast %cst_71 : f32 to vector<8x32xf32>
    %201 = arith.subf %200, %192 : vector<8x32xf32>
    %202 = arith.mulf %201, %199 : vector<8x32xf32>
    %203 = arith.mulf %192, %161 : vector<8x32xf32>
    %204 = arith.addf %202, %203 : vector<8x32xf32>
    %cst_72 = arith.constant dense<0.000000e+00> : vector<8x128xf32>
    %205 = tpu.matmul %204, %4, %cst_72 {dimension_numbers = #tpu.dot_dimension_numbers<[1], [0], [0], [1], [0, 0, 1, 1], [], []>} : vector<8x32xf32>, vector<32x128xf32>, vector<8x128xf32> -> vector<8x128xf32>
    %206 = vector.extract_strided_slice %205 {offsets = [0, 0], sizes = [8, 64], strides = [1, 1]} : vector<8x128xf32> to vector<8x64xf32>
    %207 = vector.extract_strided_slice %205 {offsets = [0, 64], sizes = [8, 64], strides = [1, 1]} : vector<8x128xf32> to vector<8x64xf32>
    %208 = tpu.concatenate %206, %207 in 0 : vector<8x64xf32>, vector<8x64xf32> -> vector<16x64xf32>
    %cst_73 = arith.constant dense<0.000000e+00> : vector<64x64xf32>
    %209 = tpu.matmul %2, %208, %cst_73 {dimension_numbers = #tpu.dot_dimension_numbers<[1], [0], [0], [1], [0, 0, 1, 1], [], []>} : vector<64x16xf32>, vector<16x64xf32>, vector<64x64xf32> -> vector<64x64xf32>
    %210 = arith.addf %209, %1 : vector<64x64xf32>
    %cst_74 = arith.constant 0.000000e+00 : f32
    %211 = vector.broadcast %cst_74 : f32 to vector<64x64xf32>
    %212 = arith.maximumf %210, %211 : vector<64x64xf32>
    %cst_75 = arith.constant dense<0.000000e+00> : vector<64x64xf32>
    %213 = tpu.matmul %212, %6, %cst_75 {dimension_numbers = #tpu.dot_dimension_numbers<[1], [0], [0], [1], [0, 0, 1, 1], [], []>} : vector<64x64xf32>, vector<64x64xf32>, vector<64x64xf32> -> vector<64x64xf32>
    %214 = arith.addf %213, %13 : vector<64x64xf32>
    %cst_76 = arith.constant 0.000000e+00 : f32
    %215 = vector.broadcast %cst_76 : f32 to vector<64x64xf32>
    %216 = arith.maximumf %214, %215 : vector<64x64xf32>
    %cst_77 = arith.constant dense<0.000000e+00> : vector<64x32xf32>
    %217 = tpu.matmul %216, %7, %cst_77 {dimension_numbers = #tpu.dot_dimension_numbers<[1], [0], [0], [1], [0, 0, 1, 1], [], []>} : vector<64x64xf32>, vector<64x32xf32>, vector<64x32xf32> -> vector<64x32xf32>
    %218 = arith.addf %217, %16 : vector<64x32xf32>
    %cst_78 = arith.constant dense<0.000000e+00> : vector<8x32xf32>
    %219 = tpu.matmul %3, %218, %cst_78 {dimension_numbers = #tpu.dot_dimension_numbers<[1], [0], [0], [1], [0, 0, 1, 1], [], []>} : vector<8x64xf32>, vector<64x32xf32>, vector<8x32xf32> -> vector<8x32xf32>
    %220 = tpu.concatenate %219, %204 in 1 : vector<8x32xf32>, vector<8x32xf32> -> vector<8x64xf32>
    %cst_79 = arith.constant dense<0.000000e+00> : vector<8x128xf32>
    %221 = tpu.matmul %220, %8, %cst_79 {dimension_numbers = #tpu.dot_dimension_numbers<[1], [0], [0], [1], [0, 0, 1, 1], [], []>} : vector<8x64xf32>, vector<64x128xf32>, vector<8x128xf32> -> vector<8x128xf32>
    %222 = vector.extract_strided_slice %221 {offsets = [0, 0], sizes = [8, 32], strides = [1, 1]} : vector<8x128xf32> to vector<8x32xf32>
    %223 = arith.addf %222, %19 : vector<8x32xf32>
    %224 = arith.negf %223 : vector<8x32xf32>
    %225 = math.exp %224 : vector<8x32xf32>
    %cst_80 = arith.constant 1.000000e+00 : f32
    %226 = vector.broadcast %cst_80 : f32 to vector<8x32xf32>
    %227 = arith.addf %226, %225 : vector<8x32xf32>
    %228 = arith.divf %226, %227 : vector<8x32xf32>
    %229 = vector.extract_strided_slice %221 {offsets = [0, 32], sizes = [8, 32], strides = [1, 1]} : vector<8x128xf32> to vector<8x32xf32>
    %230 = arith.addf %229, %22 : vector<8x32xf32>
    %231 = arith.negf %230 : vector<8x32xf32>
    %232 = math.exp %231 : vector<8x32xf32>
    %cst_81 = arith.constant 1.000000e+00 : f32
    %233 = vector.broadcast %cst_81 : f32 to vector<8x32xf32>
    %234 = arith.addf %233, %232 : vector<8x32xf32>
    %235 = arith.divf %233, %234 : vector<8x32xf32>
    %236 = vector.extract_strided_slice %221 {offsets = [0, 64], sizes = [8, 32], strides = [1, 1]} : vector<8x128xf32> to vector<8x32xf32>
    %237 = arith.addf %236, %25 : vector<8x32xf32>
    %238 = vector.extract_strided_slice %221 {offsets = [0, 96], sizes = [8, 32], strides = [1, 1]} : vector<8x128xf32> to vector<8x32xf32>
    %239 = arith.addf %238, %28 : vector<8x32xf32>
    %240 = arith.mulf %228, %239 : vector<8x32xf32>
    %241 = arith.addf %237, %240 : vector<8x32xf32>
    %242 = math.tanh %241 : vector<8x32xf32>
    %cst_82 = arith.constant 1.000000e+00 : f32
    %243 = vector.broadcast %cst_82 : f32 to vector<8x32xf32>
    %244 = arith.subf %243, %235 : vector<8x32xf32>
    %245 = arith.mulf %244, %242 : vector<8x32xf32>
    %246 = arith.mulf %235, %204 : vector<8x32xf32>
    %247 = arith.addf %245, %246 : vector<8x32xf32>
    %cst_83 = arith.constant dense<0.000000e+00> : vector<8x64xf32>
    %248 = tpu.matmul %247, %5, %cst_83 {dimension_numbers = #tpu.dot_dimension_numbers<[1], [0], [0], [1], [0, 0, 1, 1], [], []>} : vector<8x32xf32>, vector<32x64xf32>, vector<8x64xf32> -> vector<8x64xf32>
    %249 = vector.broadcast %29 : vector<1x64xf32> to vector<8x64xf32>
    %250 = arith.addf %248, %249 : vector<8x64xf32>
    %cst_84 = arith.constant 0.000000e+00 : f32
    %251 = vector.broadcast %cst_84 : f32 to vector<8x64xf32>
    %252 = arith.maximumf %250, %251 : vector<8x64xf32>
    %cst_85 = arith.constant dense<0.000000e+00> : vector<8x64xf32>
    %253 = tpu.matmul %252, %9, %cst_85 {dimension_numbers = #tpu.dot_dimension_numbers<[1], [0], [0], [1], [0, 0, 1, 1], [], []>} : vector<8x64xf32>, vector<64x64xf32>, vector<8x64xf32> -> vector<8x64xf32>
    %254 = vector.broadcast %30 : vector<1x64xf32> to vector<8x64xf32>
    %255 = arith.addf %253, %254 : vector<8x64xf32>
    %cst_86 = arith.constant 0.000000e+00 : f32
    %256 = vector.broadcast %cst_86 : f32 to vector<8x64xf32>
    %257 = arith.maximumf %255, %256 : vector<8x64xf32>
    %cst_87 = arith.constant dense<0.000000e+00> : vector<8x2xf32>
    %258 = tpu.matmul %257, %10, %cst_87 {dimension_numbers = #tpu.dot_dimension_numbers<[1], [0], [0], [1], [0, 0, 1, 1], [], []>} : vector<8x64xf32>, vector<64x2xf32>, vector<8x2xf32> -> vector<8x2xf32>
    %259 = vector.broadcast %31 : vector<1x2xf32> to vector<8x2xf32>
    %260 = arith.addf %258, %259 : vector<8x2xf32>
    %cst_88 = arith.constant dense<0xFF800000> : vector<8xf32>
    %261 = vector.multi_reduction <maximumf>, %260, %cst_88 [1] : vector<8x2xf32> to vector<8xf32>
    %262 = vector.shape_cast %261 : vector<8xf32> to vector<8x1xf32>
    %263 = vector.broadcast %262 : vector<8x1xf32> to vector<8x2xf32>
    %264 = arith.subf %260, %263 : vector<8x2xf32>
    %265 = math.exp %264 : vector<8x2xf32>
    %cst_89 = arith.constant dense<0.000000e+00> : vector<8xf32>
    %266 = vector.multi_reduction <add>, %265, %cst_89 [1] : vector<8x2xf32> to vector<8xf32>
    %267 = vector.shape_cast %266 : vector<8xf32> to vector<8x1xf32>
    %268 = vector.broadcast %267 : vector<8x1xf32> to vector<8x2xf32>
    %269 = arith.divf %265, %268 : vector<8x2xf32>
    %c0_90 = arith.constant 0 : index
    %c0_91 = arith.constant 0 : index
    %c0_92 = arith.constant 0 : index
    %270 = vector.load %arg9[%c0_90, %c0_91, %c0_92] : memref<1x8x2xf32, #tpu.memory_space<vmem>>, vector<1x8x2xf32>
    %271 = vector.shape_cast %270 : vector<1x8x2xf32> to vector<8x2xf32>
    %272 = vector.shape_cast %269 : vector<8x2xf32> to vector<1x8x2xf32>
    tpu.vector_store %arg9[%c0_90, %c0_91, %c0_92], %272 {strides = array<i32>} : memref<1x8x2xf32, #tpu.memory_space<vmem>>, vector<1x8x2xf32>,
    return
  }
  func.func @transform_0(%arg0: i32) -> (i32, i32, i32) {
    %c0_i32 = arith.constant 0 : i32
    %c0_i32_0 = arith.constant 0 : i32
    %c0_i32_1 = arith.constant 0 : i32
    return %arg0, %c0_i32, %c0_i32_0 : i32, i32, i32
  }
  func.func @transform_1(%arg0: i32) -> (i32, i32) {
    %c0_i32 = arith.constant 0 : i32
    %c0_i32_0 = arith.constant 0 : i32
    %c0_i32_1 = arith.constant 0 : i32
    return %c0_i32, %c0_i32_0 : i32, i32
  }
  func.func @transform_2(%arg0: i32) -> (i32, i32) {
    %c0_i32 = arith.constant 0 : i32
    %c0_i32_0 = arith.constant 0 : i32
    %c0_i32_1 = arith.constant 0 : i32
    return %c0_i32, %c0_i32_0 : i32, i32
  }
  func.func @transform_3(%arg0: i32) -> (i32, i32) {
    %c0_i32 = arith.constant 0 : i32
    %c0_i32_0 = arith.constant 0 : i32
    %c0_i32_1 = arith.constant 0 : i32
    return %c0_i32, %c0_i32_0 : i32, i32
  }
  func.func @transform_4(%arg0: i32) -> (i32, i32) {
    %c0_i32 = arith.constant 0 : i32
    %c0_i32_0 = arith.constant 0 : i32
    %c0_i32_1 = arith.constant 0 : i32
    return %c0_i32, %c0_i32_0 : i32, i32
  }
  func.func @transform_5(%arg0: i32) -> (i32, i32) {
    %c0_i32 = arith.constant 0 : i32
    %c0_i32_0 = arith.constant 0 : i32
    %c0_i32_1 = arith.constant 0 : i32
    return %c0_i32, %c0_i32_0 : i32, i32
  }
  func.func @transform_6(%arg0: i32) -> (i32, i32) {
    %c0_i32 = arith.constant 0 : i32
    %c0_i32_0 = arith.constant 0 : i32
    %c0_i32_1 = arith.constant 0 : i32
    return %c0_i32, %c0_i32_0 : i32, i32
  }
  func.func @transform_7(%arg0: i32) -> (i32, i32) {
    %c0_i32 = arith.constant 0 : i32
    %c0_i32_0 = arith.constant 0 : i32
    %c0_i32_1 = arith.constant 0 : i32
    return %c0_i32, %c0_i32_0 : i32, i32
  }
  func.func @transform_8(%arg0: i32) -> (i32, i32, i32) {
    %c0_i32 = arith.constant 0 : i32
    %c0_i32_0 = arith.constant 0 : i32
    %c0_i32_1 = arith.constant 0 : i32
    return %arg0, %c0_i32, %c0_i32_0 : i32, i32, i32
  }
}

</mosaic_0001>

<llo_original>
// kernel: tpu_custom_call.1
$region0: #{tpu_custom_call.1}
  #allocation0 [shape = 'u32[]', space=smem, size = 0x4, offset = 0x4, fixed_abs, tag = 'smem constant byte address 0x4 - core index']
  #allocation1 [shape = 'u32[144,128]{1,0:T(1,128)}', space=vmem, size = 0x12000, scoped, tag = 'internal scratch']
  %s0 = inlined_call_operand.hbm [shape: f32[4,64,64], index: 0, kind: input, shape index: {}]
  %s1 = inlined_call_operand.vmem [shape: f32[64,16], index: 1, kind: input, shape index: {}]
  %s2 = inlined_call_operand.hbm [shape: f32[8,64], index: 2, kind: input, shape index: {}]
  %s3 = inlined_call_operand.vmem [shape: f32[32,192], index: 3, kind: input, shape index: {}]
  %s4 = inlined_call_operand.hbm [shape: f32[64,96], index: 4, kind: input, shape index: {}]
  %s5 = inlined_call_operand.hbm [shape: f32[64,128], index: 5, kind: input, shape index: {}]
  %s6 = inlined_call_operand.hbm [shape: f32[64,66], index: 6, kind: input, shape index: {}]
  %s7 = inlined_call_operand.vmem [shape: f32[9,64], index: 7, kind: input, shape index: {}]
  %s8 = inlined_call_operand.vmem [shape: f32[4,8,2], index: 8, kind: output, shape index: {}]
  %s9 = sld [smem:[#allocation0]]
  $region85: #{tpu_custom_call.1} parent=0
    _
  %s11 = ssub.s32 1, %s9
  %s12 = scalar_select 0, %s11, %s9
  $region1: #{tpu_custom_call.1} parent=0
    #allocation2 [shape = 'u8[65536]{0}', space=vmem, size = 0x10000, scoped, tag = 'input window, operand 0']
    #allocation3 [shape = 's32[2]{0}', space=sflag, size = 0x8, scoped, tag = 'scoped memory for tpu_custom_call.1']
    #allocation4 [shape = 'u8[4096]{0}', space=vmem, size = 0x1000, scoped, tag = 'input window, operand 2, single buffered']
    #allocation5 [shape = 's32[1]{0}', space=sflag, size = 0x4, scoped, tag = 'scoped memory for tpu_custom_call.1']
    #allocation6 [shape = 'u8[32768]{0}', space=vmem, size = 0x8000, scoped, tag = 'input window, operand 4, single buffered']
    #allocation7 [shape = 'u8[32768]{0}', space=vmem, size = 0x8000, scoped, tag = 'input window, operand 5, single buffered']
    #allocation8 [shape = 's32[1]{0}', space=sflag, size = 0x4, scoped, tag = 'scoped memory for tpu_custom_call.1']
    #allocation9 [shape = 'u8[32768]{0}', space=vmem, size = 0x8000, scoped, tag = 'input window, operand 6, single buffered']
    %13 = vsyncpa [#allocation3], 0
    %s14 = scalar_lea.sflag [#allocation3], 1
    %15 = vsyncpa %s14, 0
    %16 = vsyncpa [#allocation5], 0
    %17 = vsyncpa [#allocation8], 0
    loop: start=0, step=1, limit=6
    $region2: #{tpu_custom_call.1} parent=1 // loop_pre_header
      _
    $region3: #{tpu_custom_call.1} parent=1 // loop_header
      %s19 = sphi 0, %s23
      %p20 = scmp.ge.s32.totalorder %s19, 6
      %s29 = sphi 0, %s31
      %s32 = sphi 0, %s29
      %s33 = sphi 0, %s32
      %s49 = sphi 0, %s33
      %s53 = sphi 0, %s53
      %s55 = sphi 0, %s53
      %s56 = sphi 0, %s55
      %s70 = sphi 0, %s56
      %s74 = sphi 0, %s74
      %s76 = sphi 0, %s74
      %s77 = sphi 0, %s76
      %s91 = sphi 0, %s77
      %s95 = sphi 0, %s95
      %s97 = sphi 0, %s95
      %s98 = sphi 0, %s97
      %s112 = sphi 0, %s98
      %s116 = sphi 0, %s116
      %s118 = sphi 0, %s116
      %s119 = sphi 0, %s118
      %s133 = sphi 0, %s119
      %s137 = sphi 0, %s137
      %s139 = sphi 0, %s137
      %s140 = sphi 0, %s139
      %s154 = sphi 0, %s140
      %s158 = sphi 0, %s158
      %s160 = sphi 0, %s158
      %s161 = sphi 0, %s160
      %s175 = sphi 0, %s161
      %s179 = sphi 0, %s179
      %s181 = sphi 0, %s179
      %s182 = sphi 0, %s181
      %s196 = sphi 0, %s182
      %s202 = sphi 0, %s204
      %s205 = sphi 0, %s202
      %s206 = sphi 0, %s205
      %s222 = sphi 0, %s206
    $region4: #{tpu_custom_call.1} parent=1 // loop_header_branch
      %22 = sbr.rel (%p20) target = $region8
    $region5: #{tpu_custom_call.1} parent=1 // loop_body
      %s24 = ssub.s32 %s19, 1
      %s25 = ssub.s32 %s19, 2
      %s26 = sadd.s32 %s19, 1
      %s27 = ssub.s32 %s19, %s26
      %p28 = scmp.eq.s32.totalorder %s27, 0
      %s30 = sadd.s32 %s29, 1
      %s31 = scalar_select %p28, %s29, %s30
      %p34 = pneg %p28
      %p35 = scmp.eq.s32.totalorder %s19, 3
      %p36 = por %p34, %p35
      %p37 = scmp.ne.s32.totalorder %s29, %s32
      %p38 = scmp.eq.s32.totalorder %s19, 0
      %p39 = por %p37, %p38
      %p40 = scmp.ne.s32.totalorder %s29, %s32
      %p41 = scmp.eq.s32.totalorder %s24, 3
      %p42 = por %p40, %p41
      %p43 = scmp.ne.s32.totalorder %s32, %s33
      %p44 = scmp.eq.s32.totalorder %s24, 0
      %p45 = por %p43, %p44
      %p46 = scmp.ne.s32.totalorder %s32, %s33
      %p47 = scmp.eq.s32.totalorder %s25, 3
      %p48 = por %p46, %p47
      %p50 = scmp.ne.s32.totalorder %s33, %s49
      %p51 = scmp.eq.s32.totalorder %s25, 0
      %p52 = por %p50, %p51
      %s54 = sadd.s32 %s53, 1
      %p57 = scmp.eq.s32.totalorder %s19, 3
      %p58 = scmp.ne.s32.totalorder %s53, %s55
      %p59 = scmp.eq.s32.totalorder %s19, 0
      %p60 = por %p58, %p59
      %p61 = scmp.ne.s32.totalorder %s53, %s55
      %p62 = scmp.eq.s32.totalorder %s24, 3
      %p63 = por %p61, %p62
      %p64 = scmp.ne.s32.totalorder %s55, %s56
      %p65 = scmp.eq.s32.totalorder %s24, 0
      %p66 = por %p64, %p65
      %p67 = scmp.ne.s32.totalorder %s55, %s56
      %p68 = scmp.eq.s32.totalorder %s25, 3
      %p69 = por %p67, %p68
      %p71 = scmp.ne.s32.totalorder %s56, %s70
      %p72 = scmp.eq.s32.totalorder %s25, 0
      %p73 = por %p71, %p72
      %s75 = sadd.s32 %s74, 1
      %p78 = scmp.eq.s32.totalorder %s19, 3
      %p79 = scmp.ne.s32.totalorder %s74, %s76
      %p80 = scmp.eq.s32.totalorder %s19, 0
      %p81 = por %p79, %p80
      %p82 = scmp.ne.s32.totalorder %s74, %s76
      %p83 = scmp.eq.s32.totalorder %s24, 3
      %p84 = por %p82, %p83
      %p85 = scmp.ne.s32.totalorder %s76, %s77
      %p86 = scmp.eq.s32.totalorder %s24, 0
      %p87 = por %p85, %p86
      %p88 = scmp.ne.s32.totalorder %s76, %s77
      %p89 = scmp.eq.s32.totalorder %s25, 3
      %p90 = por %p88, %p89
      %p92 = scmp.ne.s32.totalorder %s77, %s91
      %p93 = scmp.eq.s32.totalorder %s25, 0
      %p94 = por %p92, %p93
      %s96 = sadd.s32 %s95, 1
      %p99 = scmp.eq.s32.totalorder %s19, 3
      %p100 = scmp.ne.s32.totalorder %s95, %s97
      %p101 = scmp.eq.s32.totalorder %s19, 0
      %p102 = por %p100, %p101
      %p103 = scmp.ne.s32.totalorder %s95, %s97
      %p104 = scmp.eq.s32.totalorder %s24, 3
      %p105 = por %p103, %p104
      %p106 = scmp.ne.s32.totalorder %s97, %s98
      %p107 = scmp.eq.s32.totalorder %s24, 0
      %p108 = por %p106, %p107
      %p109 = scmp.ne.s32.totalorder %s97, %s98
      %p110 = scmp.eq.s32.totalorder %s25, 3
      %p111 = por %p109, %p110
      %p113 = scmp.ne.s32.totalorder %s98, %s112
      %p114 = scmp.eq.s32.totalorder %s25, 0
      %p115 = por %p113, %p114
      %s117 = sadd.s32 %s116, 1
      %p120 = scmp.eq.s32.totalorder %s19, 3
      %p121 = scmp.ne.s32.totalorder %s116, %s118
      %p122 = scmp.eq.s32.totalorder %s19, 0
      %p123 = por %p121, %p122
      %p124 = scmp.ne.s32.totalorder %s116, %s118
      %p125 = scmp.eq.s32.totalorder %s24, 3
      %p126 = por %p124, %p125
      %p127 = scmp.ne.s32.totalorder %s118, %s119
      %p128 = scmp.eq.s32.totalorder %s24, 0
      %p129 = por %p127, %p128
      %p130 = scmp.ne.s32.totalorder %s118, %s119
      %p131 = scmp.eq.s32.totalorder %s25, 3
      %p132 = por %p130, %p131
      %p134 = scmp.ne.s32.totalorder %s119, %s133
      %p135 = scmp.eq.s32.totalorder %s25, 0
      %p136 = por %p134, %p135
      %s138 = sadd.s32 %s137, 1
      %p141 = scmp.eq.s32.totalorder %s19, 3
      %p142 = scmp.ne.s32.totalorder %s137, %s139
      %p143 = scmp.eq.s32.totalorder %s19, 0
      %p144 = por %p142, %p143
      %p145 = scmp.ne.s32.totalorder %s137, %s139
      %p146 = scmp.eq.s32.totalorder %s24, 3
      %p147 = por %p145, %p146
      %p148 = scmp.ne.s32.totalorder %s139, %s140
      %p149 = scmp.eq.s32.totalorder %s24, 0
      %p150 = por %p148, %p149
      %p151 = scmp.ne.s32.totalorder %s139, %s140
      %p152 = scmp.eq.s32.totalorder %s25, 3
      %p153 = por %p151, %p152
      %p155 = scmp.ne.s32.totalorder %s140, %s154
      %p156 = scmp.eq.s32.totalorder %s25, 0
      %p157 = por %p155, %p156
      %s159 = sadd.s32 %s158, 1
      %p162 = scmp.eq.s32.totalorder %s19, 3
      %p163 = scmp.ne.s32.totalorder %s158, %s160
      %p164 = scmp.eq.s32.totalorder %s19, 0
      %p165 = por %p163, %p164
      %p166 = scmp.ne.s32.totalorder %s158, %s160
      %p167 = scmp.eq.s32.totalorder %s24, 3
      %p168 = por %p166, %p167
      %p169 = scmp.ne.s32.totalorder %s160, %s161
      %p170 = scmp.eq.s32.totalorder %s24, 0
      %p171 = por %p169, %p170
      %p172 = scmp.ne.s32.totalorder %s160, %s161
      %p173 = scmp.eq.s32.totalorder %s25, 3
      %p174 = por %p172, %p173
      %p176 = scmp.ne.s32.totalorder %s161, %s175
      %p177 = scmp.eq.s32.totalorder %s25, 0
      %p178 = por %p176, %p177
      %s180 = sadd.s32 %s179, 1
      %p183 = scmp.eq.s32.totalorder %s19, 3
      %p184 = scmp.ne.s32.totalorder %s179, %s181
      %p185 = scmp.eq.s32.totalorder %s19, 0
      %p186 = por %p184, %p185
      %p187 = scmp.ne.s32.totalorder %s179, %s181
      %p188 = scmp.eq.s32.totalorder %s24, 3
      %p189 = por %p187, %p188
      %p190 = scmp.ne.s32.totalorder %s181, %s182
      %p191 = scmp.eq.s32.totalorder %s24, 0
      %p192 = por %p190, %p191
      %p193 = scmp.ne.s32.totalorder %s181, %s182
      %p194 = scmp.eq.s32.totalorder %s25, 3
      %p195 = por %p193, %p194
      %p197 = scmp.ne.s32.totalorder %s182, %s196
      %p198 = scmp.eq.s32.totalorder %s25, 0
      %p199 = por %p197, %p198
      %s200 = ssub.s32 %s19, %s26
      %p201 = scmp.eq.s32.totalorder %s200, 0
      %s203 = sadd.s32 %s202, 1
      %s204 = scalar_select %p201, %s202, %s203
      %p207 = pneg %p201
      %p208 = scmp.eq.s32.totalorder %s19, 3
      %p209 = por %p207, %p208
      %p210 = scmp.ne.s32.totalorder %s202, %s205
      %p211 = scmp.eq.s32.totalorder %s19, 0
      %p212 = por %p210, %p211
      %p213 = scmp.ne.s32.totalorder %s202, %s205
      %p214 = scmp.eq.s32.totalorder %s24, 3
      %p215 = por %p213, %p214
      %p216 = scmp.ne.s32.totalorder %s205, %s206
      %p217 = scmp.eq.s32.totalorder %s24, 0
      %p218 = por %p216, %p217
      %p219 = scmp.ne.s32.totalorder %s205, %s206
      %p220 = scmp.eq.s32.totalorder %s25, 3
      %p221 = por %p219, %p220
      %p223 = scmp.ne.s32.totalorder %s206, %s222
      %p224 = scmp.eq.s32.totalorder %s25, 0
      %p225 = por %p223, %p224
      %p226 = scmp.le.s32.totalorder 1, %s19
      %p227 = scmp.lt.s32.totalorder %s19, 5
      %p228 = pnand %p226, %p227
      %p229 = pneg %p228
      // Predicated region
      $region9: #{tpu_custom_call.1} parent=5 // pred_check
        _
      $region10: #{tpu_custom_call.1} parent=5 // pred_check_branch
        %231 = sbr.rel (%p228) target = $region12
      $region11: #{tpu_custom_call.1} parent=5 // pred_region
        %s232 = ssub.s32 %s19, 1
        // Predicated region
        $region13: #{tpu_custom_call.1} parent=11 // pred_check
          %p233 = pneg %p66
        $region14: #{tpu_custom_call.1} parent=11 // pred_check_branch
          %235 = sbr.rel (%p233) target = $region16
        $region15: #{tpu_custom_call.1} parent=11 // pred_region
          _
        $region16: #{tpu_custom_call.1} parent=11 // pred_fallthru
          _
        // Predicated region
        $region17: #{tpu_custom_call.1} parent=11 // pred_check
          %p236 = pneg %p87
        $region18: #{tpu_custom_call.1} parent=11 // pred_check_branch
          %238 = sbr.rel (%p236) target = $region20
        $region19: #{tpu_custom_call.1} parent=11 // pred_region
          %s240 = ssub.s32 128, 128
          %241 = vsyncadd [#allocation5], %s240
          %s243 = sshll.u32 [#allocation4], 4
          %s244 = int_to_ptr.vmem [resolvable:$true] %s243
          %246 = dma.hbm_to_vmem [thread:$0]  %s2, 128, %s244, [#allocation5]
        $region20: #{tpu_custom_call.1} parent=11 // pred_fallthru
          _
        // Predicated region
        $region21: #{tpu_custom_call.1} parent=11 // pred_check
          %p247 = pneg %p108
        $region22: #{tpu_custom_call.1} parent=11 // pred_check_branch
          %249 = sbr.rel (%p247) target = $region24
        $region23: #{tpu_custom_call.1} parent=11 // pred_region
          _
        $region24: #{tpu_custom_call.1} parent=11 // pred_fallthru
          _
        // Predicated region
        $region25: #{tpu_custom_call.1} parent=11 // pred_check
          %p250 = pneg %p129
        $region26: #{tpu_custom_call.1} parent=11 // pred_check_branch
          %252 = sbr.rel (%p250) target = $region28
        $region27: #{tpu_custom_call.1} parent=11 // pred_region
          %s254 = ssub.s32 1024, 1024
          %255 = vsyncadd [#allocation5], %s254
          %s256 = sshll.u32 [#allocation6], 4
          %s257 = int_to_ptr.vmem [resolvable:$true] %s256
          %262 = dma.hbm_to_vmem [thread:$0]  %s4, 1024, %s257, [#allocation5], 128, 128, 8
        $region28: #{tpu_custom_call.1} parent=11 // pred_fallthru
          _
        // Predicated region
        $region29: #{tpu_custom_call.1} parent=11 // pred_check
          %p263 = pneg %p150
        $region30: #{tpu_custom_call.1} parent=11 // pred_check_branch
          %265 = sbr.rel (%p263) target = $region32
        $region31: #{tpu_custom_call.1} parent=11 // pred_region
          %s267 = ssub.s32 1024, 1024
          %268 = vsyncadd [#allocation8], %s267
          %s269 = sshll.u32 [#allocation7], 4
          %s270 = int_to_ptr.vmem [resolvable:$true] %s269
          %275 = dma.hbm_to_vmem [thread:$0]  %s5, 1024, %s270, [#allocation8], 128, 128, 8
        $region32: #{tpu_custom_call.1} parent=11 // pred_fallthru
          _
        // Predicated region
        $region33: #{tpu_custom_call.1} parent=11 // pred_check
          %p276 = pneg %p171
        $region34: #{tpu_custom_call.1} parent=11 // pred_check_branch
          %278 = sbr.rel (%p276) target = $region36
        $region35: #{tpu_custom_call.1} parent=11 // pred_region
          %s280 = ssub.s32 1024, 1024
          %281 = vsyncadd [#allocation8], %s280
          %s282 = sshll.u32 [#allocation9], 4
          %s283 = int_to_ptr.vmem [resolvable:$true] %s282
          %288 = dma.hbm_to_vmem [thread:$0]  %s6, 1024, %s283, [#allocation8], 128, 128, 8
        $region36: #{tpu_custom_call.1} parent=11 // pred_fallthru
          _
        // Predicated region
        $region37: #{tpu_custom_call.1} parent=11 // pred_check
          %p289 = pneg %p192
        $region38: #{tpu_custom_call.1} parent=11 // pred_check_branch
          %291 = sbr.rel (%p289) target = $region40
        $region39: #{tpu_custom_call.1} parent=11 // pred_region
          _
        $region40: #{tpu_custom_call.1} parent=11 // pred_fallthru
          _
      $region12: #{tpu_custom_call.1} parent=5 // pred_fallthru
        _
      %p292 = scmp.lt.s32.totalorder %s19, 4
      // Predicated region
      $region41: #{tpu_custom_call.1} parent=5 // pred_check
        %p293 = pneg %p292
      $region42: #{tpu_custom_call.1} parent=5 // pred_check_branch
        %295 = sbr.rel (%p293) target = $region44
      $region43: #{tpu_custom_call.1} parent=5 // pred_region
        // Predicated region
        $region45: #{tpu_custom_call.1} parent=43 // pred_check
          %p296 = pneg %p39
        $region46: #{tpu_custom_call.1} parent=43 // pred_check_branch
          %298 = sbr.rel (%p296) target = $region48
        $region47: #{tpu_custom_call.1} parent=43 // pred_region
          %s299 = sand.u32 %s29, 1
          %s300 = scalar_lea.sflag [#allocation3], %s299
          %s301 = sand.u32 %s29, 1
          %s302 = smul.addr %s301, 64
          %s303 = scalar_lea.vmem [#allocation2], %s302
          %s305 = ssub.s32 1024, 1024
          %306 = vsyncadd %s300, %s305
          %s307 = smul.addr %s19, 8
          %s308 = smul.addr %s307, 128
          %s309 = scalar_lea.hbm %s0, %s308
          %s310 = sshll.u32 %s303, 4
          %s311 = int_to_ptr.vmem [resolvable:$true] %s310
          %316 = dma.hbm_to_vmem [thread:$0]  %s309, 1024, %s311, %s300, 128, 128, 8
        $region48: #{tpu_custom_call.1} parent=43 // pred_fallthru
          _
      $region44: #{tpu_custom_call.1} parent=5 // pred_fallthru
        _
      %p317 = scmp.le.s32.totalorder 1, %s19
      %p318 = scmp.lt.s32.totalorder %s19, 5
      %p319 = pnand %p317, %p318
      %p320 = pneg %p319
      // Predicated region
      $region49: #{tpu_custom_call.1} parent=5 // pred_check
        _
      $region50: #{tpu_custom_call.1} parent=5 // pred_check_branch
        %322 = sbr.rel (%p319) target = $region52
      $region51: #{tpu_custom_call.1} parent=5 // pred_region
        %s323 = ssub.s32 %s19, 1
        %s324 = sand.u32 %s32, 1
        %s325 = scalar_lea.sflag [#allocation3], %s324
        %s326 = sand.u32 %s32, 1
        %s327 = smul.addr %s326, 64
        %s328 = scalar_lea.vmem [#allocation2], %s327
        // Predicated region
        $region53: #{tpu_custom_call.1} parent=51 // pred_check
          %p329 = pneg %p45
        $region54: #{tpu_custom_call.1} parent=51 // pred_check_branch
          %331 = sbr.rel (%p329) target = $region56
        $region55: #{tpu_custom_call.1} parent=51 // pred_region
          %332 = dma.done %s325, 1024
        $region56: #{tpu_custom_call.1} parent=51 // pred_fallthru
          _
        // Predicated region
        $region57: #{tpu_custom_call.1} parent=51 // pred_check
          %p333 = pneg %p87
        $region58: #{tpu_custom_call.1} parent=51 // pred_check_branch
          %335 = sbr.rel (%p333) target = $region60
        $region59: #{tpu_custom_call.1} parent=51 // pred_region
          %336 = dma.done [#allocation5], 128
        $region60: #{tpu_custom_call.1} parent=51 // pred_fallthru
          _
        // Predicated region
        $region61: #{tpu_custom_call.1} parent=51 // pred_check
          %p337 = pneg %p129
        $region62: #{tpu_custom_call.1} parent=51 // pred_check_branch
          %339 = sbr.rel (%p337) target = $region64
        $region63: #{tpu_custom_call.1} parent=51 // pred_region
          %340 = dma.done [#allocation5], 1024
        $region64: #{tpu_custom_call.1} parent=51 // pred_fallthru
          _
        // Predicated region
        $region65: #{tpu_custom_call.1} parent=51 // pred_check
          %p341 = pneg %p150
        $region66: #{tpu_custom_call.1} parent=51 // pred_check_branch
          %343 = sbr.rel (%p341) target = $region68
        $region67: #{tpu_custom_call.1} parent=51 // pred_region
          %344 = dma.done [#allocation8], 1024
        $region68: #{tpu_custom_call.1} parent=51 // pred_fallthru
          _
        // Predicated region
        $region69: #{tpu_custom_call.1} parent=51 // pred_check
          %p345 = pneg %p171
        $region70: #{tpu_custom_call.1} parent=51 // pred_check_branch
          %347 = sbr.rel (%p345) target = $region72
        $region71: #{tpu_custom_call.1} parent=51 // pred_region
          %348 = dma.done [#allocation8], 1024
        $region72: #{tpu_custom_call.1} parent=51 // pred_fallthru
          _
        %s349 = sand.u32 %s32, 1
        %s350 = scalar_lea.sflag [#allocation3], %s349
        %s351 = sand.u32 %s32, 1
        %s352 = smul.addr %s351, 64
        %s353 = scalar_lea.vmem [#allocation2], %s352
        %p354 = pneg %p45
        %p355 = pneg %p42
        %p356 = pneg %p66
        %p357 = pneg %p63
        %p358 = pneg %p87
        %p359 = pneg %p84
        %p360 = pneg %p108
        %p361 = pneg %p105
        %p362 = pneg %p129
        %p363 = pneg %p126
        %p364 = pneg %p150
        %p365 = pneg %p147
        %p366 = pneg %p171
        %p367 = pneg %p168
        %p368 = pneg %p192
        %p369 = pneg %p189
        %p370 = pneg %p218
        %p371 = pneg %p215
        %p372 = scmp.lt.s32.totalorder %s24, 3
        %s373 = scalar_select %p372, %s24, 3
        %s374 = smul.addr %s373, 8
        %s375 = scalar_lea.vmem %s8, %s374
        %p376 = scmp.lt.s32.totalorder %s24, 3
        %s377 = scalar_select %p376, %s24, 3
        %s378 = smul.addr %s377, 8
        %s379 = scalar_lea.vmem %s8, %s378
        %v380 = vld [vmem:[%s328] sm:$0xff]
        %v381 = vld [vmem:[%s328 + $0x8] sm:$0xff]
        %v382 = vld [vmem:[%s328 + $0x10] sm:$0xff]
        %v383 = vld [vmem:[%s328 + $0x18] sm:$0xff]
        %v384 = vld [vmem:[%s328 + $0x20] sm:$0xff]
        %v385 = vld [vmem:[%s328 + $0x28] sm:$0xff]
        %v386 = vld [vmem:[%s328 + $0x30] sm:$0xff]
        %v387 = vld [vmem:[%s328 + $0x38] sm:$0xff]
        %v388 = vld [vmem:[%s1] sm:$0xff]
        %v389 = vld [vmem:[%s1 + $0x8] sm:$0xff]
        %v390 = vld [vmem:[%s1 + $0x10] sm:$0xff]
        %v391 = vld [vmem:[%s1 + $0x18] sm:$0xff]
        %v392 = vld [vmem:[%s1 + $0x20] sm:$0xff]
        %v393 = vld [vmem:[%s1 + $0x28] sm:$0xff]
        %v394 = vld [vmem:[%s1 + $0x30] sm:$0xff]
        %v395 = vld [vmem:[%s1 + $0x38] sm:$0xff]
        %v396 = vld [vmem:[#allocation4] sm:$0xff]
        %v397 = vld [vmem:[%s3] sm:$0xff]
        %v398 = vld [vmem:[%s3 + $0x10] sm:$0xff]
        %v399 = vld [vmem:[%s3 + $0x20] sm:$0xff]
        %v400 = vld [vmem:[%s3 + $0x30] sm:$0xff]
        %v401 = vld [vmem:[%s3 + $0x8] sm:$0xff]
        %v402 = vld [vmem:[%s3 + $0x18] sm:$0xff]
        %v403 = vld [vmem:[%s3 + $0x28] sm:$0xff]
        %v404 = vld [vmem:[%s3 + $0x38] sm:$0xff]
        %v405 = vld [vmem:[#allocation6] sm:$0xff]
        %v406 = vld [vmem:[#allocation6 + $0x8] sm:$0xff]
        %v407 = vld [vmem:[#allocation6 + $0x10] sm:$0xff]
        %v408 = vld [vmem:[#allocation6 + $0x18] sm:$0xff]
        %v409 = vld [vmem:[#allocation6 + $0x20] sm:$0xff]
        %v410 = vld [vmem:[#allocation6 + $0x28] sm:$0xff]
        %v411 = vld [vmem:[#allocation6 + $0x30] sm:$0xff]
        %v412 = vld [vmem:[#allocation6 + $0x38] sm:$0xff]
        %v413 = vld [vmem:[#allocation7] sm:$0xff]
        %v414 = vld [vmem:[#allocation7 + $0x8] sm:$0xff]
        %v415 = vld [vmem:[#allocation7 + $0x10] sm:$0xff]
        %v416 = vld [vmem:[#allocation7 + $0x18] sm:$0xff]
        %v417 = vld [vmem:[#allocation7 + $0x20] sm:$0xff]
        %v418 = vld [vmem:[#allocation7 + $0x28] sm:$0xff]
        %v419 = vld [vmem:[#allocation7 + $0x30] sm:$0xff]
        %v420 = vld [vmem:[#allocation7 + $0x38] sm:$0xff]
        %v421 = vld [vmem:[#allocation9] sm:$0xff]
        %v422 = vld [vmem:[#allocation9 + $0x8] sm:$0xff]
        %v423 = vld [vmem:[#allocation9 + $0x10] sm:$0xff]
        %v424 = vld [vmem:[#allocation9 + $0x18] sm:$0xff]
        %v425 = vld [vmem:[#allocation9 + $0x20] sm:$0xff]
        %v426 = vld [vmem:[#allocation9 + $0x28] sm:$0xff]
        %v427 = vld [vmem:[#allocation9 + $0x30] sm:$0xff]
        %v428 = vld [vmem:[#allocation9 + $0x38] sm:$0xff]
        %v429 = vld [vmem:[%s7] sm:$0x1]
        %v430 = vlaneseq
        %v431 = vshrl.u32 %v430, 7
        %v432 = vsub.s32 0, %v431
        %v433 = vrot.slane %v429, %v432
        %v434 = vld [vmem:[%s7 + $0x1] sm:$0x1]
        %v435 = vlaneseq
        %v436 = vshrl.u32 %v435, 7
        %v437 = vsub.s32 0, %v436
        %v438 = vrot.slane %v434, %v437
        %v439 = vld [vmem:[%s7 + $0x2] sm:$0x1]
        %v440 = vlaneseq
        %v441 = vshrl.u32 %v440, 7
        %v442 = vsub.s32 0, %v441
        %v443 = vrot.slane %v439, %v442
        %v444 = vld [vmem:[%s7 + $0x3] sm:$0x1]
        %v445 = vlaneseq
        %v446 = vshrl.u32 %v445, 7
        %v447 = vsub.s32 0, %v446
        %v448 = vrot.slane %v444, %v447
        %v449 = vld [vmem:[%s7 + $0x4] sm:$0x1]
        %v450 = vlaneseq
        %v451 = vshrl.u32 %v450, 7
        %v452 = vsub.s32 0, %v451
        %v453 = vrot.slane %v449, %v452
        %v454 = vld [vmem:[%s7 + $0x5] sm:$0x1]
        %v455 = vlaneseq
        %v456 = vshrl.u32 %v455, 7
        %v457 = vsub.s32 0, %v456
        %v458 = vrot.slane %v454, %v457
        %v459 = vld [vmem:[%s7 + $0x6] sm:$0x1]
        %v460 = vld [vmem:[%s7 + $0x7] sm:$0x1]
        %v461 = vld [vmem:[%s7 + $0x8] sm:$0x1]
        %vm462 = vcmask 261120
        %v464 = vsel %vm462, 0.0, 0
        %466 = vmatprep.subr.mxu0 0.0
        %467 = vmatpush1.msra.mxu0 0.0
        %468 = vmatprep.subr.mxu0 0.0
        %469 = vmatpush1.msra.mxu0 0.0
        %470 = vmatprep.subr.mxu0 0.0
        %471 = vmatpush1.msra.mxu0 0.0
        %472 = vmatprep.subr.mxu0 0.0
        %473 = vmatpush1.msra.mxu0 0.0
        %474 = vmatprep.subr.mxu0 0.0
        %475 = vmatpush1.msra.mxu0 0.0
        %476 = vmatprep.subr.mxu0 0.0
        %477 = vmatpush1.msra.mxu0 0.0
        %478 = vmatprep.subr.mxu0 0.0
        %479 = vmatpush1.msra.mxu0 0.0
        %480 = vmatprep.subr.mxu0 0.0
        %481 = vmatpush1.msra.mxu0 0.0
        %482 = vmatprep.subr.mxu0 0.0
        %483 = vmatpush1.msra.mxu0 0.0
        %484 = vmatprep.subr.mxu0 0.0
        %485 = vmatpush1.msra.mxu0 0.0
        %486 = vmatprep.subr.mxu0 0.0
        %487 = vmatpush1.msra.mxu0 0.0
        %488 = vmatprep.subr.mxu0 0.0
        %489 = vmatpush1.msra.mxu0 0.0
        %490 = vmatprep.subr.mxu0 0.0
        %491 = vmatpush1.msra.mxu0 %v400
        %492 = vmatprep.subr.mxu0 0.0
        %493 = vmatpush1.msra.mxu0 %v399
        %494 = vmatprep.subr.mxu0 0.0
        %495 = vmatpush1.msra.mxu0 %v398
        %496 = vmatprep.subr.mxu0 0.0
        %497 = vmatpush1.msra.mxu0 %v397
        %498 = vmatprep.subr.mxu0 0.0
        %499 = vmatpush2.msra.mxu0 0.0
        %500 = vmatprep.subr.mxu0 0.0
        %501 = vmatpush2.msra.mxu0 0.0
        %502 = vmatprep.subr.mxu0 0.0
        %503 = vmatpush2.msra.mxu0 0.0
        %504 = vmatprep.subr.mxu0 0.0
        %505 = vmatpush2.msra.mxu0 0.0
        %506 = vmatprep.subr.mxu0 0.0
        %507 = vmatpush2.msra.mxu0 0.0
        %508 = vmatprep.subr.mxu0 0.0
        %509 = vmatpush2.msra.mxu0 0.0
        %510 = vmatprep.subr.mxu0 0.0
        %511 = vmatpush2.msra.mxu0 0.0
        %512 = vmatprep.subr.mxu0 0.0
        %513 = vmatpush2.msra.mxu0 0.0
        %514 = vmatprep.subr.mxu0 0.0
        %515 = vmatpush2.msra.mxu0 0.0
        %516 = vmatprep.subr.mxu0 0.0
        %517 = vmatpush2.msra.mxu0 0.0
        %518 = vmatprep.subr.mxu0 0.0
        %519 = vmatpush2.msra.mxu0 0.0
        %520 = vmatprep.subr.mxu0 0.0
        %521 = vmatpush2.msra.mxu0 0.0
        %522 = vmatprep.subr.mxu0 0.0
        %523 = vmatpush2.msra.mxu0 0.0
        %524 = vmatprep.subr.mxu0 0.0
        %525 = vmatpush2.msra.mxu0 0.0
        %526 = vmatprep.subr.mxu0 0.0
        %527 = vmatpush2.msra.mxu0 0.0
        %528 = vmatprep.subr.mxu0 0.0
        %529 = vmatpush2.msra.mxu0 0.0
        %530 = vmatprep.mubr.f32.mxu0 0.0
        %531 = vmatmul.mubr.f32.gmra.mxu0 %v464
        %v532 = vpop.f32.mrf.mxu0
        %v533 = vadd.f32 0.0, %v532
        %v534 = vpop.f32.mrf.mxu0
        %535 = vdwg.mxu0
        %537 = vrot.lane.b32.xlu0 %v533, 64
        %v538 = vpop.permute.xlu0 %537
        %vm540 = vcmask 130048
        %v542 = vsel %vm540, %v388, 0
        %v545 = vsel %vm540, %v389, 0
        %v548 = vsel %vm540, %v390, 0
        %v551 = vsel %vm540, %v391, 0
        %v554 = vsel %vm540, %v392, 0
        %v557 = vsel %vm540, %v393, 0
        %v560 = vsel %vm540, %v394, 0
        %v563 = vsel %vm540, %v395, 0
        %565 = vmatprep.subr.mxu0 0.0
        %566 = vmatpush1.msra.mxu0 0.0
        %567 = vmatprep.subr.mxu0 0.0
        %568 = vmatpush1.msra.mxu0 0.0
        %569 = vmatprep.subr.mxu0 0.0
        %570 = vmatpush1.msra.mxu0 0.0
        %571 = vmatprep.subr.mxu0 0.0
        %572 = vmatpush1.msra.mxu0 0.0
        %573 = vmatprep.subr.mxu0 0.0
        %574 = vmatpush1.msra.mxu0 0.0
        %575 = vmatprep.subr.mxu0 0.0
        %576 = vmatpush1.msra.mxu0 0.0
        %577 = vmatprep.subr.mxu0 0.0
        %578 = vmatpush1.msra.mxu0 0.0
        %579 = vmatprep.subr.mxu0 0.0
        %580 = vmatpush1.msra.mxu0 0.0
        %581 = vmatprep.subr.mxu0 0.0
        %582 = vmatpush1.msra.mxu0 0.0
        %583 = vmatprep.subr.mxu0 0.0
        %584 = vmatpush1.msra.mxu0 0.0
        %585 = vmatprep.subr.mxu0 0.0
        %586 = vmatpush1.msra.mxu0 0.0
        %587 = vmatprep.subr.mxu0 0.0
        %588 = vmatpush1.msra.mxu0 0.0
        %589 = vmatprep.subr.mxu0 0.0
        %590 = vmatpush1.msra.mxu0 0.0
        %591 = vmatprep.subr.mxu0 0.0
        %592 = vmatpush1.msra.mxu0 0.0
        %593 = vmatprep.subr.mxu0 0.0
        %594 = vmatpush1.msra.mxu0 %v538
        %595 = vmatprep.subr.mxu0 0.0
        %596 = vmatpush1.msra.mxu0 %v533
        %597 = vmatprep.subr.mxu0 0.0
        %598 = vmatpush2.msra.mxu0 0.0
        %599 = vmatprep.subr.mxu0 0.0
        %600 = vmatpush2.msra.mxu0 0.0
        %601 = vmatprep.subr.mxu0 0.0
        %602 = vmatpush2.msra.mxu0 0.0
        %603 = vmatprep.subr.mxu0 0.0
        %604 = vmatpush2.msra.mxu0 0.0
        %605 = vmatprep.subr.mxu0 0.0
        %606 = vmatpush2.msra.mxu0 0.0
        %607 = vmatprep.subr.mxu0 0.0
        %608 = vmatpush2.msra.mxu0 0.0
        %609 = vmatprep.subr.mxu0 0.0
        %610 = vmatpush2.msra.mxu0 0.0
        %611 = vmatprep.subr.mxu0 0.0
        %612 = vmatpush2.msra.mxu0 0.0
        %613 = vmatprep.subr.mxu0 0.0
        %614 = vmatpush2.msra.mxu0 0.0
        %615 = vmatprep.subr.mxu0 0.0
        %616 = vmatpush2.msra.mxu0 0.0
        %617 = vmatprep.subr.mxu0 0.0
        %618 = vmatpush2.msra.mxu0 0.0
        %619 = vmatprep.subr.mxu0 0.0
        %620 = vmatpush2.msra.mxu0 0.0
        %621 = vmatprep.subr.mxu0 0.0
        %622 = vmatpush2.msra.mxu0 0.0
        %623 = vmatprep.subr.mxu0 0.0
        %624 = vmatpush2.msra.mxu0 0.0
        %625 = vmatprep.subr.mxu0 0.0
        %626 = vmatpush2.msra.mxu0 0.0
        %627 = vmatprep.subr.mxu0 0.0
        %628 = vmatpush2.msra.mxu0 0.0
        %629 = vmatprep.mubr.f32.mxu0 0.0
        %630 = vmatmul.mubr.f32.gmra.mxu0 %v542
        %v631 = vpop.f32.mrf.mxu0
        %v632 = vadd.f32 %v380, %v631
        %v633 = vpop.f32.mrf.mxu0
        %634 = vmatprep.mubr.f32.mxu0 0.0
        %635 = vmatmul.mubr.f32.gmra.mxu0 %v545
        %v636 = vpop.f32.mrf.mxu0
        %v637 = vadd.f32 %v381, %v636
        %v638 = vpop.f32.mrf.mxu0
        %639 = vmatprep.mubr.f32.mxu0 0.0
        %640 = vmatmul.mubr.f32.gmra.mxu0 %v548
        %v641 = vpop.f32.mrf.mxu0
        %v642 = vadd.f32 %v382, %v641
        %v643 = vpop.f32.mrf.mxu0
        %644 = vmatprep.mubr.f32.mxu0 0.0
        %645 = vmatmul.mubr.f32.gmra.mxu0 %v551
        %v646 = vpop.f32.mrf.mxu0
        %v647 = vadd.f32 %v383, %v646
        %v648 = vpop.f32.mrf.mxu0
        %649 = vmatprep.mubr.f32.mxu0 0.0
        %650 = vmatmul.mubr.f32.gmra.mxu0 %v554
        %v651 = vpop.f32.mrf.mxu0
        %v652 = vadd.f32 %v384, %v651
        %v653 = vpop.f32.mrf.mxu0
        %654 = vmatprep.mubr.f32.mxu0 0.0
        %655 = vmatmul.mubr.f32.gmra.mxu0 %v557
        %v656 = vpop.f32.mrf.mxu0
        %v657 = vadd.f32 %v385, %v656
        %v658 = vpop.f32.mrf.mxu0
        %659 = vmatprep.mubr.f32.mxu0 0.0
        %660 = vmatmul.mubr.f32.gmra.mxu0 %v560
        %v661 = vpop.f32.mrf.mxu0
        %v662 = vadd.f32 %v386, %v661
        %v663 = vpop.f32.mrf.mxu0
        %664 = vmatprep.mubr.f32.mxu0 0.0
        %665 = vmatmul.mubr.f32.gmra.mxu0 %v563
        %v666 = vpop.f32.mrf.mxu0
        %v667 = vadd.f32 %v387, %v666
        %v668 = vpop.f32.mrf.mxu0
        %669 = vdwg.mxu0
        %v670 = vmax.f32 %v632, 0.0
        %v671 = vmax.f32 %v637, 0.0
        %v672 = vmax.f32 %v642, 0.0
        %v673 = vmax.f32 %v647, 0.0
        %v674 = vmax.f32 %v652, 0.0
        %v675 = vmax.f32 %v657, 0.0
        %v676 = vmax.f32 %v662, 0.0
        %v677 = vmax.f32 %v667, 0.0
        %vm678 = vcmask 523264
        %v680 = vsel %vm678, %v670, 0
        %v683 = vsel %vm678, %v671, 0
        %v686 = vsel %vm678, %v672, 0
        %v689 = vsel %vm678, %v673, 0
        %v692 = vsel %vm678, %v674, 0
        %v695 = vsel %vm678, %v675, 0
        %v698 = vsel %vm678, %v676, 0
        %v701 = vsel %vm678, %v677, 0
        %703 = vmatprep.subr.mxu0 0.0
        %704 = vmatpush1.msra.mxu0 0.0
        %705 = vmatprep.subr.mxu0 0.0
        %706 = vmatpush1.msra.mxu0 0.0
        %707 = vmatprep.subr.mxu0 0.0
        %708 = vmatpush1.msra.mxu0 0.0
        %709 = vmatprep.subr.mxu0 0.0
        %710 = vmatpush1.msra.mxu0 0.0
        %711 = vmatprep.subr.mxu0 0.0
        %712 = vmatpush1.msra.mxu0 0.0
        %713 = vmatprep.subr.mxu0 0.0
        %714 = vmatpush1.msra.mxu0 0.0
        %715 = vmatprep.subr.mxu0 0.0
        %716 = vmatpush1.msra.mxu0 0.0
        %717 = vmatprep.subr.mxu0 0.0
        %718 = vmatpush1.msra.mxu0 0.0
        %719 = vmatprep.subr.mxu0 0.0
        %720 = vmatpush1.msra.mxu0 %v412
        %721 = vmatprep.subr.mxu0 0.0
        %722 = vmatpush1.msra.mxu0 %v411
        %723 = vmatprep.subr.mxu0 0.0
        %724 = vmatpush1.msra.mxu0 %v410
        %725 = vmatprep.subr.mxu0 0.0
        %726 = vmatpush1.msra.mxu0 %v409
        %727 = vmatprep.subr.mxu0 0.0
        %728 = vmatpush1.msra.mxu0 %v408
        %729 = vmatprep.subr.mxu0 0.0
        %730 = vmatpush1.msra.mxu0 %v407
        %731 = vmatprep.subr.mxu0 0.0
        %732 = vmatpush1.msra.mxu0 %v406
        %733 = vmatprep.subr.mxu0 0.0
        %734 = vmatpush1.msra.mxu0 %v405
        %735 = vmatprep.subr.mxu0 0.0
        %736 = vmatpush2.msra.mxu0 0.0
        %737 = vmatprep.subr.mxu0 0.0
        %738 = vmatpush2.msra.mxu0 0.0
        %739 = vmatprep.subr.mxu0 0.0
        %740 = vmatpush2.msra.mxu0 0.0
        %741 = vmatprep.subr.mxu0 0.0
        %742 = vmatpush2.msra.mxu0 0.0
        %743 = vmatprep.subr.mxu0 0.0
        %744 = vmatpush2.msra.mxu0 0.0
        %745 = vmatprep.subr.mxu0 0.0
        %746 = vmatpush2.msra.mxu0 0.0
        %747 = vmatprep.subr.mxu0 0.0
        %748 = vmatpush2.msra.mxu0 0.0
        %749 = vmatprep.subr.mxu0 0.0
        %750 = vmatpush2.msra.mxu0 0.0
        %751 = vmatprep.subr.mxu0 0.0
        %752 = vmatpush2.msra.mxu0 0.0
        %753 = vmatprep.subr.mxu0 0.0
        %754 = vmatpush2.msra.mxu0 0.0
        %755 = vmatprep.subr.mxu0 0.0
        %756 = vmatpush2.msra.mxu0 0.0
        %757 = vmatprep.subr.mxu0 0.0
        %758 = vmatpush2.msra.mxu0 0.0
        %759 = vmatprep.subr.mxu0 0.0
        %760 = vmatpush2.msra.mxu0 0.0
        %761 = vmatprep.subr.mxu0 0.0
        %762 = vmatpush2.msra.mxu0 0.0
        %763 = vmatprep.subr.mxu0 0.0
        %764 = vmatpush2.msra.mxu0 0.0
        %765 = vmatprep.subr.mxu0 0.0
        %766 = vmatpush2.msra.mxu0 0.0
        %767 = vmatprep.mubr.f32.mxu0 0.0
        %768 = vmatmul.mubr.f32.gmra.mxu0 %v680
        %v769 = vpop.f32.mrf.mxu0
        %v770 = vadd.f32 %v433, %v769
        %v771 = vpop.f32.mrf.mxu0
        %772 = vmatprep.mubr.f32.mxu0 0.0
        %773 = vmatmul.mubr.f32.gmra.mxu0 %v683
        %v774 = vpop.f32.mrf.mxu0
        %v775 = vadd.f32 %v433, %v774
        %v776 = vpop.f32.mrf.mxu0
        %777 = vmatprep.mubr.f32.mxu0 0.0
        %778 = vmatmul.mubr.f32.gmra.mxu0 %v686
        %v779 = vpop.f32.mrf.mxu0
        %v780 = vadd.f32 %v433, %v779
        %v781 = vpop.f32.mrf.mxu0
        %782 = vmatprep.mubr.f32.mxu0 0.0
        %783 = vmatmul.mubr.f32.gmra.mxu0 %v689
        %v784 = vpop.f32.mrf.mxu0
        %v785 = vadd.f32 %v433, %v784
        %v786 = vpop.f32.mrf.mxu0
        %787 = vmatprep.mubr.f32.mxu0 0.0
        %788 = vmatmul.mubr.f32.gmra.mxu0 %v692
        %v789 = vpop.f32.mrf.mxu0
        %v790 = vadd.f32 %v433, %v789
        %v791 = vpop.f32.mrf.mxu0
        %792 = vmatprep.mubr.f32.mxu0 0.0
        %793 = vmatmul.mubr.f32.gmra.mxu0 %v695
        %v794 = vpop.f32.mrf.mxu0
        %v795 = vadd.f32 %v433, %v794
        %v796 = vpop.f32.mrf.mxu0
        %797 = vmatprep.mubr.f32.mxu0 0.0
        %798 = vmatmul.mubr.f32.gmra.mxu0 %v698
        %v799 = vpop.f32.mrf.mxu0
        %v800 = vadd.f32 %v433, %v799
        %v801 = vpop.f32.mrf.mxu0
        %802 = vmatprep.mubr.f32.mxu0 0.0
        %803 = vmatmul.mubr.f32.gmra.mxu0 %v701
        %v804 = vpop.f32.mrf.mxu0
        %v805 = vadd.f32 %v433, %v804
        %v806 = vpop.f32.mrf.mxu0
        %807 = vdwg.mxu0
        %v808 = vmax.f32 %v770, 0.0
        %v809 = vmax.f32 %v775, 0.0
        %v810 = vmax.f32 %v780, 0.0
        %v811 = vmax.f32 %v785, 0.0
        %v812 = vmax.f32 %v790, 0.0
        %v813 = vmax.f32 %v795, 0.0
        %v814 = vmax.f32 %v800, 0.0
        %v815 = vmax.f32 %v805, 0.0
        %824 = vrot.lane.b32.xlu0 %v405, 64
        %v825 = vpop.permute.xlu0 %824
        %826 = vrot.lane.b32.xlu0 %v406, 64
        %v827 = vpop.permute.xlu0 %826
        %828 = vrot.lane.b32.xlu0 %v407, 64
        %v829 = vpop.permute.xlu0 %828
        %830 = vrot.lane.b32.xlu0 %v408, 64
        %v831 = vpop.permute.xlu0 %830
        %832 = vrot.lane.b32.xlu0 %v409, 64
        %v833 = vpop.permute.xlu0 %832
        %834 = vrot.lane.b32.xlu0 %v410, 64
        %v835 = vpop.permute.xlu0 %834
        %836 = vrot.lane.b32.xlu0 %v411, 64
        %v837 = vpop.permute.xlu0 %836
        %838 = vrot.lane.b32.xlu0 %v412, 64
        %v839 = vpop.permute.xlu0 %838
        %v849 = vsel %vm678, %v808, 0
        %v852 = vsel %vm678, %v809, 0
        %v855 = vsel %vm678, %v810, 0
        %v858 = vsel %vm678, %v811, 0
        %v861 = vsel %vm678, %v812, 0
        %v864 = vsel %vm678, %v813, 0
        %v867 = vsel %vm678, %v814, 0
        %v870 = vsel %vm678, %v815, 0
        %872 = vmatprep.subr.mxu0 0.0
        %873 = vmatpush1.msra.mxu0 0.0
        %874 = vmatprep.subr.mxu0 0.0
        %875 = vmatpush1.msra.mxu0 0.0
        %876 = vmatprep.subr.mxu0 0.0
        %877 = vmatpush1.msra.mxu0 0.0
        %878 = vmatprep.subr.mxu0 0.0
        %879 = vmatpush1.msra.mxu0 0.0
        %880 = vmatprep.subr.mxu0 0.0
        %881 = vmatpush1.msra.mxu0 0.0
        %882 = vmatprep.subr.mxu0 0.0
        %883 = vmatpush1.msra.mxu0 0.0
        %884 = vmatprep.subr.mxu0 0.0
        %885 = vmatpush1.msra.mxu0 0.0
        %886 = vmatprep.subr.mxu0 0.0
        %887 = vmatpush1.msra.mxu0 0.0
        %888 = vmatprep.subr.mxu0 0.0
        %889 = vmatpush1.msra.mxu0 %v839
        %890 = vmatprep.subr.mxu0 0.0
        %891 = vmatpush1.msra.mxu0 %v837
        %892 = vmatprep.subr.mxu0 0.0
        %893 = vmatpush1.msra.mxu0 %v835
        %894 = vmatprep.subr.mxu0 0.0
        %895 = vmatpush1.msra.mxu0 %v833
        %896 = vmatprep.subr.mxu0 0.0
        %897 = vmatpush1.msra.mxu0 %v831
        %898 = vmatprep.subr.mxu0 0.0
        %899 = vmatpush1.msra.mxu0 %v829
        %900 = vmatprep.subr.mxu0 0.0
        %901 = vmatpush1.msra.mxu0 %v827
        %902 = vmatprep.subr.mxu0 0.0
        %903 = vmatpush1.msra.mxu0 %v825
        %904 = vmatprep.subr.mxu0 0.0
        %905 = vmatpush2.msra.mxu0 0.0
        %906 = vmatprep.subr.mxu0 0.0
        %907 = vmatpush2.msra.mxu0 0.0
        %908 = vmatprep.subr.mxu0 0.0
        %909 = vmatpush2.msra.mxu0 0.0
        %910 = vmatprep.subr.mxu0 0.0
        %911 = vmatpush2.msra.mxu0 0.0
        %912 = vmatprep.subr.mxu0 0.0
        %913 = vmatpush2.msra.mxu0 0.0
        %914 = vmatprep.subr.mxu0 0.0
        %915 = vmatpush2.msra.mxu0 0.0
        %916 = vmatprep.subr.mxu0 0.0
        %917 = vmatpush2.msra.mxu0 0.0
        %918 = vmatprep.subr.mxu0 0.0
        %919 = vmatpush2.msra.mxu0 0.0
        %920 = vmatprep.subr.mxu0 0.0
        %921 = vmatpush2.msra.mxu0 0.0
        %922 = vmatprep.subr.mxu0 0.0
        %923 = vmatpush2.msra.mxu0 0.0
        %924 = vmatprep.subr.mxu0 0.0
        %925 = vmatpush2.msra.mxu0 0.0
        %926 = vmatprep.subr.mxu0 0.0
        %927 = vmatpush2.msra.mxu0 0.0
        %928 = vmatprep.subr.mxu0 0.0
        %929 = vmatpush2.msra.mxu0 0.0
        %930 = vmatprep.subr.mxu0 0.0
        %931 = vmatpush2.msra.mxu0 0.0
        %932 = vmatprep.subr.mxu0 0.0
        %933 = vmatpush2.msra.mxu0 0.0
        %934 = vmatprep.subr.mxu0 0.0
        %935 = vmatpush2.msra.mxu0 0.0
        %936 = vmatprep.mubr.f32.mxu0 0.0
        %937 = vmatmul.mubr.f32.gmra.mxu0 %v849
        %v938 = vpop.f32.mrf.mxu0
        %v939 = vadd.f32 %v438, %v938
        %v940 = vpop.f32.mrf.mxu0
        %941 = vmatprep.mubr.f32.mxu0 0.0
        %942 = vmatmul.mubr.f32.gmra.mxu0 %v852
        %v943 = vpop.f32.mrf.mxu0
        %v944 = vadd.f32 %v438, %v943
        %v945 = vpop.f32.mrf.mxu0
        %946 = vmatprep.mubr.f32.mxu0 0.0
        %947 = vmatmul.mubr.f32.gmra.mxu0 %v855
        %v948 = vpop.f32.mrf.mxu0
        %v949 = vadd.f32 %v438, %v948
        %v950 = vpop.f32.mrf.mxu0
        %951 = vmatprep.mubr.f32.mxu0 0.0
        %952 = vmatmul.mubr.f32.gmra.mxu0 %v858
        %v953 = vpop.f32.mrf.mxu0
        %v954 = vadd.f32 %v438, %v953
        %v955 = vpop.f32.mrf.mxu0
        %956 = vmatprep.mubr.f32.mxu0 0.0
        %957 = vmatmul.mubr.f32.gmra.mxu0 %v861
        %v958 = vpop.f32.mrf.mxu0
        %v959 = vadd.f32 %v438, %v958
        %v960 = vpop.f32.mrf.mxu0
        %961 = vmatprep.mubr.f32.mxu0 0.0
        %962 = vmatmul.mubr.f32.gmra.mxu0 %v864
        %v963 = vpop.f32.mrf.mxu0
        %v964 = vadd.f32 %v438, %v963
        %v965 = vpop.f32.mrf.mxu0
        %966 = vmatprep.mubr.f32.mxu0 0.0
        %967 = vmatmul.mubr.f32.gmra.mxu0 %v867
        %v968 = vpop.f32.mrf.mxu0
        %v969 = vadd.f32 %v438, %v968
        %v970 = vpop.f32.mrf.mxu0
        %971 = vmatprep.mubr.f32.mxu0 0.0
        %972 = vmatmul.mubr.f32.gmra.mxu0 %v870
        %v973 = vpop.f32.mrf.mxu0
        %v974 = vadd.f32 %v438, %v973
        %v975 = vpop.f32.mrf.mxu0
        %976 = vdwg.mxu0
        %v978 = vsel %vm678, %v396, 0
        %980 = vmatprep.subr.mxu0 0.0
        %981 = vmatpush1.msra.mxu0 0.0
        %982 = vmatprep.subr.mxu0 0.0
        %983 = vmatpush1.msra.mxu0 0.0
        %984 = vmatprep.subr.mxu0 0.0
        %985 = vmatpush1.msra.mxu0 0.0
        %986 = vmatprep.subr.mxu0 0.0
        %987 = vmatpush1.msra.mxu0 0.0
        %988 = vmatprep.subr.mxu0 0.0
        %989 = vmatpush1.msra.mxu0 0.0
        %990 = vmatprep.subr.mxu0 0.0
        %991 = vmatpush1.msra.mxu0 0.0
        %992 = vmatprep.subr.mxu0 0.0
        %993 = vmatpush1.msra.mxu0 0.0
        %994 = vmatprep.subr.mxu0 0.0
        %995 = vmatpush1.msra.mxu0 0.0
        %996 = vmatprep.subr.mxu0 0.0
        %997 = vmatpush1.msra.mxu0 %v974
        %998 = vmatprep.subr.mxu0 0.0
        %999 = vmatpush1.msra.mxu0 %v969
        %1000 = vmatprep.subr.mxu0 0.0
        %1001 = vmatpush1.msra.mxu0 %v964
        %1002 = vmatprep.subr.mxu0 0.0
        %1003 = vmatpush1.msra.mxu0 %v959
        %1004 = vmatprep.subr.mxu0 0.0
        %1005 = vmatpush1.msra.mxu0 %v954
        %1006 = vmatprep.subr.mxu0 0.0
        %1007 = vmatpush1.msra.mxu0 %v949
        %1008 = vmatprep.subr.mxu0 0.0
        %1009 = vmatpush1.msra.mxu0 %v944
        %1010 = vmatprep.subr.mxu0 0.0
        %1011 = vmatpush1.msra.mxu0 %v939
        %1012 = vmatprep.subr.mxu0 0.0
        %1013 = vmatpush2.msra.mxu0 0.0
        %1014 = vmatprep.subr.mxu0 0.0
        %1015 = vmatpush2.msra.mxu0 0.0
        %1016 = vmatprep.subr.mxu0 0.0
        %1017 = vmatpush2.msra.mxu0 0.0
        %1018 = vmatprep.subr.mxu0 0.0
        %1019 = vmatpush2.msra.mxu0 0.0
        %1020 = vmatprep.subr.mxu0 0.0
        %1021 = vmatpush2.msra.mxu0 0.0
        %1022 = vmatprep.subr.mxu0 0.0
        %1023 = vmatpush2.msra.mxu0 0.0
        %1024 = vmatprep.subr.mxu0 0.0
        %1025 = vmatpush2.msra.mxu0 0.0
        %1026 = vmatprep.subr.mxu0 0.0
        %1027 = vmatpush2.msra.mxu0 0.0
        %1028 = vmatprep.subr.mxu0 0.0
        %1029 = vmatpush2.msra.mxu0 0.0
        %1030 = vmatprep.subr.mxu0 0.0
        %1031 = vmatpush2.msra.mxu0 0.0
        %1032 = vmatprep.subr.mxu0 0.0
        %1033 = vmatpush2.msra.mxu0 0.0
        %1034 = vmatprep.subr.mxu0 0.0
        %1035 = vmatpush2.msra.mxu0 0.0
        %1036 = vmatprep.subr.mxu0 0.0
        %1037 = vmatpush2.msra.mxu0 0.0
        %1038 = vmatprep.subr.mxu0 0.0
        %1039 = vmatpush2.msra.mxu0 0.0
        %1040 = vmatprep.subr.mxu0 0.0
        %1041 = vmatpush2.msra.mxu0 0.0
        %1042 = vmatprep.subr.mxu0 0.0
        %1043 = vmatpush2.msra.mxu0 0.0
        %1044 = vmatprep.mubr.f32.mxu0 0.0
        %1045 = vmatmul.mubr.f32.gmra.mxu0 %v978
        %v1046 = vpop.f32.mrf.mxu0
        %v1047 = vadd.f32 0.0, %v1046
        %v1048 = vpop.f32.mrf.mxu0
        %1049 = vdwg.mxu0
        %v1050 = vsel %vm462, %v1047, 0.0
        %v1052 = vsel %vm678, %v1050, 0
        %1054 = vmatprep.subr.mxu0 0.0
        %1055 = vmatpush1.msra.mxu0 0.0
        %1056 = vmatprep.subr.mxu0 0.0
        %1057 = vmatpush1.msra.mxu0 0.0
        %1058 = vmatprep.subr.mxu0 0.0
        %1059 = vmatpush1.msra.mxu0 0.0
        %1060 = vmatprep.subr.mxu0 0.0
        %1061 = vmatpush1.msra.mxu0 0.0
        %1062 = vmatprep.subr.mxu0 0.0
        %1063 = vmatpush1.msra.mxu0 0.0
        %1064 = vmatprep.subr.mxu0 0.0
        %1065 = vmatpush1.msra.mxu0 0.0
        %1066 = vmatprep.subr.mxu0 0.0
        %1067 = vmatpush1.msra.mxu0 0.0
        %1068 = vmatprep.subr.mxu0 0.0
        %1069 = vmatpush1.msra.mxu0 0.0
        %1070 = vmatprep.subr.mxu0 0.0
        %1071 = vmatpush1.msra.mxu0 %v420
        %1072 = vmatprep.subr.mxu0 0.0
        %1073 = vmatpush1.msra.mxu0 %v419
        %1074 = vmatprep.subr.mxu0 0.0
        %1075 = vmatpush1.msra.mxu0 %v418
        %1076 = vmatprep.subr.mxu0 0.0
        %1077 = vmatpush1.msra.mxu0 %v417
        %1078 = vmatprep.subr.mxu0 0.0
        %1079 = vmatpush1.msra.mxu0 %v416
        %1080 = vmatprep.subr.mxu0 0.0
        %1081 = vmatpush1.msra.mxu0 %v415
        %1082 = vmatprep.subr.mxu0 0.0
        %1083 = vmatpush1.msra.mxu0 %v414
        %1084 = vmatprep.subr.mxu0 0.0
        %1085 = vmatpush1.msra.mxu0 %v413
        %1086 = vmatprep.subr.mxu0 0.0
        %1087 = vmatpush2.msra.mxu0 0.0
        %1088 = vmatprep.subr.mxu0 0.0
        %1089 = vmatpush2.msra.mxu0 0.0
        %1090 = vmatprep.subr.mxu0 0.0
        %1091 = vmatpush2.msra.mxu0 0.0
        %1092 = vmatprep.subr.mxu0 0.0
        %1093 = vmatpush2.msra.mxu0 0.0
        %1094 = vmatprep.subr.mxu0 0.0
        %1095 = vmatpush2.msra.mxu0 0.0
        %1096 = vmatprep.subr.mxu0 0.0
        %1097 = vmatpush2.msra.mxu0 0.0
        %1098 = vmatprep.subr.mxu0 0.0
        %1099 = vmatpush2.msra.mxu0 0.0
        %1100 = vmatprep.subr.mxu0 0.0
        %1101 = vmatpush2.msra.mxu0 0.0
        %1102 = vmatprep.subr.mxu0 0.0
        %1103 = vmatpush2.msra.mxu0 0.0
        %1104 = vmatprep.subr.mxu0 0.0
        %1105 = vmatpush2.msra.mxu0 0.0
        %1106 = vmatprep.subr.mxu0 0.0
        %1107 = vmatpush2.msra.mxu0 0.0
        %1108 = vmatprep.subr.mxu0 0.0
        %1109 = vmatpush2.msra.mxu0 0.0
        %1110 = vmatprep.subr.mxu0 0.0
        %1111 = vmatpush2.msra.mxu0 0.0
        %1112 = vmatprep.subr.mxu0 0.0
        %1113 = vmatpush2.msra.mxu0 0.0
        %1114 = vmatprep.subr.mxu0 0.0
        %1115 = vmatpush2.msra.mxu0 0.0
        %1116 = vmatprep.subr.mxu0 0.0
        %1117 = vmatpush2.msra.mxu0 0.0
        %1118 = vmatprep.mubr.f32.mxu0 0.0
        %1119 = vmatmul.mubr.f32.gmra.mxu0 %v1052
        %v1120 = vpop.f32.mrf.mxu0
        %v1121 = vadd.f32 0.0, %v1120
        %v1122 = vpop.f32.mrf.mxu0
        %1123 = vdwg.mxu0
        %v1124 = vadd.f32 %v1121, %v443
        %v1125 = vxor.u32 %v1124, 2147483648
        %v1126 = vmul.f32 %v1125, 1.442695
        %v1127 = vpow.pop %v1126
        %v1128 = vadd.f32 %v1127, 1.0
        %v1129 = vrcp.pop %v1128
        %v1130 = vmul.f32 1.0, %v1129
        %1132 = vrot.lane.b32.xlu0 %v448, 32
        %v1133 = vpop.permute.xlu0 %1132
        %v1135 = vadd.f32 %v1121, %v1133
        %v1136 = vxor.u32 %v1135, 2147483648
        %v1137 = vmul.f32 %v1136, 1.442695
        %v1138 = vpow.pop %v1137
        %v1139 = vadd.f32 %v1138, 1.0
        %v1140 = vrcp.pop %v1139
        %v1141 = vmul.f32 1.0, %v1140
        %1143 = vrot.lane.b32.xlu0 %v453, 64
        %v1144 = vpop.permute.xlu0 %1143
        %v1146 = vadd.f32 %v1121, %v1144
        %1148 = vrot.lane.b32.xlu0 %v458, 96
        %v1149 = vpop.permute.xlu0 %1148
        %v1151 = vadd.f32 %v1121, %v1149
        %1153 = vrot.lane.b32.xlu0 %v1151, 32
        %v1154 = vpop.permute.xlu0 %1153
        %v1156 = vmul.f32 %v1130, %v1154
        %1158 = vrot.lane.b32.xlu0 %v1156, 64
        %v1159 = vpop.permute.xlu0 %1158
        %v1161 = vadd.f32 %v1146, %v1159
        %v1162 = vtanh.pop %v1161
        %v1163 = vsub.f32 1.0, %v1141
        %1165 = vrot.lane.b32.xlu0 %v1162, 96
        %v1166 = vpop.permute.xlu0 %1165
        %v1168 = vmul.f32 %v1163, %v1166
        %v1169 = vmul.f32 %v1141, 0.0
        %v1170 = vadd.f32 %v1168, %v1169
        %1172 = vrot.lane.b32.xlu0 %v1170, 96
        %v1173 = vpop.permute.xlu0 %1172
        %v1174 = vsel %vm462, %v1173, 0
        %1176 = vmatprep.subr.mxu0 0.0
        %1177 = vmatpush1.msra.mxu0 0.0
        %1178 = vmatprep.subr.mxu0 0.0
        %1179 = vmatpush1.msra.mxu0 0.0
        %1180 = vmatprep.subr.mxu0 0.0
        %1181 = vmatpush1.msra.mxu0 0.0
        %1182 = vmatprep.subr.mxu0 0.0
        %1183 = vmatpush1.msra.mxu0 0.0
        %1184 = vmatprep.subr.mxu0 0.0
        %1185 = vmatpush1.msra.mxu0 0.0
        %1186 = vmatprep.subr.mxu0 0.0
        %1187 = vmatpush1.msra.mxu0 0.0
        %1188 = vmatprep.subr.mxu0 0.0
        %1189 = vmatpush1.msra.mxu0 0.0
        %1190 = vmatprep.subr.mxu0 0.0
        %1191 = vmatpush1.msra.mxu0 0.0
        %1192 = vmatprep.subr.mxu0 0.0
        %1193 = vmatpush1.msra.mxu0 0.0
        %1194 = vmatprep.subr.mxu0 0.0
        %1195 = vmatpush1.msra.mxu0 0.0
        %1196 = vmatprep.subr.mxu0 0.0
        %1197 = vmatpush1.msra.mxu0 0.0
        %1198 = vmatprep.subr.mxu0 0.0
        %1199 = vmatpush1.msra.mxu0 0.0
        %1200 = vmatprep.subr.mxu0 0.0
        %1201 = vmatpush1.msra.mxu0 %v400
        %1202 = vmatprep.subr.mxu0 0.0
        %1203 = vmatpush1.msra.mxu0 %v399
        %1204 = vmatprep.subr.mxu0 0.0
        %1205 = vmatpush1.msra.mxu0 %v398
        %1206 = vmatprep.subr.mxu0 0.0
        %1207 = vmatpush1.msra.mxu0 %v397
        %1208 = vmatprep.subr.mxu0 0.0
        %1209 = vmatpush2.msra.mxu0 0.0
        %1210 = vmatprep.subr.mxu0 0.0
        %1211 = vmatpush2.msra.mxu0 0.0
        %1212 = vmatprep.subr.mxu0 0.0
        %1213 = vmatpush2.msra.mxu0 0.0
        %1214 = vmatprep.subr.mxu0 0.0
        %1215 = vmatpush2.msra.mxu0 0.0
        %1216 = vmatprep.subr.mxu0 0.0
        %1217 = vmatpush2.msra.mxu0 0.0
        %1218 = vmatprep.subr.mxu0 0.0
        %1219 = vmatpush2.msra.mxu0 0.0
        %1220 = vmatprep.subr.mxu0 0.0
        %1221 = vmatpush2.msra.mxu0 0.0
        %1222 = vmatprep.subr.mxu0 0.0
        %1223 = vmatpush2.msra.mxu0 0.0
        %1224 = vmatprep.subr.mxu0 0.0
        %1225 = vmatpush2.msra.mxu0 0.0
        %1226 = vmatprep.subr.mxu0 0.0
        %1227 = vmatpush2.msra.mxu0 0.0
        %1228 = vmatprep.subr.mxu0 0.0
        %1229 = vmatpush2.msra.mxu0 0.0
        %1230 = vmatprep.subr.mxu0 0.0
        %1231 = vmatpush2.msra.mxu0 0.0
        %1232 = vmatprep.subr.mxu0 0.0
        %1233 = vmatpush2.msra.mxu0 0.0
        %1234 = vmatprep.subr.mxu0 0.0
        %1235 = vmatpush2.msra.mxu0 0.0
        %1236 = vmatprep.subr.mxu0 0.0
        %1237 = vmatpush2.msra.mxu0 0.0
        %1238 = vmatprep.subr.mxu0 0.0
        %1239 = vmatpush2.msra.mxu0 0.0
        %1240 = vmatprep.mubr.f32.mxu0 0.0
        %1241 = vmatmul.mubr.f32.gmra.mxu0 %v1174
        %v1242 = vpop.f32.mrf.mxu0
        %v1243 = vadd.f32 0.0, %v1242
        %v1244 = vpop.f32.mrf.mxu0
        %1245 = vdwg.mxu0
        %1247 = vrot.lane.b32.xlu0 %v1243, 64
        %v1248 = vpop.permute.xlu0 %1247
        %1250 = vmatprep.subr.mxu0 0.0
        %1251 = vmatpush1.msra.mxu0 0.0
        %1252 = vmatprep.subr.mxu0 0.0
        %1253 = vmatpush1.msra.mxu0 0.0
        %1254 = vmatprep.subr.mxu0 0.0
        %1255 = vmatpush1.msra.mxu0 0.0
        %1256 = vmatprep.subr.mxu0 0.0
        %1257 = vmatpush1.msra.mxu0 0.0
        %1258 = vmatprep.subr.mxu0 0.0
        %1259 = vmatpush1.msra.mxu0 0.0
        %1260 = vmatprep.subr.mxu0 0.0
        %1261 = vmatpush1.msra.mxu0 0.0
        %1262 = vmatprep.subr.mxu0 0.0
        %1263 = vmatpush1.msra.mxu0 0.0
        %1264 = vmatprep.subr.mxu0 0.0
        %1265 = vmatpush1.msra.mxu0 0.0
        %1266 = vmatprep.subr.mxu0 0.0
        %1267 = vmatpush1.msra.mxu0 0.0
        %1268 = vmatprep.subr.mxu0 0.0
        %1269 = vmatpush1.msra.mxu0 0.0
        %1270 = vmatprep.subr.mxu0 0.0
        %1271 = vmatpush1.msra.mxu0 0.0
        %1272 = vmatprep.subr.mxu0 0.0
        %1273 = vmatpush1.msra.mxu0 0.0
        %1274 = vmatprep.subr.mxu0 0.0
        %1275 = vmatpush1.msra.mxu0 0.0
        %1276 = vmatprep.subr.mxu0 0.0
        %1277 = vmatpush1.msra.mxu0 0.0
        %1278 = vmatprep.subr.mxu0 0.0
        %1279 = vmatpush1.msra.mxu0 %v1248
        %1280 = vmatprep.subr.mxu0 0.0
        %1281 = vmatpush1.msra.mxu0 %v1243
        %1282 = vmatprep.subr.mxu0 0.0
        %1283 = vmatpush2.msra.mxu0 0.0
        %1284 = vmatprep.subr.mxu0 0.0
        %1285 = vmatpush2.msra.mxu0 0.0
        %1286 = vmatprep.subr.mxu0 0.0
        %1287 = vmatpush2.msra.mxu0 0.0
        %1288 = vmatprep.subr.mxu0 0.0
        %1289 = vmatpush2.msra.mxu0 0.0
        %1290 = vmatprep.subr.mxu0 0.0
        %1291 = vmatpush2.msra.mxu0 0.0
        %1292 = vmatprep.subr.mxu0 0.0
        %1293 = vmatpush2.msra.mxu0 0.0
        %1294 = vmatprep.subr.mxu0 0.0
        %1295 = vmatpush2.msra.mxu0 0.0
        %1296 = vmatprep.subr.mxu0 0.0
        %1297 = vmatpush2.msra.mxu0 0.0
        %1298 = vmatprep.subr.mxu0 0.0
        %1299 = vmatpush2.msra.mxu0 0.0
        %1300 = vmatprep.subr.mxu0 0.0
        %1301 = vmatpush2.msra.mxu0 0.0
        %1302 = vmatprep.subr.mxu0 0.0
        %1303 = vmatpush2.msra.mxu0 0.0
        %1304 = vmatprep.subr.mxu0 0.0
        %1305 = vmatpush2.msra.mxu0 0.0
        %1306 = vmatprep.subr.mxu0 0.0
        %1307 = vmatpush2.msra.mxu0 0.0
        %1308 = vmatprep.subr.mxu0 0.0
        %1309 = vmatpush2.msra.mxu0 0.0
        %1310 = vmatprep.subr.mxu0 0.0
        %1311 = vmatpush2.msra.mxu0 0.0
        %1312 = vmatprep.subr.mxu0 0.0
        %1313 = vmatpush2.msra.mxu0 0.0
        %1314 = vmatprep.mubr.f32.mxu0 0.0
        %1315 = vmatmul.mubr.f32.gmra.mxu0 %v542
        %v1316 = vpop.f32.mrf.mxu0
        %v1317 = vadd.f32 %v380, %v1316
        %v1318 = vpop.f32.mrf.mxu0
        %1319 = vmatprep.mubr.f32.mxu0 0.0
        %1320 = vmatmul.mubr.f32.gmra.mxu0 %v545
        %v1321 = vpop.f32.mrf.mxu0
        %v1322 = vadd.f32 %v381, %v1321
        %v1323 = vpop.f32.mrf.mxu0
        %1324 = vmatprep.mubr.f32.mxu0 0.0
        %1325 = vmatmul.mubr.f32.gmra.mxu0 %v548
        %v1326 = vpop.f32.mrf.mxu0
        %v1327 = vadd.f32 %v382, %v1326
        %v1328 = vpop.f32.mrf.mxu0
        %1329 = vmatprep.mubr.f32.mxu0 0.0
        %1330 = vmatmul.mubr.f32.gmra.mxu0 %v551
        %v1331 = vpop.f32.mrf.mxu0
        %v1332 = vadd.f32 %v383, %v1331
        %v1333 = vpop.f32.mrf.mxu0
        %1334 = vmatprep.mubr.f32.mxu0 0.0
        %1335 = vmatmul.mubr.f32.gmra.mxu0 %v554
        %v1336 = vpop.f32.mrf.mxu0
        %v1337 = vadd.f32 %v384, %v1336
        %v1338 = vpop.f32.mrf.mxu0
        %1339 = vmatprep.mubr.f32.mxu0 0.0
        %1340 = vmatmul.mubr.f32.gmra.mxu0 %v557
        %v1341 = vpop.f32.mrf.mxu0
        %v1342 = vadd.f32 %v385, %v1341
        %v1343 = vpop.f32.mrf.mxu0
        %1344 = vmatprep.mubr.f32.mxu0 0.0
        %1345 = vmatmul.mubr.f32.gmra.mxu0 %v560
        %v1346 = vpop.f32.mrf.mxu0
        %v1347 = vadd.f32 %v386, %v1346
        %v1348 = vpop.f32.mrf.mxu0
        %1349 = vmatprep.mubr.f32.mxu0 0.0
        %1350 = vmatmul.mubr.f32.gmra.mxu0 %v563
        %v1351 = vpop.f32.mrf.mxu0
        %v1352 = vadd.f32 %v387, %v1351
        %v1353 = vpop.f32.mrf.mxu0
        %1354 = vdwg.mxu0
        %v1355 = vmax.f32 %v1317, 0.0
        %v1356 = vmax.f32 %v1322, 0.0
        %v1357 = vmax.f32 %v1327, 0.0
        %v1358 = vmax.f32 %v1332, 0.0
        %v1359 = vmax.f32 %v1337, 0.0
        %v1360 = vmax.f32 %v1342, 0.0
        %v1361 = vmax.f32 %v1347, 0.0
        %v1362 = vmax.f32 %v1352, 0.0
        %v1364 = vsel %vm678, %v1355, 0
        %v1367 = vsel %vm678, %v1356, 0
        %v1370 = vsel %vm678, %v1357, 0
        %v1373 = vsel %vm678, %v1358, 0
        %v1376 = vsel %vm678, %v1359, 0
        %v1379 = vsel %vm678, %v1360, 0
        %v1382 = vsel %vm678, %v1361, 0
        %v1385 = vsel %vm678, %v1362, 0
        %1387 = vmatprep.subr.mxu0 0.0
        %1388 = vmatpush1.msra.mxu0 0.0
        %1389 = vmatprep.subr.mxu0 0.0
        %1390 = vmatpush1.msra.mxu0 0.0
        %1391 = vmatprep.subr.mxu0 0.0
        %1392 = vmatpush1.msra.mxu0 0.0
        %1393 = vmatprep.subr.mxu0 0.0
        %1394 = vmatpush1.msra.mxu0 0.0
        %1395 = vmatprep.subr.mxu0 0.0
        %1396 = vmatpush1.msra.mxu0 0.0
        %1397 = vmatprep.subr.mxu0 0.0
        %1398 = vmatpush1.msra.mxu0 0.0
        %1399 = vmatprep.subr.mxu0 0.0
        %1400 = vmatpush1.msra.mxu0 0.0
        %1401 = vmatprep.subr.mxu0 0.0
        %1402 = vmatpush1.msra.mxu0 0.0
        %1403 = vmatprep.subr.mxu0 0.0
        %1404 = vmatpush1.msra.mxu0 %v412
        %1405 = vmatprep.subr.mxu0 0.0
        %1406 = vmatpush1.msra.mxu0 %v411
        %1407 = vmatprep.subr.mxu0 0.0
        %1408 = vmatpush1.msra.mxu0 %v410
        %1409 = vmatprep.subr.mxu0 0.0
        %1410 = vmatpush1.msra.mxu0 %v409
        %1411 = vmatprep.subr.mxu0 0.0
        %1412 = vmatpush1.msra.mxu0 %v408
        %1413 = vmatprep.subr.mxu0 0.0
        %1414 = vmatpush1.msra.mxu0 %v407
        %1415 = vmatprep.subr.mxu0 0.0
        %1416 = vmatpush1.msra.mxu0 %v406
        %1417 = vmatprep.subr.mxu0 0.0
        %1418 = vmatpush1.msra.mxu0 %v405
        %1419 = vmatprep.subr.mxu0 0.0
        %1420 = vmatpush2.msra.mxu0 0.0
        %1421 = vmatprep.subr.mxu0 0.0
        %1422 = vmatpush2.msra.mxu0 0.0
        %1423 = vmatprep.subr.mxu0 0.0
        %1424 = vmatpush2.msra.mxu0 0.0
        %1425 = vmatprep.subr.mxu0 0.0
        %1426 = vmatpush2.msra.mxu0 0.0
        %1427 = vmatprep.subr.mxu0 0.0
        %1428 = vmatpush2.msra.mxu0 0.0
        %1429 = vmatprep.subr.mxu0 0.0
        %1430 = vmatpush2.msra.mxu0 0.0
        %1431 = vmatprep.subr.mxu0 0.0
        %1432 = vmatpush2.msra.mxu0 0.0
        %1433 = vmatprep.subr.mxu0 0.0
        %1434 = vmatpush2.msra.mxu0 0.0
        %1435 = vmatprep.subr.mxu0 0.0
        %1436 = vmatpush2.msra.mxu0 0.0
        %1437 = vmatprep.subr.mxu0 0.0
        %1438 = vmatpush2.msra.mxu0 0.0
        %1439 = vmatprep.subr.mxu0 0.0
        %1440 = vmatpush2.msra.mxu0 0.0
        %1441 = vmatprep.subr.mxu0 0.0
        %1442 = vmatpush2.msra.mxu0 0.0
        %1443 = vmatprep.subr.mxu0 0.0
        %1444 = vmatpush2.msra.mxu0 0.0
        %1445 = vmatprep.subr.mxu0 0.0
        %1446 = vmatpush2.msra.mxu0 0.0
        %1447 = vmatprep.subr.mxu0 0.0
        %1448 = vmatpush2.msra.mxu0 0.0
        %1449 = vmatprep.subr.mxu0 0.0
        %1450 = vmatpush2.msra.mxu0 0.0
        %1451 = vmatprep.mubr.f32.mxu0 0.0
        %1452 = vmatmul.mubr.f32.gmra.mxu0 %v1364
        %v1453 = vpop.f32.mrf.mxu0
        %v1454 = vadd.f32 %v433, %v1453
        %v1455 = vpop.f32.mrf.mxu0
        %1456 = vmatprep.mubr.f32.mxu0 0.0
        %1457 = vmatmul.mubr.f32.gmra.mxu0 %v1367
        %v1458 = vpop.f32.mrf.mxu0
        %v1459 = vadd.f32 %v433, %v1458
        %v1460 = vpop.f32.mrf.mxu0
        %1461 = vmatprep.mubr.f32.mxu0 0.0
        %1462 = vmatmul.mubr.f32.gmra.mxu0 %v1370
        %v1463 = vpop.f32.mrf.mxu0
        %v1464 = vadd.f32 %v433, %v1463
        %v1465 = vpop.f32.mrf.mxu0
        %1466 = vmatprep.mubr.f32.mxu0 0.0
        %1467 = vmatmul.mubr.f32.gmra.mxu0 %v1373
        %v1468 = vpop.f32.mrf.mxu0
        %v1469 = vadd.f32 %v433, %v1468
        %v1470 = vpop.f32.mrf.mxu0
        %1471 = vmatprep.mubr.f32.mxu0 0.0
        %1472 = vmatmul.mubr.f32.gmra.mxu0 %v1376
        %v1473 = vpop.f32.mrf.mxu0
        %v1474 = vadd.f32 %v433, %v1473
        %v1475 = vpop.f32.mrf.mxu0
        %1476 = vmatprep.mubr.f32.mxu0 0.0
        %1477 = vmatmul.mubr.f32.gmra.mxu0 %v1379
        %v1478 = vpop.f32.mrf.mxu0
        %v1479 = vadd.f32 %v433, %v1478
        %v1480 = vpop.f32.mrf.mxu0
        %1481 = vmatprep.mubr.f32.mxu0 0.0
        %1482 = vmatmul.mubr.f32.gmra.mxu0 %v1382
        %v1483 = vpop.f32.mrf.mxu0
        %v1484 = vadd.f32 %v433, %v1483
        %v1485 = vpop.f32.mrf.mxu0
        %1486 = vmatprep.mubr.f32.mxu0 0.0
        %1487 = vmatmul.mubr.f32.gmra.mxu0 %v1385
        %v1488 = vpop.f32.mrf.mxu0
        %v1489 = vadd.f32 %v433, %v1488
        %v1490 = vpop.f32.mrf.mxu0
        %1491 = vdwg.mxu0
        %v1492 = vmax.f32 %v1454, 0.0
        %v1493 = vmax.f32 %v1459, 0.0
        %v1494 = vmax.f32 %v1464, 0.0
        %v1495 = vmax.f32 %v1469, 0.0
        %v1496 = vmax.f32 %v1474, 0.0
        %v1497 = vmax.f32 %v1479, 0.0
        %v1498 = vmax.f32 %v1484, 0.0
        %v1499 = vmax.f32 %v1489, 0.0
        %v1501 = vsel %vm678, %v1492, 0
        %v1504 = vsel %vm678, %v1493, 0
        %v1507 = vsel %vm678, %v1494, 0
        %v1510 = vsel %vm678, %v1495, 0
        %v1513 = vsel %vm678, %v1496, 0
        %v1516 = vsel %vm678, %v1497, 0
        %v1519 = vsel %vm678, %v1498, 0
        %v1522 = vsel %vm678, %v1499, 0
        %1524 = vmatprep.subr.mxu0 0.0
        %1525 = vmatpush1.msra.mxu0 0.0
        %1526 = vmatprep.subr.mxu0 0.0
        %1527 = vmatpush1.msra.mxu0 0.0
        %1528 = vmatprep.subr.mxu0 0.0
        %1529 = vmatpush1.msra.mxu0 0.0
        %1530 = vmatprep.subr.mxu0 0.0
        %1531 = vmatpush1.msra.mxu0 0.0
        %1532 = vmatprep.subr.mxu0 0.0
        %1533 = vmatpush1.msra.mxu0 0.0
        %1534 = vmatprep.subr.mxu0 0.0
        %1535 = vmatpush1.msra.mxu0 0.0
        %1536 = vmatprep.subr.mxu0 0.0
        %1537 = vmatpush1.msra.mxu0 0.0
        %1538 = vmatprep.subr.mxu0 0.0
        %1539 = vmatpush1.msra.mxu0 0.0
        %1540 = vmatprep.subr.mxu0 0.0
        %1541 = vmatpush1.msra.mxu0 %v839
        %1542 = vmatprep.subr.mxu0 0.0
        %1543 = vmatpush1.msra.mxu0 %v837
        %1544 = vmatprep.subr.mxu0 0.0
        %1545 = vmatpush1.msra.mxu0 %v835
        %1546 = vmatprep.subr.mxu0 0.0
        %1547 = vmatpush1.msra.mxu0 %v833
        %1548 = vmatprep.subr.mxu0 0.0
        %1549 = vmatpush1.msra.mxu0 %v831
        %1550 = vmatprep.subr.mxu0 0.0
        %1551 = vmatpush1.msra.mxu0 %v829
        %1552 = vmatprep.subr.mxu0 0.0
        %1553 = vmatpush1.msra.mxu0 %v827
        %1554 = vmatprep.subr.mxu0 0.0
        %1555 = vmatpush1.msra.mxu0 %v825
        %1556 = vmatprep.subr.mxu0 0.0
        %1557 = vmatpush2.msra.mxu0 0.0
        %1558 = vmatprep.subr.mxu0 0.0
        %1559 = vmatpush2.msra.mxu0 0.0
        %1560 = vmatprep.subr.mxu0 0.0
        %1561 = vmatpush2.msra.mxu0 0.0
        %1562 = vmatprep.subr.mxu0 0.0
        %1563 = vmatpush2.msra.mxu0 0.0
        %1564 = vmatprep.subr.mxu0 0.0
        %1565 = vmatpush2.msra.mxu0 0.0
        %1566 = vmatprep.subr.mxu0 0.0
        %1567 = vmatpush2.msra.mxu0 0.0
        %1568 = vmatprep.subr.mxu0 0.0
        %1569 = vmatpush2.msra.mxu0 0.0
        %1570 = vmatprep.subr.mxu0 0.0
        %1571 = vmatpush2.msra.mxu0 0.0
        %1572 = vmatprep.subr.mxu0 0.0
        %1573 = vmatpush2.msra.mxu0 0.0
        %1574 = vmatprep.subr.mxu0 0.0
        %1575 = vmatpush2.msra.mxu0 0.0
        %1576 = vmatprep.subr.mxu0 0.0
        %1577 = vmatpush2.msra.mxu0 0.0
        %1578 = vmatprep.subr.mxu0 0.0
        %1579 = vmatpush2.msra.mxu0 0.0
        %1580 = vmatprep.subr.mxu0 0.0
        %1581 = vmatpush2.msra.mxu0 0.0
        %1582 = vmatprep.subr.mxu0 0.0
        %1583 = vmatpush2.msra.mxu0 0.0
        %1584 = vmatprep.subr.mxu0 0.0
        %1585 = vmatpush2.msra.mxu0 0.0
        %1586 = vmatprep.subr.mxu0 0.0
        %1587 = vmatpush2.msra.mxu0 0.0
        %1588 = vmatprep.mubr.f32.mxu0 0.0
        %1589 = vmatmul.mubr.f32.gmra.mxu0 %v1501
        %v1590 = vpop.f32.mrf.mxu0
        %v1591 = vadd.f32 %v438, %v1590
        %v1592 = vpop.f32.mrf.mxu0
        %1593 = vmatprep.mubr.f32.mxu0 0.0
        %1594 = vmatmul.mubr.f32.gmra.mxu0 %v1504
        %v1595 = vpop.f32.mrf.mxu0
        %v1596 = vadd.f32 %v438, %v1595
        %v1597 = vpop.f32.mrf.mxu0
        %1598 = vmatprep.mubr.f32.mxu0 0.0
        %1599 = vmatmul.mubr.f32.gmra.mxu0 %v1507
        %v1600 = vpop.f32.mrf.mxu0
        %v1601 = vadd.f32 %v438, %v1600
        %v1602 = vpop.f32.mrf.mxu0
        %1603 = vmatprep.mubr.f32.mxu0 0.0
        %1604 = vmatmul.mubr.f32.gmra.mxu0 %v1510
        %v1605 = vpop.f32.mrf.mxu0
        %v1606 = vadd.f32 %v438, %v1605
        %v1607 = vpop.f32.mrf.mxu0
        %1608 = vmatprep.mubr.f32.mxu0 0.0
        %1609 = vmatmul.mubr.f32.gmra.mxu0 %v1513
        %v1610 = vpop.f32.mrf.mxu0
        %v1611 = vadd.f32 %v438, %v1610
        %v1612 = vpop.f32.mrf.mxu0
        %1613 = vmatprep.mubr.f32.mxu0 0.0
        %1614 = vmatmul.mubr.f32.gmra.mxu0 %v1516
        %v1615 = vpop.f32.mrf.mxu0
        %v1616 = vadd.f32 %v438, %v1615
        %v1617 = vpop.f32.mrf.mxu0
        %1618 = vmatprep.mubr.f32.mxu0 0.0
        %1619 = vmatmul.mubr.f32.gmra.mxu0 %v1519
        %v1620 = vpop.f32.mrf.mxu0
        %v1621 = vadd.f32 %v438, %v1620
        %v1622 = vpop.f32.mrf.mxu0
        %1623 = vmatprep.mubr.f32.mxu0 0.0
        %1624 = vmatmul.mubr.f32.gmra.mxu0 %v1522
        %v1625 = vpop.f32.mrf.mxu0
        %v1626 = vadd.f32 %v438, %v1625
        %v1627 = vpop.f32.mrf.mxu0
        %1628 = vdwg.mxu0
        %1629 = vmatprep.subr.mxu0 0.0
        %1630 = vmatpush1.msra.mxu0 0.0
        %1631 = vmatprep.subr.mxu0 0.0
        %1632 = vmatpush1.msra.mxu0 0.0
        %1633 = vmatprep.subr.mxu0 0.0
        %1634 = vmatpush1.msra.mxu0 0.0
        %1635 = vmatprep.subr.mxu0 0.0
        %1636 = vmatpush1.msra.mxu0 0.0
        %1637 = vmatprep.subr.mxu0 0.0
        %1638 = vmatpush1.msra.mxu0 0.0
        %1639 = vmatprep.subr.mxu0 0.0
        %1640 = vmatpush1.msra.mxu0 0.0
        %1641 = vmatprep.subr.mxu0 0.0
        %1642 = vmatpush1.msra.mxu0 0.0
        %1643 = vmatprep.subr.mxu0 0.0
        %1644 = vmatpush1.msra.mxu0 0.0
        %1645 = vmatprep.subr.mxu0 0.0
        %1646 = vmatpush1.msra.mxu0 %v1626
        %1647 = vmatprep.subr.mxu0 0.0
        %1648 = vmatpush1.msra.mxu0 %v1621
        %1649 = vmatprep.subr.mxu0 0.0
        %1650 = vmatpush1.msra.mxu0 %v1616
        %1651 = vmatprep.subr.mxu0 0.0
        %1652 = vmatpush1.msra.mxu0 %v1611
        %1653 = vmatprep.subr.mxu0 0.0
        %1654 = vmatpush1.msra.mxu0 %v1606
        %1655 = vmatprep.subr.mxu0 0.0
        %1656 = vmatpush1.msra.mxu0 %v1601
        %1657 = vmatprep.subr.mxu0 0.0
        %1658 = vmatpush1.msra.mxu0 %v1596
        %1659 = vmatprep.subr.mxu0 0.0
        %1660 = vmatpush1.msra.mxu0 %v1591
        %1661 = vmatprep.subr.mxu0 0.0
        %1662 = vmatpush2.msra.mxu0 0.0
        %1663 = vmatprep.subr.mxu0 0.0
        %1664 = vmatpush2.msra.mxu0 0.0
        %1665 = vmatprep.subr.mxu0 0.0
        %1666 = vmatpush2.msra.mxu0 0.0
        %1667 = vmatprep.subr.mxu0 0.0
        %1668 = vmatpush2.msra.mxu0 0.0
        %1669 = vmatprep.subr.mxu0 0.0
        %1670 = vmatpush2.msra.mxu0 0.0
        %1671 = vmatprep.subr.mxu0 0.0
        %1672 = vmatpush2.msra.mxu0 0.0
        %1673 = vmatprep.subr.mxu0 0.0
        %1674 = vmatpush2.msra.mxu0 0.0
        %1675 = vmatprep.subr.mxu0 0.0
        %1676 = vmatpush2.msra.mxu0 0.0
        %1677 = vmatprep.subr.mxu0 0.0
        %1678 = vmatpush2.msra.mxu0 0.0
        %1679 = vmatprep.subr.mxu0 0.0
        %1680 = vmatpush2.msra.mxu0 0.0
        %1681 = vmatprep.subr.mxu0 0.0
        %1682 = vmatpush2.msra.mxu0 0.0
        %1683 = vmatprep.subr.mxu0 0.0
        %1684 = vmatpush2.msra.mxu0 0.0
        %1685 = vmatprep.subr.mxu0 0.0
        %1686 = vmatpush2.msra.mxu0 0.0
        %1687 = vmatprep.subr.mxu0 0.0
        %1688 = vmatpush2.msra.mxu0 0.0
        %1689 = vmatprep.subr.mxu0 0.0
        %1690 = vmatpush2.msra.mxu0 0.0
        %1691 = vmatprep.subr.mxu0 0.0
        %1692 = vmatpush2.msra.mxu0 0.0
        %1693 = vmatprep.mubr.f32.mxu0 0.0
        %1694 = vmatmul.mubr.f32.gmra.mxu0 %v978
        %v1695 = vpop.f32.mrf.mxu0
        %v1696 = vadd.f32 0.0, %v1695
        %v1697 = vpop.f32.mrf.mxu0
        %1698 = vdwg.mxu0
        %v1699 = vsel %vm462, %v1696, %v1170
        %v1701 = vsel %vm678, %v1699, 0
        %1703 = vmatprep.subr.mxu0 0.0
        %1704 = vmatpush1.msra.mxu0 0.0
        %1705 = vmatprep.subr.mxu0 0.0
        %1706 = vmatpush1.msra.mxu0 0.0
        %1707 = vmatprep.subr.mxu0 0.0
        %1708 = vmatpush1.msra.mxu0 0.0
        %1709 = vmatprep.subr.mxu0 0.0
        %1710 = vmatpush1.msra.mxu0 0.0
        %1711 = vmatprep.subr.mxu0 0.0
        %1712 = vmatpush1.msra.mxu0 0.0
        %1713 = vmatprep.subr.mxu0 0.0
        %1714 = vmatpush1.msra.mxu0 0.0
        %1715 = vmatprep.subr.mxu0 0.0
        %1716 = vmatpush1.msra.mxu0 0.0
        %1717 = vmatprep.subr.mxu0 0.0
        %1718 = vmatpush1.msra.mxu0 0.0
        %1719 = vmatprep.subr.mxu0 0.0
        %1720 = vmatpush1.msra.mxu0 %v420
        %1721 = vmatprep.subr.mxu0 0.0
        %1722 = vmatpush1.msra.mxu0 %v419
        %1723 = vmatprep.subr.mxu0 0.0
        %1724 = vmatpush1.msra.mxu0 %v418
        %1725 = vmatprep.subr.mxu0 0.0
        %1726 = vmatpush1.msra.mxu0 %v417
        %1727 = vmatprep.subr.mxu0 0.0
        %1728 = vmatpush1.msra.mxu0 %v416
        %1729 = vmatprep.subr.mxu0 0.0
        %1730 = vmatpush1.msra.mxu0 %v415
        %1731 = vmatprep.subr.mxu0 0.0
        %1732 = vmatpush1.msra.mxu0 %v414
        %1733 = vmatprep.subr.mxu0 0.0
        %1734 = vmatpush1.msra.mxu0 %v413
        %1735 = vmatprep.subr.mxu0 0.0
        %1736 = vmatpush2.msra.mxu0 0.0
        %1737 = vmatprep.subr.mxu0 0.0
        %1738 = vmatpush2.msra.mxu0 0.0
        %1739 = vmatprep.subr.mxu0 0.0
        %1740 = vmatpush2.msra.mxu0 0.0
        %1741 = vmatprep.subr.mxu0 0.0
        %1742 = vmatpush2.msra.mxu0 0.0
        %1743 = vmatprep.subr.mxu0 0.0
        %1744 = vmatpush2.msra.mxu0 0.0
        %1745 = vmatprep.subr.mxu0 0.0
        %1746 = vmatpush2.msra.mxu0 0.0
        %1747 = vmatprep.subr.mxu0 0.0
        %1748 = vmatpush2.msra.mxu0 0.0
        %1749 = vmatprep.subr.mxu0 0.0
        %1750 = vmatpush2.msra.mxu0 0.0
        %1751 = vmatprep.subr.mxu0 0.0
        %1752 = vmatpush2.msra.mxu0 0.0
        %1753 = vmatprep.subr.mxu0 0.0
        %1754 = vmatpush2.msra.mxu0 0.0
        %1755 = vmatprep.subr.mxu0 0.0
        %1756 = vmatpush2.msra.mxu0 0.0
        %1757 = vmatprep.subr.mxu0 0.0
        %1758 = vmatpush2.msra.mxu0 0.0
        %1759 = vmatprep.subr.mxu0 0.0
        %1760 = vmatpush2.msra.mxu0 0.0
        %1761 = vmatprep.subr.mxu0 0.0
        %1762 = vmatpush2.msra.mxu0 0.0
        %1763 = vmatprep.subr.mxu0 0.0
        %1764 = vmatpush2.msra.mxu0 0.0
        %1765 = vmatprep.subr.mxu0 0.0
        %1766 = vmatpush2.msra.mxu0 0.0
        %1767 = vmatprep.mubr.f32.mxu0 0.0
        %1768 = vmatmul.mubr.f32.gmra.mxu0 %v1701
        %v1769 = vpop.f32.mrf.mxu0
        %v1770 = vadd.f32 0.0, %v1769
        %v1771 = vpop.f32.mrf.mxu0
        %1772 = vdwg.mxu0
        %v1773 = vadd.f32 %v1770, %v443
        %v1774 = vxor.u32 %v1773, 2147483648
        %v1775 = vmul.f32 %v1774, 1.442695
        %v1776 = vpow.pop %v1775
        %v1777 = vadd.f32 %v1776, 1.0
        %v1778 = vrcp.pop %v1777
        %v1779 = vmul.f32 1.0, %v1778
        %v1780 = vadd.f32 %v1770, %v1133
        %v1781 = vxor.u32 %v1780, 2147483648
        %v1782 = vmul.f32 %v1781, 1.442695
        %v1783 = vpow.pop %v1782
        %v1784 = vadd.f32 %v1783, 1.0
        %v1785 = vrcp.pop %v1784
        %v1786 = vmul.f32 1.0, %v1785
        %v1787 = vadd.f32 %v1770, %v1144
        %v1788 = vadd.f32 %v1770, %v1149
        %1790 = vrot.lane.b32.xlu0 %v1788, 32
        %v1791 = vpop.permute.xlu0 %1790
        %v1793 = vmul.f32 %v1779, %v1791
        %1795 = vrot.lane.b32.xlu0 %v1793, 64
        %v1796 = vpop.permute.xlu0 %1795
        %v1798 = vadd.f32 %v1787, %v1796
        %v1799 = vtanh.pop %v1798
        %v1800 = vsub.f32 1.0, %v1786
        %1802 = vrot.lane.b32.xlu0 %v1799, 96
        %v1803 = vpop.permute.xlu0 %1802
        %v1805 = vmul.f32 %v1800, %v1803
        %v1806 = vmul.f32 %v1786, %v1170
        %v1807 = vadd.f32 %v1805, %v1806
        %1809 = vrot.lane.b32.xlu0 %v1807, 96
        %v1810 = vpop.permute.xlu0 %1809
        %v1811 = vsel %vm462, %v1810, 0
        %1813 = vmatprep.subr.mxu0 0.0
        %1814 = vmatpush1.msra.mxu0 0.0
        %1815 = vmatprep.subr.mxu0 0.0
        %1816 = vmatpush1.msra.mxu0 0.0
        %1817 = vmatprep.subr.mxu0 0.0
        %1818 = vmatpush1.msra.mxu0 0.0
        %1819 = vmatprep.subr.mxu0 0.0
        %1820 = vmatpush1.msra.mxu0 0.0
        %1821 = vmatprep.subr.mxu0 0.0
        %1822 = vmatpush1.msra.mxu0 0.0
        %1823 = vmatprep.subr.mxu0 0.0
        %1824 = vmatpush1.msra.mxu0 0.0
        %1825 = vmatprep.subr.mxu0 0.0
        %1826 = vmatpush1.msra.mxu0 0.0
        %1827 = vmatprep.subr.mxu0 0.0
        %1828 = vmatpush1.msra.mxu0 0.0
        %1829 = vmatprep.subr.mxu0 0.0
        %1830 = vmatpush1.msra.mxu0 0.0
        %1831 = vmatprep.subr.mxu0 0.0
        %1832 = vmatpush1.msra.mxu0 0.0
        %1833 = vmatprep.subr.mxu0 0.0
        %1834 = vmatpush1.msra.mxu0 0.0
        %1835 = vmatprep.subr.mxu0 0.0
        %1836 = vmatpush1.msra.mxu0 0.0
        %1837 = vmatprep.subr.mxu0 0.0
        %1838 = vmatpush1.msra.mxu0 %v400
        %1839 = vmatprep.subr.mxu0 0.0
        %1840 = vmatpush1.msra.mxu0 %v399
        %1841 = vmatprep.subr.mxu0 0.0
        %1842 = vmatpush1.msra.mxu0 %v398
        %1843 = vmatprep.subr.mxu0 0.0
        %1844 = vmatpush1.msra.mxu0 %v397
        %1845 = vmatprep.subr.mxu0 0.0
        %1846 = vmatpush2.msra.mxu0 0.0
        %1847 = vmatprep.subr.mxu0 0.0
        %1848 = vmatpush2.msra.mxu0 0.0
        %1849 = vmatprep.subr.mxu0 0.0
        %1850 = vmatpush2.msra.mxu0 0.0
        %1851 = vmatprep.subr.mxu0 0.0
        %1852 = vmatpush2.msra.mxu0 0.0
        %1853 = vmatprep.subr.mxu0 0.0
        %1854 = vmatpush2.msra.mxu0 0.0
        %1855 = vmatprep.subr.mxu0 0.0
        %1856 = vmatpush2.msra.mxu0 0.0
        %1857 = vmatprep.subr.mxu0 0.0
        %1858 = vmatpush2.msra.mxu0 0.0
        %1859 = vmatprep.subr.mxu0 0.0
        %1860 = vmatpush2.msra.mxu0 0.0
        %1861 = vmatprep.subr.mxu0 0.0
        %1862 = vmatpush2.msra.mxu0 0.0
        %1863 = vmatprep.subr.mxu0 0.0
        %1864 = vmatpush2.msra.mxu0 0.0
        %1865 = vmatprep.subr.mxu0 0.0
        %1866 = vmatpush2.msra.mxu0 0.0
        %1867 = vmatprep.subr.mxu0 0.0
        %1868 = vmatpush2.msra.mxu0 0.0
        %1869 = vmatprep.subr.mxu0 0.0
        %1870 = vmatpush2.msra.mxu0 0.0
        %1871 = vmatprep.subr.mxu0 0.0
        %1872 = vmatpush2.msra.mxu0 0.0
        %1873 = vmatprep.subr.mxu0 0.0
        %1874 = vmatpush2.msra.mxu0 0.0
        %1875 = vmatprep.subr.mxu0 0.0
        %1876 = vmatpush2.msra.mxu0 0.0
        %1877 = vmatprep.mubr.f32.mxu0 0.0
        %1878 = vmatmul.mubr.f32.gmra.mxu0 %v1811
        %v1879 = vpop.f32.mrf.mxu0
        %v1880 = vadd.f32 0.0, %v1879
        %v1881 = vpop.f32.mrf.mxu0
        %1882 = vdwg.mxu0
        %1884 = vrot.lane.b32.xlu0 %v1880, 64
        %v1885 = vpop.permute.xlu0 %1884
        %1887 = vmatprep.subr.mxu0 0.0
        %1888 = vmatpush1.msra.mxu0 0.0
        %1889 = vmatprep.subr.mxu0 0.0
        %1890 = vmatpush1.msra.mxu0 0.0
        %1891 = vmatprep.subr.mxu0 0.0
        %1892 = vmatpush1.msra.mxu0 0.0
        %1893 = vmatprep.subr.mxu0 0.0
        %1894 = vmatpush1.msra.mxu0 0.0
        %1895 = vmatprep.subr.mxu0 0.0
        %1896 = vmatpush1.msra.mxu0 0.0
        %1897 = vmatprep.subr.mxu0 0.0
        %1898 = vmatpush1.msra.mxu0 0.0
        %1899 = vmatprep.subr.mxu0 0.0
        %1900 = vmatpush1.msra.mxu0 0.0
        %1901 = vmatprep.subr.mxu0 0.0
        %1902 = vmatpush1.msra.mxu0 0.0
        %1903 = vmatprep.subr.mxu0 0.0
        %1904 = vmatpush1.msra.mxu0 0.0
        %1905 = vmatprep.subr.mxu0 0.0
        %1906 = vmatpush1.msra.mxu0 0.0
        %1907 = vmatprep.subr.mxu0 0.0
        %1908 = vmatpush1.msra.mxu0 0.0
        %1909 = vmatprep.subr.mxu0 0.0
        %1910 = vmatpush1.msra.mxu0 0.0
        %1911 = vmatprep.subr.mxu0 0.0
        %1912 = vmatpush1.msra.mxu0 0.0
        %1913 = vmatprep.subr.mxu0 0.0
        %1914 = vmatpush1.msra.mxu0 0.0
        %1915 = vmatprep.subr.mxu0 0.0
        %1916 = vmatpush1.msra.mxu0 %v1885
        %1917 = vmatprep.subr.mxu0 0.0
        %1918 = vmatpush1.msra.mxu0 %v1880
        %1919 = vmatprep.subr.mxu0 0.0
        %1920 = vmatpush2.msra.mxu0 0.0
        %1921 = vmatprep.subr.mxu0 0.0
        %1922 = vmatpush2.msra.mxu0 0.0
        %1923 = vmatprep.subr.mxu0 0.0
        %1924 = vmatpush2.msra.mxu0 0.0
        %1925 = vmatprep.subr.mxu0 0.0
        %1926 = vmatpush2.msra.mxu0 0.0
        %1927 = vmatprep.subr.mxu0 0.0
        %1928 = vmatpush2.msra.mxu0 0.0
        %1929 = vmatprep.subr.mxu0 0.0
        %1930 = vmatpush2.msra.mxu0 0.0
        %1931 = vmatprep.subr.mxu0 0.0
        %1932 = vmatpush2.msra.mxu0 0.0
        %1933 = vmatprep.subr.mxu0 0.0
        %1934 = vmatpush2.msra.mxu0 0.0
        %1935 = vmatprep.subr.mxu0 0.0
        %1936 = vmatpush2.msra.mxu0 0.0
        %1937 = vmatprep.subr.mxu0 0.0
        %1938 = vmatpush2.msra.mxu0 0.0
        %1939 = vmatprep.subr.mxu0 0.0
        %1940 = vmatpush2.msra.mxu0 0.0
        %1941 = vmatprep.subr.mxu0 0.0
        %1942 = vmatpush2.msra.mxu0 0.0
        %1943 = vmatprep.subr.mxu0 0.0
        %1944 = vmatpush2.msra.mxu0 0.0
        %1945 = vmatprep.subr.mxu0 0.0
        %1946 = vmatpush2.msra.mxu0 0.0
        %1947 = vmatprep.subr.mxu0 0.0
        %1948 = vmatpush2.msra.mxu0 0.0
        %1949 = vmatprep.subr.mxu0 0.0
        %1950 = vmatpush2.msra.mxu0 0.0
        %1951 = vmatprep.mubr.f32.mxu0 0.0
        %1952 = vmatmul.mubr.f32.gmra.mxu0 %v542
        %v1953 = vpop.f32.mrf.mxu0
        %v1954 = vadd.f32 %v380, %v1953
        %v1955 = vpop.f32.mrf.mxu0
        %1956 = vmatprep.mubr.f32.mxu0 0.0
        %1957 = vmatmul.mubr.f32.gmra.mxu0 %v545
        %v1958 = vpop.f32.mrf.mxu0
        %v1959 = vadd.f32 %v381, %v1958
        %v1960 = vpop.f32.mrf.mxu0
        %1961 = vmatprep.mubr.f32.mxu0 0.0
        %1962 = vmatmul.mubr.f32.gmra.mxu0 %v548
        %v1963 = vpop.f32.mrf.mxu0
        %v1964 = vadd.f32 %v382, %v1963
        %v1965 = vpop.f32.mrf.mxu0
        %1966 = vmatprep.mubr.f32.mxu0 0.0
        %1967 = vmatmul.mubr.f32.gmra.mxu0 %v551
        %v1968 = vpop.f32.mrf.mxu0
        %v1969 = vadd.f32 %v383, %v1968
        %v1970 = vpop.f32.mrf.mxu0
        %1971 = vmatprep.mubr.f32.mxu0 0.0
        %1972 = vmatmul.mubr.f32.gmra.mxu0 %v554
        %v1973 = vpop.f32.mrf.mxu0
        %v1974 = vadd.f32 %v384, %v1973
        %v1975 = vpop.f32.mrf.mxu0
        %1976 = vmatprep.mubr.f32.mxu0 0.0
        %1977 = vmatmul.mubr.f32.gmra.mxu0 %v557
        %v1978 = vpop.f32.mrf.mxu0
        %v1979 = vadd.f32 %v385, %v1978
        %v1980 = vpop.f32.mrf.mxu0
        %1981 = vmatprep.mubr.f32.mxu0 0.0
        %1982 = vmatmul.mubr.f32.gmra.mxu0 %v560
        %v1983 = vpop.f32.mrf.mxu0
        %v1984 = vadd.f32 %v386, %v1983
        %v1985 = vpop.f32.mrf.mxu0
        %1986 = vmatprep.mubr.f32.mxu0 0.0
        %1987 = vmatmul.mubr.f32.gmra.mxu0 %v563
        %v1988 = vpop.f32.mrf.mxu0
        %v1989 = vadd.f32 %v387, %v1988
        %v1990 = vpop.f32.mrf.mxu0
        %1991 = vdwg.mxu0
        %v1992 = vmax.f32 %v1954, 0.0
        %v1993 = vmax.f32 %v1959, 0.0
        %v1994 = vmax.f32 %v1964, 0.0
        %v1995 = vmax.f32 %v1969, 0.0
        %v1996 = vmax.f32 %v1974, 0.0
        %v1997 = vmax.f32 %v1979, 0.0
        %v1998 = vmax.f32 %v1984, 0.0
        %v1999 = vmax.f32 %v1989, 0.0
        %v2001 = vsel %vm678, %v1992, 0
        %v2004 = vsel %vm678, %v1993, 0
        %v2007 = vsel %vm678, %v1994, 0
        %v2010 = vsel %vm678, %v1995, 0
        %v2013 = vsel %vm678, %v1996, 0
        %v2016 = vsel %vm678, %v1997, 0
        %v2019 = vsel %vm678, %v1998, 0
        %v2022 = vsel %vm678, %v1999, 0
        %2024 = vmatprep.subr.mxu0 0.0
        %2025 = vmatpush1.msra.mxu0 0.0
        %2026 = vmatprep.subr.mxu0 0.0
        %2027 = vmatpush1.msra.mxu0 0.0
        %2028 = vmatprep.subr.mxu0 0.0
        %2029 = vmatpush1.msra.mxu0 0.0
        %2030 = vmatprep.subr.mxu0 0.0
        %2031 = vmatpush1.msra.mxu0 0.0
        %2032 = vmatprep.subr.mxu0 0.0
        %2033 = vmatpush1.msra.mxu0 0.0
        %2034 = vmatprep.subr.mxu0 0.0
        %2035 = vmatpush1.msra.mxu0 0.0
        %2036 = vmatprep.subr.mxu0 0.0
        %2037 = vmatpush1.msra.mxu0 0.0
        %2038 = vmatprep.subr.mxu0 0.0
        %2039 = vmatpush1.msra.mxu0 0.0
        %2040 = vmatprep.subr.mxu0 0.0
        %2041 = vmatpush1.msra.mxu0 %v412
        %2042 = vmatprep.subr.mxu0 0.0
        %2043 = vmatpush1.msra.mxu0 %v411
        %2044 = vmatprep.subr.mxu0 0.0
        %2045 = vmatpush1.msra.mxu0 %v410
        %2046 = vmatprep.subr.mxu0 0.0
        %2047 = vmatpush1.msra.mxu0 %v409
        %2048 = vmatprep.subr.mxu0 0.0
        %2049 = vmatpush1.msra.mxu0 %v408
        %2050 = vmatprep.subr.mxu0 0.0
        %2051 = vmatpush1.msra.mxu0 %v407
        %2052 = vmatprep.subr.mxu0 0.0
        %2053 = vmatpush1.msra.mxu0 %v406
        %2054 = vmatprep.subr.mxu0 0.0
        %2055 = vmatpush1.msra.mxu0 %v405
        %2056 = vmatprep.subr.mxu0 0.0
        %2057 = vmatpush2.msra.mxu0 0.0
        %2058 = vmatprep.subr.mxu0 0.0
        %2059 = vmatpush2.msra.mxu0 0.0
        %2060 = vmatprep.subr.mxu0 0.0
        %2061 = vmatpush2.msra.mxu0 0.0
        %2062 = vmatprep.subr.mxu0 0.0
        %2063 = vmatpush2.msra.mxu0 0.0
        %2064 = vmatprep.subr.mxu0 0.0
        %2065 = vmatpush2.msra.mxu0 0.0
        %2066 = vmatprep.subr.mxu0 0.0
        %2067 = vmatpush2.msra.mxu0 0.0
        %2068 = vmatprep.subr.mxu0 0.0
        %2069 = vmatpush2.msra.mxu0 0.0
        %2070 = vmatprep.subr.mxu0 0.0
        %2071 = vmatpush2.msra.mxu0 0.0
        %2072 = vmatprep.subr.mxu0 0.0
        %2073 = vmatpush2.msra.mxu0 0.0
        %2074 = vmatprep.subr.mxu0 0.0
        %2075 = vmatpush2.msra.mxu0 0.0
        %2076 = vmatprep.subr.mxu0 0.0
        %2077 = vmatpush2.msra.mxu0 0.0
        %2078 = vmatprep.subr.mxu0 0.0
        %2079 = vmatpush2.msra.mxu0 0.0
        %2080 = vmatprep.subr.mxu0 0.0
        %2081 = vmatpush2.msra.mxu0 0.0
        %2082 = vmatprep.subr.mxu0 0.0
        %2083 = vmatpush2.msra.mxu0 0.0
        %2084 = vmatprep.subr.mxu0 0.0
        %2085 = vmatpush2.msra.mxu0 0.0
        %2086 = vmatprep.subr.mxu0 0.0
        %2087 = vmatpush2.msra.mxu0 0.0
        %2088 = vmatprep.mubr.f32.mxu0 0.0
        %2089 = vmatmul.mubr.f32.gmra.mxu0 %v2001
        %v2090 = vpop.f32.mrf.mxu0
        %v2091 = vadd.f32 %v433, %v2090
        %v2092 = vpop.f32.mrf.mxu0
        %2093 = vmatprep.mubr.f32.mxu0 0.0
        %2094 = vmatmul.mubr.f32.gmra.mxu0 %v2004
        %v2095 = vpop.f32.mrf.mxu0
        %v2096 = vadd.f32 %v433, %v2095
        %v2097 = vpop.f32.mrf.mxu0
        %2098 = vmatprep.mubr.f32.mxu0 0.0
        %2099 = vmatmul.mubr.f32.gmra.mxu0 %v2007
        %v2100 = vpop.f32.mrf.mxu0
        %v2101 = vadd.f32 %v433, %v2100
        %v2102 = vpop.f32.mrf.mxu0
        %2103 = vmatprep.mubr.f32.mxu0 0.0
        %2104 = vmatmul.mubr.f32.gmra.mxu0 %v2010
        %v2105 = vpop.f32.mrf.mxu0
        %v2106 = vadd.f32 %v433, %v2105
        %v2107 = vpop.f32.mrf.mxu0
        %2108 = vmatprep.mubr.f32.mxu0 0.0
        %2109 = vmatmul.mubr.f32.gmra.mxu0 %v2013
        %v2110 = vpop.f32.mrf.mxu0
        %v2111 = vadd.f32 %v433, %v2110
        %v2112 = vpop.f32.mrf.mxu0
        %2113 = vmatprep.mubr.f32.mxu0 0.0
        %2114 = vmatmul.mubr.f32.gmra.mxu0 %v2016
        %v2115 = vpop.f32.mrf.mxu0
        %v2116 = vadd.f32 %v433, %v2115
        %v2117 = vpop.f32.mrf.mxu0
        %2118 = vmatprep.mubr.f32.mxu0 0.0
        %2119 = vmatmul.mubr.f32.gmra.mxu0 %v2019
        %v2120 = vpop.f32.mrf.mxu0
        %v2121 = vadd.f32 %v433, %v2120
        %v2122 = vpop.f32.mrf.mxu0
        %2123 = vmatprep.mubr.f32.mxu0 0.0
        %2124 = vmatmul.mubr.f32.gmra.mxu0 %v2022
        %v2125 = vpop.f32.mrf.mxu0
        %v2126 = vadd.f32 %v433, %v2125
        %v2127 = vpop.f32.mrf.mxu0
        %2128 = vdwg.mxu0
        %v2129 = vmax.f32 %v2091, 0.0
        %v2130 = vmax.f32 %v2096, 0.0
        %v2131 = vmax.f32 %v2101, 0.0
        %v2132 = vmax.f32 %v2106, 0.0
        %v2133 = vmax.f32 %v2111, 0.0
        %v2134 = vmax.f32 %v2116, 0.0
        %v2135 = vmax.f32 %v2121, 0.0
        %v2136 = vmax.f32 %v2126, 0.0
        %v2138 = vsel %vm678, %v2129, 0
        %v2141 = vsel %vm678, %v2130, 0
        %v2144 = vsel %vm678, %v2131, 0
        %v2147 = vsel %vm678, %v2132, 0
        %v2150 = vsel %vm678, %v2133, 0
        %v2153 = vsel %vm678, %v2134, 0
        %v2156 = vsel %vm678, %v2135, 0
        %v2159 = vsel %vm678, %v2136, 0
        %2161 = vmatprep.subr.mxu0 0.0
        %2162 = vmatpush1.msra.mxu0 0.0
        %2163 = vmatprep.subr.mxu0 0.0
        %2164 = vmatpush1.msra.mxu0 0.0
        %2165 = vmatprep.subr.mxu0 0.0
        %2166 = vmatpush1.msra.mxu0 0.0
        %2167 = vmatprep.subr.mxu0 0.0
        %2168 = vmatpush1.msra.mxu0 0.0
        %2169 = vmatprep.subr.mxu0 0.0
        %2170 = vmatpush1.msra.mxu0 0.0
        %2171 = vmatprep.subr.mxu0 0.0
        %2172 = vmatpush1.msra.mxu0 0.0
        %2173 = vmatprep.subr.mxu0 0.0
        %2174 = vmatpush1.msra.mxu0 0.0
        %2175 = vmatprep.subr.mxu0 0.0
        %2176 = vmatpush1.msra.mxu0 0.0
        %2177 = vmatprep.subr.mxu0 0.0
        %2178 = vmatpush1.msra.mxu0 %v839
        %2179 = vmatprep.subr.mxu0 0.0
        %2180 = vmatpush1.msra.mxu0 %v837
        %2181 = vmatprep.subr.mxu0 0.0
        %2182 = vmatpush1.msra.mxu0 %v835
        %2183 = vmatprep.subr.mxu0 0.0
        %2184 = vmatpush1.msra.mxu0 %v833
        %2185 = vmatprep.subr.mxu0 0.0
        %2186 = vmatpush1.msra.mxu0 %v831
        %2187 = vmatprep.subr.mxu0 0.0
        %2188 = vmatpush1.msra.mxu0 %v829
        %2189 = vmatprep.subr.mxu0 0.0
        %2190 = vmatpush1.msra.mxu0 %v827
        %2191 = vmatprep.subr.mxu0 0.0
        %2192 = vmatpush1.msra.mxu0 %v825
        %2193 = vmatprep.subr.mxu0 0.0
        %2194 = vmatpush2.msra.mxu0 0.0
        %2195 = vmatprep.subr.mxu0 0.0
        %2196 = vmatpush2.msra.mxu0 0.0
        %2197 = vmatprep.subr.mxu0 0.0
        %2198 = vmatpush2.msra.mxu0 0.0
        %2199 = vmatprep.subr.mxu0 0.0
        %2200 = vmatpush2.msra.mxu0 0.0
        %2201 = vmatprep.subr.mxu0 0.0
        %2202 = vmatpush2.msra.mxu0 0.0
        %2203 = vmatprep.subr.mxu0 0.0
        %2204 = vmatpush2.msra.mxu0 0.0
        %2205 = vmatprep.subr.mxu0 0.0
        %2206 = vmatpush2.msra.mxu0 0.0
        %2207 = vmatprep.subr.mxu0 0.0
        %2208 = vmatpush2.msra.mxu0 0.0
        %2209 = vmatprep.subr.mxu0 0.0
        %2210 = vmatpush2.msra.mxu0 0.0
        %2211 = vmatprep.subr.mxu0 0.0
        %2212 = vmatpush2.msra.mxu0 0.0
        %2213 = vmatprep.subr.mxu0 0.0
        %2214 = vmatpush2.msra.mxu0 0.0
        %2215 = vmatprep.subr.mxu0 0.0
        %2216 = vmatpush2.msra.mxu0 0.0
        %2217 = vmatprep.subr.mxu0 0.0
        %2218 = vmatpush2.msra.mxu0 0.0
        %2219 = vmatprep.subr.mxu0 0.0
        %2220 = vmatpush2.msra.mxu0 0.0
        %2221 = vmatprep.subr.mxu0 0.0
        %2222 = vmatpush2.msra.mxu0 0.0
        %2223 = vmatprep.subr.mxu0 0.0
        %2224 = vmatpush2.msra.mxu0 0.0
        %2225 = vmatprep.mubr.f32.mxu0 0.0
        %2226 = vmatmul.mubr.f32.gmra.mxu0 %v2138
        %v2227 = vpop.f32.mrf.mxu0
        %v2228 = vadd.f32 %v438, %v2227
        %v2229 = vpop.f32.mrf.mxu0
        %2230 = vmatprep.mubr.f32.mxu0 0.0
        %2231 = vmatmul.mubr.f32.gmra.mxu0 %v2141
        %v2232 = vpop.f32.mrf.mxu0
        %v2233 = vadd.f32 %v438, %v2232
        %v2234 = vpop.f32.mrf.mxu0
        %2235 = vmatprep.mubr.f32.mxu0 0.0
        %2236 = vmatmul.mubr.f32.gmra.mxu0 %v2144
        %v2237 = vpop.f32.mrf.mxu0
        %v2238 = vadd.f32 %v438, %v2237
        %v2239 = vpop.f32.mrf.mxu0
        %2240 = vmatprep.mubr.f32.mxu0 0.0
        %2241 = vmatmul.mubr.f32.gmra.mxu0 %v2147
        %v2242 = vpop.f32.mrf.mxu0
        %v2243 = vadd.f32 %v438, %v2242
        %v2244 = vpop.f32.mrf.mxu0
        %2245 = vmatprep.mubr.f32.mxu0 0.0
        %2246 = vmatmul.mubr.f32.gmra.mxu0 %v2150
        %v2247 = vpop.f32.mrf.mxu0
        %v2248 = vadd.f32 %v438, %v2247
        %v2249 = vpop.f32.mrf.mxu0
        %2250 = vmatprep.mubr.f32.mxu0 0.0
        %2251 = vmatmul.mubr.f32.gmra.mxu0 %v2153
        %v2252 = vpop.f32.mrf.mxu0
        %v2253 = vadd.f32 %v438, %v2252
        %v2254 = vpop.f32.mrf.mxu0
        %2255 = vmatprep.mubr.f32.mxu0 0.0
        %2256 = vmatmul.mubr.f32.gmra.mxu0 %v2156
        %v2257 = vpop.f32.mrf.mxu0
        %v2258 = vadd.f32 %v438, %v2257
        %v2259 = vpop.f32.mrf.mxu0
        %2260 = vmatprep.mubr.f32.mxu0 0.0
        %2261 = vmatmul.mubr.f32.gmra.mxu0 %v2159
        %v2262 = vpop.f32.mrf.mxu0
        %v2263 = vadd.f32 %v438, %v2262
        %v2264 = vpop.f32.mrf.mxu0
        %2265 = vdwg.mxu0
        %2266 = vmatprep.subr.mxu0 0.0
        %2267 = vmatpush1.msra.mxu0 0.0
        %2268 = vmatprep.subr.mxu0 0.0
        %2269 = vmatpush1.msra.mxu0 0.0
        %2270 = vmatprep.subr.mxu0 0.0
        %2271 = vmatpush1.msra.mxu0 0.0
        %2272 = vmatprep.subr.mxu0 0.0
        %2273 = vmatpush1.msra.mxu0 0.0
        %2274 = vmatprep.subr.mxu0 0.0
        %2275 = vmatpush1.msra.mxu0 0.0
        %2276 = vmatprep.subr.mxu0 0.0
        %2277 = vmatpush1.msra.mxu0 0.0
        %2278 = vmatprep.subr.mxu0 0.0
        %2279 = vmatpush1.msra.mxu0 0.0
        %2280 = vmatprep.subr.mxu0 0.0
        %2281 = vmatpush1.msra.mxu0 0.0
        %2282 = vmatprep.subr.mxu0 0.0
        %2283 = vmatpush1.msra.mxu0 %v2263
        %2284 = vmatprep.subr.mxu0 0.0
        %2285 = vmatpush1.msra.mxu0 %v2258
        %2286 = vmatprep.subr.mxu0 0.0
        %2287 = vmatpush1.msra.mxu0 %v2253
        %2288 = vmatprep.subr.mxu0 0.0
        %2289 = vmatpush1.msra.mxu0 %v2248
        %2290 = vmatprep.subr.mxu0 0.0
        %2291 = vmatpush1.msra.mxu0 %v2243
        %2292 = vmatprep.subr.mxu0 0.0
        %2293 = vmatpush1.msra.mxu0 %v2238
        %2294 = vmatprep.subr.mxu0 0.0
        %2295 = vmatpush1.msra.mxu0 %v2233
        %2296 = vmatprep.subr.mxu0 0.0
        %2297 = vmatpush1.msra.mxu0 %v2228
        %2298 = vmatprep.subr.mxu0 0.0
        %2299 = vmatpush2.msra.mxu0 0.0
        %2300 = vmatprep.subr.mxu0 0.0
        %2301 = vmatpush2.msra.mxu0 0.0
        %2302 = vmatprep.subr.mxu0 0.0
        %2303 = vmatpush2.msra.mxu0 0.0
        %2304 = vmatprep.subr.mxu0 0.0
        %2305 = vmatpush2.msra.mxu0 0.0
        %2306 = vmatprep.subr.mxu0 0.0
        %2307 = vmatpush2.msra.mxu0 0.0
        %2308 = vmatprep.subr.mxu0 0.0
        %2309 = vmatpush2.msra.mxu0 0.0
        %2310 = vmatprep.subr.mxu0 0.0
        %2311 = vmatpush2.msra.mxu0 0.0
        %2312 = vmatprep.subr.mxu0 0.0
        %2313 = vmatpush2.msra.mxu0 0.0
        %2314 = vmatprep.subr.mxu0 0.0
        %2315 = vmatpush2.msra.mxu0 0.0
        %2316 = vmatprep.subr.mxu0 0.0
        %2317 = vmatpush2.msra.mxu0 0.0
        %2318 = vmatprep.subr.mxu0 0.0
        %2319 = vmatpush2.msra.mxu0 0.0
        %2320 = vmatprep.subr.mxu0 0.0
        %2321 = vmatpush2.msra.mxu0 0.0
        %2322 = vmatprep.subr.mxu0 0.0
        %2323 = vmatpush2.msra.mxu0 0.0
        %2324 = vmatprep.subr.mxu0 0.0
        %2325 = vmatpush2.msra.mxu0 0.0
        %2326 = vmatprep.subr.mxu0 0.0
        %2327 = vmatpush2.msra.mxu0 0.0
        %2328 = vmatprep.subr.mxu0 0.0
        %2329 = vmatpush2.msra.mxu0 0.0
        %2330 = vmatprep.mubr.f32.mxu0 0.0
        %2331 = vmatmul.mubr.f32.gmra.mxu0 %v978
        %v2332 = vpop.f32.mrf.mxu0
        %v2333 = vadd.f32 0.0, %v2332
        %v2334 = vpop.f32.mrf.mxu0
        %2335 = vdwg.mxu0
        %v2336 = vsel %vm462, %v2333, %v1807
        %v2338 = vsel %vm678, %v2336, 0
        %2340 = vmatprep.subr.mxu0 0.0
        %2341 = vmatpush1.msra.mxu0 0.0
        %2342 = vmatprep.subr.mxu0 0.0
        %2343 = vmatpush1.msra.mxu0 0.0
        %2344 = vmatprep.subr.mxu0 0.0
        %2345 = vmatpush1.msra.mxu0 0.0
        %2346 = vmatprep.subr.mxu0 0.0
        %2347 = vmatpush1.msra.mxu0 0.0
        %2348 = vmatprep.subr.mxu0 0.0
        %2349 = vmatpush1.msra.mxu0 0.0
        %2350 = vmatprep.subr.mxu0 0.0
        %2351 = vmatpush1.msra.mxu0 0.0
        %2352 = vmatprep.subr.mxu0 0.0
        %2353 = vmatpush1.msra.mxu0 0.0
        %2354 = vmatprep.subr.mxu0 0.0
        %2355 = vmatpush1.msra.mxu0 0.0
        %2356 = vmatprep.subr.mxu0 0.0
        %2357 = vmatpush1.msra.mxu0 %v420
        %2358 = vmatprep.subr.mxu0 0.0
        %2359 = vmatpush1.msra.mxu0 %v419
        %2360 = vmatprep.subr.mxu0 0.0
        %2361 = vmatpush1.msra.mxu0 %v418
        %2362 = vmatprep.subr.mxu0 0.0
        %2363 = vmatpush1.msra.mxu0 %v417
        %2364 = vmatprep.subr.mxu0 0.0
        %2365 = vmatpush1.msra.mxu0 %v416
        %2366 = vmatprep.subr.mxu0 0.0
        %2367 = vmatpush1.msra.mxu0 %v415
        %2368 = vmatprep.subr.mxu0 0.0
        %2369 = vmatpush1.msra.mxu0 %v414
        %2370 = vmatprep.subr.mxu0 0.0
        %2371 = vmatpush1.msra.mxu0 %v413
        %2372 = vmatprep.subr.mxu0 0.0
        %2373 = vmatpush2.msra.mxu0 0.0
        %2374 = vmatprep.subr.mxu0 0.0
        %2375 = vmatpush2.msra.mxu0 0.0
        %2376 = vmatprep.subr.mxu0 0.0
        %2377 = vmatpush2.msra.mxu0 0.0
        %2378 = vmatprep.subr.mxu0 0.0
        %2379 = vmatpush2.msra.mxu0 0.0
        %2380 = vmatprep.subr.mxu0 0.0
        %2381 = vmatpush2.msra.mxu0 0.0
        %2382 = vmatprep.subr.mxu0 0.0
        %2383 = vmatpush2.msra.mxu0 0.0
        %2384 = vmatprep.subr.mxu0 0.0
        %2385 = vmatpush2.msra.mxu0 0.0
        %2386 = vmatprep.subr.mxu0 0.0
        %2387 = vmatpush2.msra.mxu0 0.0
        %2388 = vmatprep.subr.mxu0 0.0
        %2389 = vmatpush2.msra.mxu0 0.0
        %2390 = vmatprep.subr.mxu0 0.0
        %2391 = vmatpush2.msra.mxu0 0.0
        %2392 = vmatprep.subr.mxu0 0.0
        %2393 = vmatpush2.msra.mxu0 0.0
        %2394 = vmatprep.subr.mxu0 0.0
        %2395 = vmatpush2.msra.mxu0 0.0
        %2396 = vmatprep.subr.mxu0 0.0
        %2397 = vmatpush2.msra.mxu0 0.0
        %2398 = vmatprep.subr.mxu0 0.0
        %2399 = vmatpush2.msra.mxu0 0.0
        %2400 = vmatprep.subr.mxu0 0.0
        %2401 = vmatpush2.msra.mxu0 0.0
        %2402 = vmatprep.subr.mxu0 0.0
        %2403 = vmatpush2.msra.mxu0 0.0
        %2404 = vmatprep.mubr.f32.mxu0 0.0
        %2405 = vmatmul.mubr.f32.gmra.mxu0 %v2338
        %v2406 = vpop.f32.mrf.mxu0
        %v2407 = vadd.f32 0.0, %v2406
        %v2408 = vpop.f32.mrf.mxu0
        %2409 = vdwg.mxu0
        %v2410 = vadd.f32 %v2407, %v443
        %v2411 = vxor.u32 %v2410, 2147483648
        %v2412 = vmul.f32 %v2411, 1.442695
        %v2413 = vpow.pop %v2412
        %v2414 = vadd.f32 %v2413, 1.0
        %v2415 = vrcp.pop %v2414
        %v2416 = vmul.f32 1.0, %v2415
        %v2417 = vadd.f32 %v2407, %v1133
        %v2418 = vxor.u32 %v2417, 2147483648
        %v2419 = vmul.f32 %v2418, 1.442695
        %v2420 = vpow.pop %v2419
        %v2421 = vadd.f32 %v2420, 1.0
        %v2422 = vrcp.pop %v2421
        %v2423 = vmul.f32 1.0, %v2422
        %v2424 = vadd.f32 %v2407, %v1144
        %v2425 = vadd.f32 %v2407, %v1149
        %2427 = vrot.lane.b32.xlu0 %v2425, 32
        %v2428 = vpop.permute.xlu0 %2427
        %v2430 = vmul.f32 %v2416, %v2428
        %2432 = vrot.lane.b32.xlu0 %v2430, 64
        %v2433 = vpop.permute.xlu0 %2432
        %v2435 = vadd.f32 %v2424, %v2433
        %v2436 = vtanh.pop %v2435
        %v2437 = vsub.f32 1.0, %v2423
        %2439 = vrot.lane.b32.xlu0 %v2436, 96
        %v2440 = vpop.permute.xlu0 %2439
        %v2442 = vmul.f32 %v2437, %v2440
        %v2443 = vmul.f32 %v2423, %v1807
        %v2444 = vadd.f32 %v2442, %v2443
        %2446 = vrot.lane.b32.xlu0 %v2444, 96
        %v2447 = vpop.permute.xlu0 %2446
        %v2448 = vsel %vm462, %v2447, 0
        %2450 = vmatprep.subr.mxu0 0.0
        %2451 = vmatpush1.msra.mxu0 0.0
        %2452 = vmatprep.subr.mxu0 0.0
        %2453 = vmatpush1.msra.mxu0 0.0
        %2454 = vmatprep.subr.mxu0 0.0
        %2455 = vmatpush1.msra.mxu0 0.0
        %2456 = vmatprep.subr.mxu0 0.0
        %2457 = vmatpush1.msra.mxu0 0.0
        %2458 = vmatprep.subr.mxu0 0.0
        %2459 = vmatpush1.msra.mxu0 0.0
        %2460 = vmatprep.subr.mxu0 0.0
        %2461 = vmatpush1.msra.mxu0 0.0
        %2462 = vmatprep.subr.mxu0 0.0
        %2463 = vmatpush1.msra.mxu0 0.0
        %2464 = vmatprep.subr.mxu0 0.0
        %2465 = vmatpush1.msra.mxu0 0.0
        %2466 = vmatprep.subr.mxu0 0.0
        %2467 = vmatpush1.msra.mxu0 0.0
        %2468 = vmatprep.subr.mxu0 0.0
        %2469 = vmatpush1.msra.mxu0 0.0
        %2470 = vmatprep.subr.mxu0 0.0
        %2471 = vmatpush1.msra.mxu0 0.0
        %2472 = vmatprep.subr.mxu0 0.0
        %2473 = vmatpush1.msra.mxu0 0.0
        %2474 = vmatprep.subr.mxu0 0.0
        %2475 = vmatpush1.msra.mxu0 %v400
        %2476 = vmatprep.subr.mxu0 0.0
        %2477 = vmatpush1.msra.mxu0 %v399
        %2478 = vmatprep.subr.mxu0 0.0
        %2479 = vmatpush1.msra.mxu0 %v398
        %2480 = vmatprep.subr.mxu0 0.0
        %2481 = vmatpush1.msra.mxu0 %v397
        %2482 = vmatprep.subr.mxu0 0.0
        %2483 = vmatpush2.msra.mxu0 0.0
        %2484 = vmatprep.subr.mxu0 0.0
        %2485 = vmatpush2.msra.mxu0 0.0
        %2486 = vmatprep.subr.mxu0 0.0
        %2487 = vmatpush2.msra.mxu0 0.0
        %2488 = vmatprep.subr.mxu0 0.0
        %2489 = vmatpush2.msra.mxu0 0.0
        %2490 = vmatprep.subr.mxu0 0.0
        %2491 = vmatpush2.msra.mxu0 0.0
        %2492 = vmatprep.subr.mxu0 0.0
        %2493 = vmatpush2.msra.mxu0 0.0
        %2494 = vmatprep.subr.mxu0 0.0
        %2495 = vmatpush2.msra.mxu0 0.0
        %2496 = vmatprep.subr.mxu0 0.0
        %2497 = vmatpush2.msra.mxu0 0.0
        %2498 = vmatprep.subr.mxu0 0.0
        %2499 = vmatpush2.msra.mxu0 0.0
        %2500 = vmatprep.subr.mxu0 0.0
        %2501 = vmatpush2.msra.mxu0 0.0
        %2502 = vmatprep.subr.mxu0 0.0
        %2503 = vmatpush2.msra.mxu0 0.0
        %2504 = vmatprep.subr.mxu0 0.0
        %2505 = vmatpush2.msra.mxu0 0.0
        %2506 = vmatprep.subr.mxu0 0.0
        %2507 = vmatpush2.msra.mxu0 0.0
        %2508 = vmatprep.subr.mxu0 0.0
        %2509 = vmatpush2.msra.mxu0 0.0
        %2510 = vmatprep.subr.mxu0 0.0
        %2511 = vmatpush2.msra.mxu0 0.0
        %2512 = vmatprep.subr.mxu0 0.0
        %2513 = vmatpush2.msra.mxu0 0.0
        %2514 = vmatprep.mubr.f32.mxu0 0.0
        %2515 = vmatmul.mubr.f32.gmra.mxu0 %v2448
        %v2516 = vpop.f32.mrf.mxu0
        %v2517 = vadd.f32 0.0, %v2516
        %v2518 = vpop.f32.mrf.mxu0
        %2519 = vdwg.mxu0
        %2521 = vrot.lane.b32.xlu0 %v2517, 64
        %v2522 = vpop.permute.xlu0 %2521
        %2524 = vmatprep.subr.mxu0 0.0
        %2525 = vmatpush1.msra.mxu0 0.0
        %2526 = vmatprep.subr.mxu0 0.0
        %2527 = vmatpush1.msra.mxu0 0.0
        %2528 = vmatprep.subr.mxu0 0.0
        %2529 = vmatpush1.msra.mxu0 0.0
        %2530 = vmatprep.subr.mxu0 0.0
        %2531 = vmatpush1.msra.mxu0 0.0
        %2532 = vmatprep.subr.mxu0 0.0
        %2533 = vmatpush1.msra.mxu0 0.0
        %2534 = vmatprep.subr.mxu0 0.0
        %2535 = vmatpush1.msra.mxu0 0.0
        %2536 = vmatprep.subr.mxu0 0.0
        %2537 = vmatpush1.msra.mxu0 0.0
        %2538 = vmatprep.subr.mxu0 0.0
        %2539 = vmatpush1.msra.mxu0 0.0
        %2540 = vmatprep.subr.mxu0 0.0
        %2541 = vmatpush1.msra.mxu0 0.0
        %2542 = vmatprep.subr.mxu0 0.0
        %2543 = vmatpush1.msra.mxu0 0.0
        %2544 = vmatprep.subr.mxu0 0.0
        %2545 = vmatpush1.msra.mxu0 0.0
        %2546 = vmatprep.subr.mxu0 0.0
        %2547 = vmatpush1.msra.mxu0 0.0
        %2548 = vmatprep.subr.mxu0 0.0
        %2549 = vmatpush1.msra.mxu0 0.0
        %2550 = vmatprep.subr.mxu0 0.0
        %2551 = vmatpush1.msra.mxu0 0.0
        %2552 = vmatprep.subr.mxu0 0.0
        %2553 = vmatpush1.msra.mxu0 %v2522
        %2554 = vmatprep.subr.mxu0 0.0
        %2555 = vmatpush1.msra.mxu0 %v2517
        %2556 = vmatprep.subr.mxu0 0.0
        %2557 = vmatpush2.msra.mxu0 0.0
        %2558 = vmatprep.subr.mxu0 0.0
        %2559 = vmatpush2.msra.mxu0 0.0
        %2560 = vmatprep.subr.mxu0 0.0
        %2561 = vmatpush2.msra.mxu0 0.0
        %2562 = vmatprep.subr.mxu0 0.0
        %2563 = vmatpush2.msra.mxu0 0.0
        %2564 = vmatprep.subr.mxu0 0.0
        %2565 = vmatpush2.msra.mxu0 0.0
        %2566 = vmatprep.subr.mxu0 0.0
        %2567 = vmatpush2.msra.mxu0 0.0
        %2568 = vmatprep.subr.mxu0 0.0
        %2569 = vmatpush2.msra.mxu0 0.0
        %2570 = vmatprep.subr.mxu0 0.0
        %2571 = vmatpush2.msra.mxu0 0.0
        %2572 = vmatprep.subr.mxu0 0.0
        %2573 = vmatpush2.msra.mxu0 0.0
        %2574 = vmatprep.subr.mxu0 0.0
        %2575 = vmatpush2.msra.mxu0 0.0
        %2576 = vmatprep.subr.mxu0 0.0
        %2577 = vmatpush2.msra.mxu0 0.0
        %2578 = vmatprep.subr.mxu0 0.0
        %2579 = vmatpush2.msra.mxu0 0.0
        %2580 = vmatprep.subr.mxu0 0.0
        %2581 = vmatpush2.msra.mxu0 0.0
        %2582 = vmatprep.subr.mxu0 0.0
        %2583 = vmatpush2.msra.mxu0 0.0
        %2584 = vmatprep.subr.mxu0 0.0
        %2585 = vmatpush2.msra.mxu0 0.0
        %2586 = vmatprep.subr.mxu0 0.0
        %2587 = vmatpush2.msra.mxu0 0.0
        %2588 = vmatprep.mubr.f32.mxu0 0.0
        %2589 = vmatmul.mubr.f32.gmra.mxu0 %v542
        %v2590 = vpop.f32.mrf.mxu0
        %v2591 = vadd.f32 %v380, %v2590
        %v2592 = vpop.f32.mrf.mxu0
        %2593 = vmatprep.mubr.f32.mxu0 0.0
        %2594 = vmatmul.mubr.f32.gmra.mxu0 %v545
        %v2595 = vpop.f32.mrf.mxu0
        %v2596 = vadd.f32 %v381, %v2595
        %v2597 = vpop.f32.mrf.mxu0
        %2598 = vmatprep.mubr.f32.mxu0 0.0
        %2599 = vmatmul.mubr.f32.gmra.mxu0 %v548
        %v2600 = vpop.f32.mrf.mxu0
        %v2601 = vadd.f32 %v382, %v2600
        %v2602 = vpop.f32.mrf.mxu0
        %2603 = vmatprep.mubr.f32.mxu0 0.0
        %2604 = vmatmul.mubr.f32.gmra.mxu0 %v551
        %v2605 = vpop.f32.mrf.mxu0
        %v2606 = vadd.f32 %v383, %v2605
        %v2607 = vpop.f32.mrf.mxu0
        %2608 = vmatprep.mubr.f32.mxu0 0.0
        %2609 = vmatmul.mubr.f32.gmra.mxu0 %v554
        %v2610 = vpop.f32.mrf.mxu0
        %v2611 = vadd.f32 %v384, %v2610
        %v2612 = vpop.f32.mrf.mxu0
        %2613 = vmatprep.mubr.f32.mxu0 0.0
        %2614 = vmatmul.mubr.f32.gmra.mxu0 %v557
        %v2615 = vpop.f32.mrf.mxu0
        %v2616 = vadd.f32 %v385, %v2615
        %v2617 = vpop.f32.mrf.mxu0
        %2618 = vmatprep.mubr.f32.mxu0 0.0
        %2619 = vmatmul.mubr.f32.gmra.mxu0 %v560
        %v2620 = vpop.f32.mrf.mxu0
        %v2621 = vadd.f32 %v386, %v2620
        %v2622 = vpop.f32.mrf.mxu0
        %2623 = vmatprep.mubr.f32.mxu0 0.0
        %2624 = vmatmul.mubr.f32.gmra.mxu0 %v563
        %v2625 = vpop.f32.mrf.mxu0
        %v2626 = vadd.f32 %v387, %v2625
        %v2627 = vpop.f32.mrf.mxu0
        %2628 = vdwg.mxu0
        %v2629 = vmax.f32 %v2591, 0.0
        %v2630 = vmax.f32 %v2596, 0.0
        %v2631 = vmax.f32 %v2601, 0.0
        %v2632 = vmax.f32 %v2606, 0.0
        %v2633 = vmax.f32 %v2611, 0.0
        %v2634 = vmax.f32 %v2616, 0.0
        %v2635 = vmax.f32 %v2621, 0.0
        %v2636 = vmax.f32 %v2626, 0.0
        %v2638 = vsel %vm678, %v2629, 0
        %v2641 = vsel %vm678, %v2630, 0
        %v2644 = vsel %vm678, %v2631, 0
        %v2647 = vsel %vm678, %v2632, 0
        %v2650 = vsel %vm678, %v2633, 0
        %v2653 = vsel %vm678, %v2634, 0
        %v2656 = vsel %vm678, %v2635, 0
        %v2659 = vsel %vm678, %v2636, 0
        %2661 = vmatprep.subr.mxu0 0.0
        %2662 = vmatpush1.msra.mxu0 0.0
        %2663 = vmatprep.subr.mxu0 0.0
        %2664 = vmatpush1.msra.mxu0 0.0
        %2665 = vmatprep.subr.mxu0 0.0
        %2666 = vmatpush1.msra.mxu0 0.0
        %2667 = vmatprep.subr.mxu0 0.0
        %2668 = vmatpush1.msra.mxu0 0.0
        %2669 = vmatprep.subr.mxu0 0.0
        %2670 = vmatpush1.msra.mxu0 0.0
        %2671 = vmatprep.subr.mxu0 0.0
        %2672 = vmatpush1.msra.mxu0 0.0
        %2673 = vmatprep.subr.mxu0 0.0
        %2674 = vmatpush1.msra.mxu0 0.0
        %2675 = vmatprep.subr.mxu0 0.0
        %2676 = vmatpush1.msra.mxu0 0.0
        %2677 = vmatprep.subr.mxu0 0.0
        %2678 = vmatpush1.msra.mxu0 %v412
        %2679 = vmatprep.subr.mxu0 0.0
        %2680 = vmatpush1.msra.mxu0 %v411
        %2681 = vmatprep.subr.mxu0 0.0
        %2682 = vmatpush1.msra.mxu0 %v410
        %2683 = vmatprep.subr.mxu0 0.0
        %2684 = vmatpush1.msra.mxu0 %v409
        %2685 = vmatprep.subr.mxu0 0.0
        %2686 = vmatpush1.msra.mxu0 %v408
        %2687 = vmatprep.subr.mxu0 0.0
        %2688 = vmatpush1.msra.mxu0 %v407
        %2689 = vmatprep.subr.mxu0 0.0
        %2690 = vmatpush1.msra.mxu0 %v406
        %2691 = vmatprep.subr.mxu0 0.0
        %2692 = vmatpush1.msra.mxu0 %v405
        %2693 = vmatprep.subr.mxu0 0.0
        %2694 = vmatpush2.msra.mxu0 0.0
        %2695 = vmatprep.subr.mxu0 0.0
        %2696 = vmatpush2.msra.mxu0 0.0
        %2697 = vmatprep.subr.mxu0 0.0
        %2698 = vmatpush2.msra.mxu0 0.0
        %2699 = vmatprep.subr.mxu0 0.0
        %2700 = vmatpush2.msra.mxu0 0.0
        %2701 = vmatprep.subr.mxu0 0.0
        %2702 = vmatpush2.msra.mxu0 0.0
        %2703 = vmatprep.subr.mxu0 0.0
        %2704 = vmatpush2.msra.mxu0 0.0
        %2705 = vmatprep.subr.mxu0 0.0
        %2706 = vmatpush2.msra.mxu0 0.0
        %2707 = vmatprep.subr.mxu0 0.0
        %2708 = vmatpush2.msra.mxu0 0.0
        %2709 = vmatprep.subr.mxu0 0.0
        %2710 = vmatpush2.msra.mxu0 0.0
        %2711 = vmatprep.subr.mxu0 0.0
        %2712 = vmatpush2.msra.mxu0 0.0
        %2713 = vmatprep.subr.mxu0 0.0
        %2714 = vmatpush2.msra.mxu0 0.0
        %2715 = vmatprep.subr.mxu0 0.0
        %2716 = vmatpush2.msra.mxu0 0.0
        %2717 = vmatprep.subr.mxu0 0.0
        %2718 = vmatpush2.msra.mxu0 0.0
        %2719 = vmatprep.subr.mxu0 0.0
        %2720 = vmatpush2.msra.mxu0 0.0
        %2721 = vmatprep.subr.mxu0 0.0
        %2722 = vmatpush2.msra.mxu0 0.0
        %2723 = vmatprep.subr.mxu0 0.0
        %2724 = vmatpush2.msra.mxu0 0.0
        %2725 = vmatprep.mubr.f32.mxu0 0.0
        %2726 = vmatmul.mubr.f32.gmra.mxu0 %v2638
        %v2727 = vpop.f32.mrf.mxu0
        %v2728 = vadd.f32 %v433, %v2727
        %v2729 = vpop.f32.mrf.mxu0
        %2730 = vmatprep.mubr.f32.mxu0 0.0
        %2731 = vmatmul.mubr.f32.gmra.mxu0 %v2641
        %v2732 = vpop.f32.mrf.mxu0
        %v2733 = vadd.f32 %v433, %v2732
        %v2734 = vpop.f32.mrf.mxu0
        %2735 = vmatprep.mubr.f32.mxu0 0.0
        %2736 = vmatmul.mubr.f32.gmra.mxu0 %v2644
        %v2737 = vpop.f32.mrf.mxu0
        %v2738 = vadd.f32 %v433, %v2737
        %v2739 = vpop.f32.mrf.mxu0
        %2740 = vmatprep.mubr.f32.mxu0 0.0
        %2741 = vmatmul.mubr.f32.gmra.mxu0 %v2647
        %v2742 = vpop.f32.mrf.mxu0
        %v2743 = vadd.f32 %v433, %v2742
        %v2744 = vpop.f32.mrf.mxu0
        %2745 = vmatprep.mubr.f32.mxu0 0.0
        %2746 = vmatmul.mubr.f32.gmra.mxu0 %v2650
        %v2747 = vpop.f32.mrf.mxu0
        %v2748 = vadd.f32 %v433, %v2747
        %v2749 = vpop.f32.mrf.mxu0
        %2750 = vmatprep.mubr.f32.mxu0 0.0
        %2751 = vmatmul.mubr.f32.gmra.mxu0 %v2653
        %v2752 = vpop.f32.mrf.mxu0
        %v2753 = vadd.f32 %v433, %v2752
        %v2754 = vpop.f32.mrf.mxu0
        %2755 = vmatprep.mubr.f32.mxu0 0.0
        %2756 = vmatmul.mubr.f32.gmra.mxu0 %v2656
        %v2757 = vpop.f32.mrf.mxu0
        %v2758 = vadd.f32 %v433, %v2757
        %v2759 = vpop.f32.mrf.mxu0
        %2760 = vmatprep.mubr.f32.mxu0 0.0
        %2761 = vmatmul.mubr.f32.gmra.mxu0 %v2659
        %v2762 = vpop.f32.mrf.mxu0
        %v2763 = vadd.f32 %v433, %v2762
        %v2764 = vpop.f32.mrf.mxu0
        %2765 = vdwg.mxu0
        %v2766 = vmax.f32 %v2728, 0.0
        %v2767 = vmax.f32 %v2733, 0.0
        %v2768 = vmax.f32 %v2738, 0.0
        %v2769 = vmax.f32 %v2743, 0.0
        %v2770 = vmax.f32 %v2748, 0.0
        %v2771 = vmax.f32 %v2753, 0.0
        %v2772 = vmax.f32 %v2758, 0.0
        %v2773 = vmax.f32 %v2763, 0.0
        %v2775 = vsel %vm678, %v2766, 0
        %v2778 = vsel %vm678, %v2767, 0
        %v2781 = vsel %vm678, %v2768, 0
        %v2784 = vsel %vm678, %v2769, 0
        %v2787 = vsel %vm678, %v2770, 0
        %v2790 = vsel %vm678, %v2771, 0
        %v2793 = vsel %vm678, %v2772, 0
        %v2796 = vsel %vm678, %v2773, 0
        %2798 = vmatprep.subr.mxu0 0.0
        %2799 = vmatpush1.msra.mxu0 0.0
        %2800 = vmatprep.subr.mxu0 0.0
        %2801 = vmatpush1.msra.mxu0 0.0
        %2802 = vmatprep.subr.mxu0 0.0
        %2803 = vmatpush1.msra.mxu0 0.0
        %2804 = vmatprep.subr.mxu0 0.0
        %2805 = vmatpush1.msra.mxu0 0.0
        %2806 = vmatprep.subr.mxu0 0.0
        %2807 = vmatpush1.msra.mxu0 0.0
        %2808 = vmatprep.subr.mxu0 0.0
        %2809 = vmatpush1.msra.mxu0 0.0
        %2810 = vmatprep.subr.mxu0 0.0
        %2811 = vmatpush1.msra.mxu0 0.0
        %2812 = vmatprep.subr.mxu0 0.0
        %2813 = vmatpush1.msra.mxu0 0.0
        %2814 = vmatprep.subr.mxu0 0.0
        %2815 = vmatpush1.msra.mxu0 %v839
        %2816 = vmatprep.subr.mxu0 0.0
        %2817 = vmatpush1.msra.mxu0 %v837
        %2818 = vmatprep.subr.mxu0 0.0
        %2819 = vmatpush1.msra.mxu0 %v835
        %2820 = vmatprep.subr.mxu0 0.0
        %2821 = vmatpush1.msra.mxu0 %v833
        %2822 = vmatprep.subr.mxu0 0.0
        %2823 = vmatpush1.msra.mxu0 %v831
        %2824 = vmatprep.subr.mxu0 0.0
        %2825 = vmatpush1.msra.mxu0 %v829
        %2826 = vmatprep.subr.mxu0 0.0
        %2827 = vmatpush1.msra.mxu0 %v827
        %2828 = vmatprep.subr.mxu0 0.0
        %2829 = vmatpush1.msra.mxu0 %v825
        %2830 = vmatprep.subr.mxu0 0.0
        %2831 = vmatpush2.msra.mxu0 0.0
        %2832 = vmatprep.subr.mxu0 0.0
        %2833 = vmatpush2.msra.mxu0 0.0
        %2834 = vmatprep.subr.mxu0 0.0
        %2835 = vmatpush2.msra.mxu0 0.0
        %2836 = vmatprep.subr.mxu0 0.0
        %2837 = vmatpush2.msra.mxu0 0.0
        %2838 = vmatprep.subr.mxu0 0.0
        %2839 = vmatpush2.msra.mxu0 0.0
        %2840 = vmatprep.subr.mxu0 0.0
        %2841 = vmatpush2.msra.mxu0 0.0
        %2842 = vmatprep.subr.mxu0 0.0
        %2843 = vmatpush2.msra.mxu0 0.0
        %2844 = vmatprep.subr.mxu0 0.0
        %2845 = vmatpush2.msra.mxu0 0.0
        %2846 = vmatprep.subr.mxu0 0.0
        %2847 = vmatpush2.msra.mxu0 0.0
        %2848 = vmatprep.subr.mxu0 0.0
        %2849 = vmatpush2.msra.mxu0 0.0
        %2850 = vmatprep.subr.mxu0 0.0
        %2851 = vmatpush2.msra.mxu0 0.0
        %2852 = vmatprep.subr.mxu0 0.0
        %2853 = vmatpush2.msra.mxu0 0.0
        %2854 = vmatprep.subr.mxu0 0.0
        %2855 = vmatpush2.msra.mxu0 0.0
        %2856 = vmatprep.subr.mxu0 0.0
        %2857 = vmatpush2.msra.mxu0 0.0
        %2858 = vmatprep.subr.mxu0 0.0
        %2859 = vmatpush2.msra.mxu0 0.0
        %2860 = vmatprep.subr.mxu0 0.0
        %2861 = vmatpush2.msra.mxu0 0.0
        %2862 = vmatprep.mubr.f32.mxu0 0.0
        %2863 = vmatmul.mubr.f32.gmra.mxu0 %v2775
        %v2864 = vpop.f32.mrf.mxu0
        %v2865 = vadd.f32 %v438, %v2864
        %v2866 = vpop.f32.mrf.mxu0
        %2867 = vmatprep.mubr.f32.mxu0 0.0
        %2868 = vmatmul.mubr.f32.gmra.mxu0 %v2778
        %v2869 = vpop.f32.mrf.mxu0
        %v2870 = vadd.f32 %v438, %v2869
        %v2871 = vpop.f32.mrf.mxu0
        %2872 = vmatprep.mubr.f32.mxu0 0.0
        %2873 = vmatmul.mubr.f32.gmra.mxu0 %v2781
        %v2874 = vpop.f32.mrf.mxu0
        %v2875 = vadd.f32 %v438, %v2874
        %v2876 = vpop.f32.mrf.mxu0
        %2877 = vmatprep.mubr.f32.mxu0 0.0
        %2878 = vmatmul.mubr.f32.gmra.mxu0 %v2784
        %v2879 = vpop.f32.mrf.mxu0
        %v2880 = vadd.f32 %v438, %v2879
        %v2881 = vpop.f32.mrf.mxu0
        %2882 = vmatprep.mubr.f32.mxu0 0.0
        %2883 = vmatmul.mubr.f32.gmra.mxu0 %v2787
        %v2884 = vpop.f32.mrf.mxu0
        %v2885 = vadd.f32 %v438, %v2884
        %v2886 = vpop.f32.mrf.mxu0
        %2887 = vmatprep.mubr.f32.mxu0 0.0
        %2888 = vmatmul.mubr.f32.gmra.mxu0 %v2790
        %v2889 = vpop.f32.mrf.mxu0
        %v2890 = vadd.f32 %v438, %v2889
        %v2891 = vpop.f32.mrf.mxu0
        %2892 = vmatprep.mubr.f32.mxu0 0.0
        %2893 = vmatmul.mubr.f32.gmra.mxu0 %v2793
        %v2894 = vpop.f32.mrf.mxu0
        %v2895 = vadd.f32 %v438, %v2894
        %v2896 = vpop.f32.mrf.mxu0
        %2897 = vmatprep.mubr.f32.mxu0 0.0
        %2898 = vmatmul.mubr.f32.gmra.mxu0 %v2796
        %v2899 = vpop.f32.mrf.mxu0
        %v2900 = vadd.f32 %v438, %v2899
        %v2901 = vpop.f32.mrf.mxu0
        %2902 = vdwg.mxu0
        %2903 = vmatprep.subr.mxu0 0.0
        %2904 = vmatpush1.msra.mxu0 0.0
        %2905 = vmatprep.subr.mxu0 0.0
        %2906 = vmatpush1.msra.mxu0 0.0
        %2907 = vmatprep.subr.mxu0 0.0
        %2908 = vmatpush1.msra.mxu0 0.0
        %2909 = vmatprep.subr.mxu0 0.0
        %2910 = vmatpush1.msra.mxu0 0.0
        %2911 = vmatprep.subr.mxu0 0.0
        %2912 = vmatpush1.msra.mxu0 0.0
        %2913 = vmatprep.subr.mxu0 0.0
        %2914 = vmatpush1.msra.mxu0 0.0
        %2915 = vmatprep.subr.mxu0 0.0
        %2916 = vmatpush1.msra.mxu0 0.0
        %2917 = vmatprep.subr.mxu0 0.0
        %2918 = vmatpush1.msra.mxu0 0.0
        %2919 = vmatprep.subr.mxu0 0.0
        %2920 = vmatpush1.msra.mxu0 %v2900
        %2921 = vmatprep.subr.mxu0 0.0
        %2922 = vmatpush1.msra.mxu0 %v2895
        %2923 = vmatprep.subr.mxu0 0.0
        %2924 = vmatpush1.msra.mxu0 %v2890
        %2925 = vmatprep.subr.mxu0 0.0
        %2926 = vmatpush1.msra.mxu0 %v2885
        %2927 = vmatprep.subr.mxu0 0.0
        %2928 = vmatpush1.msra.mxu0 %v2880
        %2929 = vmatprep.subr.mxu0 0.0
        %2930 = vmatpush1.msra.mxu0 %v2875
        %2931 = vmatprep.subr.mxu0 0.0
        %2932 = vmatpush1.msra.mxu0 %v2870
        %2933 = vmatprep.subr.mxu0 0.0
        %2934 = vmatpush1.msra.mxu0 %v2865
        %2935 = vmatprep.subr.mxu0 0.0
        %2936 = vmatpush2.msra.mxu0 0.0
        %2937 = vmatprep.subr.mxu0 0.0
        %2938 = vmatpush2.msra.mxu0 0.0
        %2939 = vmatprep.subr.mxu0 0.0
        %2940 = vmatpush2.msra.mxu0 0.0
        %2941 = vmatprep.subr.mxu0 0.0
        %2942 = vmatpush2.msra.mxu0 0.0
        %2943 = vmatprep.subr.mxu0 0.0
        %2944 = vmatpush2.msra.mxu0 0.0
        %2945 = vmatprep.subr.mxu0 0.0
        %2946 = vmatpush2.msra.mxu0 0.0
        %2947 = vmatprep.subr.mxu0 0.0
        %2948 = vmatpush2.msra.mxu0 0.0
        %2949 = vmatprep.subr.mxu0 0.0
        %2950 = vmatpush2.msra.mxu0 0.0
        %2951 = vmatprep.subr.mxu0 0.0
        %2952 = vmatpush2.msra.mxu0 0.0
        %2953 = vmatprep.subr.mxu0 0.0
        %2954 = vmatpush2.msra.mxu0 0.0
        %2955 = vmatprep.subr.mxu0 0.0
        %2956 = vmatpush2.msra.mxu0 0.0
        %2957 = vmatprep.subr.mxu0 0.0
        %2958 = vmatpush2.msra.mxu0 0.0
        %2959 = vmatprep.subr.mxu0 0.0
        %2960 = vmatpush2.msra.mxu0 0.0
        %2961 = vmatprep.subr.mxu0 0.0
        %2962 = vmatpush2.msra.mxu0 0.0
        %2963 = vmatprep.subr.mxu0 0.0
        %2964 = vmatpush2.msra.mxu0 0.0
        %2965 = vmatprep.subr.mxu0 0.0
        %2966 = vmatpush2.msra.mxu0 0.0
        %2967 = vmatprep.mubr.f32.mxu0 0.0
        %2968 = vmatmul.mubr.f32.gmra.mxu0 %v978
        %v2969 = vpop.f32.mrf.mxu0
        %v2970 = vadd.f32 0.0, %v2969
        %v2971 = vpop.f32.mrf.mxu0
        %2972 = vdwg.mxu0
        %v2973 = vsel %vm462, %v2970, %v2444
        %v2975 = vsel %vm678, %v2973, 0
        %2977 = vmatprep.subr.mxu0 0.0
        %2978 = vmatpush1.msra.mxu0 0.0
        %2979 = vmatprep.subr.mxu0 0.0
        %2980 = vmatpush1.msra.mxu0 0.0
        %2981 = vmatprep.subr.mxu0 0.0
        %2982 = vmatpush1.msra.mxu0 0.0
        %2983 = vmatprep.subr.mxu0 0.0
        %2984 = vmatpush1.msra.mxu0 0.0
        %2985 = vmatprep.subr.mxu0 0.0
        %2986 = vmatpush1.msra.mxu0 0.0
        %2987 = vmatprep.subr.mxu0 0.0
        %2988 = vmatpush1.msra.mxu0 0.0
        %2989 = vmatprep.subr.mxu0 0.0
        %2990 = vmatpush1.msra.mxu0 0.0
        %2991 = vmatprep.subr.mxu0 0.0
        %2992 = vmatpush1.msra.mxu0 0.0
        %2993 = vmatprep.subr.mxu0 0.0
        %2994 = vmatpush1.msra.mxu0 %v420
        %2995 = vmatprep.subr.mxu0 0.0
        %2996 = vmatpush1.msra.mxu0 %v419
        %2997 = vmatprep.subr.mxu0 0.0
        %2998 = vmatpush1.msra.mxu0 %v418
        %2999 = vmatprep.subr.mxu0 0.0
        %3000 = vmatpush1.msra.mxu0 %v417
        %3001 = vmatprep.subr.mxu0 0.0
        %3002 = vmatpush1.msra.mxu0 %v416
        %3003 = vmatprep.subr.mxu0 0.0
        %3004 = vmatpush1.msra.mxu0 %v415
        %3005 = vmatprep.subr.mxu0 0.0
        %3006 = vmatpush1.msra.mxu0 %v414
        %3007 = vmatprep.subr.mxu0 0.0
        %3008 = vmatpush1.msra.mxu0 %v413
        %3009 = vmatprep.subr.mxu0 0.0
        %3010 = vmatpush2.msra.mxu0 0.0
        %3011 = vmatprep.subr.mxu0 0.0
        %3012 = vmatpush2.msra.mxu0 0.0
        %3013 = vmatprep.subr.mxu0 0.0
        %3014 = vmatpush2.msra.mxu0 0.0
        %3015 = vmatprep.subr.mxu0 0.0
        %3016 = vmatpush2.msra.mxu0 0.0
        %3017 = vmatprep.subr.mxu0 0.0
        %3018 = vmatpush2.msra.mxu0 0.0
        %3019 = vmatprep.subr.mxu0 0.0
        %3020 = vmatpush2.msra.mxu0 0.0
        %3021 = vmatprep.subr.mxu0 0.0
        %3022 = vmatpush2.msra.mxu0 0.0
        %3023 = vmatprep.subr.mxu0 0.0
        %3024 = vmatpush2.msra.mxu0 0.0
        %3025 = vmatprep.subr.mxu0 0.0
        %3026 = vmatpush2.msra.mxu0 0.0
        %3027 = vmatprep.subr.mxu0 0.0
        %3028 = vmatpush2.msra.mxu0 0.0
        %3029 = vmatprep.subr.mxu0 0.0
        %3030 = vmatpush2.msra.mxu0 0.0
        %3031 = vmatprep.subr.mxu0 0.0
        %3032 = vmatpush2.msra.mxu0 0.0
        %3033 = vmatprep.subr.mxu0 0.0
        %3034 = vmatpush2.msra.mxu0 0.0
        %3035 = vmatprep.subr.mxu0 0.0
        %3036 = vmatpush2.msra.mxu0 0.0
        %3037 = vmatprep.subr.mxu0 0.0
        %3038 = vmatpush2.msra.mxu0 0.0
        %3039 = vmatprep.subr.mxu0 0.0
        %3040 = vmatpush2.msra.mxu0 0.0
        %3041 = vmatprep.mubr.f32.mxu0 0.0
        %3042 = vmatmul.mubr.f32.gmra.mxu0 %v2975
        %v3043 = vpop.f32.mrf.mxu0
        %v3044 = vadd.f32 0.0, %v3043
        %v3045 = vpop.f32.mrf.mxu0
        %3046 = vdwg.mxu0
        %v3047 = vadd.f32 %v3044, %v443
        %v3048 = vxor.u32 %v3047, 2147483648
        %v3049 = vmul.f32 %v3048, 1.442695
        %v3050 = vpow.pop %v3049
        %v3051 = vadd.f32 %v3050, 1.0
        %v3052 = vrcp.pop %v3051
        %v3053 = vmul.f32 1.0, %v3052
        %v3054 = vadd.f32 %v3044, %v1133
        %v3055 = vxor.u32 %v3054, 2147483648
        %v3056 = vmul.f32 %v3055, 1.442695
        %v3057 = vpow.pop %v3056
        %v3058 = vadd.f32 %v3057, 1.0
        %v3059 = vrcp.pop %v3058
        %v3060 = vmul.f32 1.0, %v3059
        %v3061 = vadd.f32 %v3044, %v1144
        %v3062 = vadd.f32 %v3044, %v1149
        %3064 = vrot.lane.b32.xlu0 %v3062, 32
        %v3065 = vpop.permute.xlu0 %3064
        %v3067 = vmul.f32 %v3053, %v3065
        %3069 = vrot.lane.b32.xlu0 %v3067, 64
        %v3070 = vpop.permute.xlu0 %3069
        %v3072 = vadd.f32 %v3061, %v3070
        %v3073 = vtanh.pop %v3072
        %v3074 = vsub.f32 1.0, %v3060
        %3076 = vrot.lane.b32.xlu0 %v3073, 96
        %v3077 = vpop.permute.xlu0 %3076
        %v3079 = vmul.f32 %v3074, %v3077
        %v3080 = vmul.f32 %v3060, %v2444
        %v3081 = vadd.f32 %v3079, %v3080
        %3083 = vrot.lane.b32.xlu0 %v3081, 96
        %v3084 = vpop.permute.xlu0 %3083
        %v3085 = vsel %vm462, %v3084, 0
        %3087 = vmatprep.subr.mxu0 0.0
        %3088 = vmatpush1.msra.mxu0 0.0
        %3089 = vmatprep.subr.mxu0 0.0
        %3090 = vmatpush1.msra.mxu0 0.0
        %3091 = vmatprep.subr.mxu0 0.0
        %3092 = vmatpush1.msra.mxu0 0.0
        %3093 = vmatprep.subr.mxu0 0.0
        %3094 = vmatpush1.msra.mxu0 0.0
        %3095 = vmatprep.subr.mxu0 0.0
        %3096 = vmatpush1.msra.mxu0 0.0
        %3097 = vmatprep.subr.mxu0 0.0
        %3098 = vmatpush1.msra.mxu0 0.0
        %3099 = vmatprep.subr.mxu0 0.0
        %3100 = vmatpush1.msra.mxu0 0.0
        %3101 = vmatprep.subr.mxu0 0.0
        %3102 = vmatpush1.msra.mxu0 0.0
        %3103 = vmatprep.subr.mxu0 0.0
        %3104 = vmatpush1.msra.mxu0 0.0
        %3105 = vmatprep.subr.mxu0 0.0
        %3106 = vmatpush1.msra.mxu0 0.0
        %3107 = vmatprep.subr.mxu0 0.0
        %3108 = vmatpush1.msra.mxu0 0.0
        %3109 = vmatprep.subr.mxu0 0.0
        %3110 = vmatpush1.msra.mxu0 0.0
        %3111 = vmatprep.subr.mxu0 0.0
        %3112 = vmatpush1.msra.mxu0 %v400
        %3113 = vmatprep.subr.mxu0 0.0
        %3114 = vmatpush1.msra.mxu0 %v399
        %3115 = vmatprep.subr.mxu0 0.0
        %3116 = vmatpush1.msra.mxu0 %v398
        %3117 = vmatprep.subr.mxu0 0.0
        %3118 = vmatpush1.msra.mxu0 %v397
        %3119 = vmatprep.subr.mxu0 0.0
        %3120 = vmatpush2.msra.mxu0 0.0
        %3121 = vmatprep.subr.mxu0 0.0
        %3122 = vmatpush2.msra.mxu0 0.0
        %3123 = vmatprep.subr.mxu0 0.0
        %3124 = vmatpush2.msra.mxu0 0.0
        %3125 = vmatprep.subr.mxu0 0.0
        %3126 = vmatpush2.msra.mxu0 0.0
        %3127 = vmatprep.subr.mxu0 0.0
        %3128 = vmatpush2.msra.mxu0 0.0
        %3129 = vmatprep.subr.mxu0 0.0
        %3130 = vmatpush2.msra.mxu0 0.0
        %3131 = vmatprep.subr.mxu0 0.0
        %3132 = vmatpush2.msra.mxu0 0.0
        %3133 = vmatprep.subr.mxu0 0.0
        %3134 = vmatpush2.msra.mxu0 0.0
        %3135 = vmatprep.subr.mxu0 0.0
        %3136 = vmatpush2.msra.mxu0 0.0
        %3137 = vmatprep.subr.mxu0 0.0
        %3138 = vmatpush2.msra.mxu0 0.0
        %3139 = vmatprep.subr.mxu0 0.0
        %3140 = vmatpush2.msra.mxu0 0.0
        %3141 = vmatprep.subr.mxu0 0.0
        %3142 = vmatpush2.msra.mxu0 0.0
        %3143 = vmatprep.subr.mxu0 0.0
        %3144 = vmatpush2.msra.mxu0 0.0
        %3145 = vmatprep.subr.mxu0 0.0
        %3146 = vmatpush2.msra.mxu0 0.0
        %3147 = vmatprep.subr.mxu0 0.0
        %3148 = vmatpush2.msra.mxu0 0.0
        %3149 = vmatprep.subr.mxu0 0.0
        %3150 = vmatpush2.msra.mxu0 0.0
        %3151 = vmatprep.mubr.f32.mxu0 0.0
        %3152 = vmatmul.mubr.f32.gmra.mxu0 %v3085
        %v3153 = vpop.f32.mrf.mxu0
        %v3154 = vadd.f32 0.0, %v3153
        %v3155 = vpop.f32.mrf.mxu0
        %3156 = vdwg.mxu0
        %3158 = vrot.lane.b32.xlu0 %v3154, 64
        %v3159 = vpop.permute.xlu0 %3158
        %3161 = vmatprep.subr.mxu0 0.0
        %3162 = vmatpush1.msra.mxu0 0.0
        %3163 = vmatprep.subr.mxu0 0.0
        %3164 = vmatpush1.msra.mxu0 0.0
        %3165 = vmatprep.subr.mxu0 0.0
        %3166 = vmatpush1.msra.mxu0 0.0
        %3167 = vmatprep.subr.mxu0 0.0
        %3168 = vmatpush1.msra.mxu0 0.0
        %3169 = vmatprep.subr.mxu0 0.0
        %3170 = vmatpush1.msra.mxu0 0.0
        %3171 = vmatprep.subr.mxu0 0.0
        %3172 = vmatpush1.msra.mxu0 0.0
        %3173 = vmatprep.subr.mxu0 0.0
        %3174 = vmatpush1.msra.mxu0 0.0
        %3175 = vmatprep.subr.mxu0 0.0
        %3176 = vmatpush1.msra.mxu0 0.0
        %3177 = vmatprep.subr.mxu0 0.0
        %3178 = vmatpush1.msra.mxu0 0.0
        %3179 = vmatprep.subr.mxu0 0.0
        %3180 = vmatpush1.msra.mxu0 0.0
        %3181 = vmatprep.subr.mxu0 0.0
        %3182 = vmatpush1.msra.mxu0 0.0
        %3183 = vmatprep.subr.mxu0 0.0
        %3184 = vmatpush1.msra.mxu0 0.0
        %3185 = vmatprep.subr.mxu0 0.0
        %3186 = vmatpush1.msra.mxu0 0.0
        %3187 = vmatprep.subr.mxu0 0.0
        %3188 = vmatpush1.msra.mxu0 0.0
        %3189 = vmatprep.subr.mxu0 0.0
        %3190 = vmatpush1.msra.mxu0 %v3159
        %3191 = vmatprep.subr.mxu0 0.0
        %3192 = vmatpush1.msra.mxu0 %v3154
        %3193 = vmatprep.subr.mxu0 0.0
        %3194 = vmatpush2.msra.mxu0 0.0
        %3195 = vmatprep.subr.mxu0 0.0
        %3196 = vmatpush2.msra.mxu0 0.0
        %3197 = vmatprep.subr.mxu0 0.0
        %3198 = vmatpush2.msra.mxu0 0.0
        %3199 = vmatprep.subr.mxu0 0.0
        %3200 = vmatpush2.msra.mxu0 0.0
        %3201 = vmatprep.subr.mxu0 0.0
        %3202 = vmatpush2.msra.mxu0 0.0
        %3203 = vmatprep.subr.mxu0 0.0
        %3204 = vmatpush2.msra.mxu0 0.0
        %3205 = vmatprep.subr.mxu0 0.0
        %3206 = vmatpush2.msra.mxu0 0.0
        %3207 = vmatprep.subr.mxu0 0.0
        %3208 = vmatpush2.msra.mxu0 0.0
        %3209 = vmatprep.subr.mxu0 0.0
        %3210 = vmatpush2.msra.mxu0 0.0
        %3211 = vmatprep.subr.mxu0 0.0
        %3212 = vmatpush2.msra.mxu0 0.0
        %3213 = vmatprep.subr.mxu0 0.0
        %3214 = vmatpush2.msra.mxu0 0.0
        %3215 = vmatprep.subr.mxu0 0.0
        %3216 = vmatpush2.msra.mxu0 0.0
        %3217 = vmatprep.subr.mxu0 0.0
        %3218 = vmatpush2.msra.mxu0 0.0
        %3219 = vmatprep.subr.mxu0 0.0
        %3220 = vmatpush2.msra.mxu0 0.0
        %3221 = vmatprep.subr.mxu0 0.0
        %3222 = vmatpush2.msra.mxu0 0.0
        %3223 = vmatprep.subr.mxu0 0.0
        %3224 = vmatpush2.msra.mxu0 0.0
        %3225 = vmatprep.mubr.f32.mxu0 0.0
        %3226 = vmatmul.mubr.f32.gmra.mxu0 %v542
        %v3227 = vpop.f32.mrf.mxu0
        %v3228 = vadd.f32 %v380, %v3227
        %v3229 = vpop.f32.mrf.mxu0
        %3230 = vmatprep.mubr.f32.mxu0 0.0
        %3231 = vmatmul.mubr.f32.gmra.mxu0 %v545
        %v3232 = vpop.f32.mrf.mxu0
        %v3233 = vadd.f32 %v381, %v3232
        %v3234 = vpop.f32.mrf.mxu0
        %3235 = vmatprep.mubr.f32.mxu0 0.0
        %3236 = vmatmul.mubr.f32.gmra.mxu0 %v548
        %v3237 = vpop.f32.mrf.mxu0
        %v3238 = vadd.f32 %v382, %v3237
        %v3239 = vpop.f32.mrf.mxu0
        %3240 = vmatprep.mubr.f32.mxu0 0.0
        %3241 = vmatmul.mubr.f32.gmra.mxu0 %v551
        %v3242 = vpop.f32.mrf.mxu0
        %v3243 = vadd.f32 %v383, %v3242
        %v3244 = vpop.f32.mrf.mxu0
        %3245 = vmatprep.mubr.f32.mxu0 0.0
        %3246 = vmatmul.mubr.f32.gmra.mxu0 %v554
        %v3247 = vpop.f32.mrf.mxu0
        %v3248 = vadd.f32 %v384, %v3247
        %v3249 = vpop.f32.mrf.mxu0
        %3250 = vmatprep.mubr.f32.mxu0 0.0
        %3251 = vmatmul.mubr.f32.gmra.mxu0 %v557
        %v3252 = vpop.f32.mrf.mxu0
        %v3253 = vadd.f32 %v385, %v3252
        %v3254 = vpop.f32.mrf.mxu0
        %3255 = vmatprep.mubr.f32.mxu0 0.0
        %3256 = vmatmul.mubr.f32.gmra.mxu0 %v560
        %v3257 = vpop.f32.mrf.mxu0
        %v3258 = vadd.f32 %v386, %v3257
        %v3259 = vpop.f32.mrf.mxu0
        %3260 = vmatprep.mubr.f32.mxu0 0.0
        %3261 = vmatmul.mubr.f32.gmra.mxu0 %v563
        %v3262 = vpop.f32.mrf.mxu0
        %v3263 = vadd.f32 %v387, %v3262
        %v3264 = vpop.f32.mrf.mxu0
        %3265 = vdwg.mxu0
        %v3266 = vmax.f32 %v3228, 0.0
        %v3267 = vmax.f32 %v3233, 0.0
        %v3268 = vmax.f32 %v3238, 0.0
        %v3269 = vmax.f32 %v3243, 0.0
        %v3270 = vmax.f32 %v3248, 0.0
        %v3271 = vmax.f32 %v3253, 0.0
        %v3272 = vmax.f32 %v3258, 0.0
        %v3273 = vmax.f32 %v3263, 0.0
        %v3275 = vsel %vm678, %v3266, 0
        %v3278 = vsel %vm678, %v3267, 0
        %v3281 = vsel %vm678, %v3268, 0
        %v3284 = vsel %vm678, %v3269, 0
        %v3287 = vsel %vm678, %v3270, 0
        %v3290 = vsel %vm678, %v3271, 0
        %v3293 = vsel %vm678, %v3272, 0
        %v3296 = vsel %vm678, %v3273, 0
        %3298 = vmatprep.subr.mxu0 0.0
        %3299 = vmatpush1.msra.mxu0 0.0
        %3300 = vmatprep.subr.mxu0 0.0
        %3301 = vmatpush1.msra.mxu0 0.0
        %3302 = vmatprep.subr.mxu0 0.0
        %3303 = vmatpush1.msra.mxu0 0.0
        %3304 = vmatprep.subr.mxu0 0.0
        %3305 = vmatpush1.msra.mxu0 0.0
        %3306 = vmatprep.subr.mxu0 0.0
        %3307 = vmatpush1.msra.mxu0 0.0
        %3308 = vmatprep.subr.mxu0 0.0
        %3309 = vmatpush1.msra.mxu0 0.0
        %3310 = vmatprep.subr.mxu0 0.0
        %3311 = vmatpush1.msra.mxu0 0.0
        %3312 = vmatprep.subr.mxu0 0.0
        %3313 = vmatpush1.msra.mxu0 0.0
        %3314 = vmatprep.subr.mxu0 0.0
        %3315 = vmatpush1.msra.mxu0 %v412
        %3316 = vmatprep.subr.mxu0 0.0
        %3317 = vmatpush1.msra.mxu0 %v411
        %3318 = vmatprep.subr.mxu0 0.0
        %3319 = vmatpush1.msra.mxu0 %v410
        %3320 = vmatprep.subr.mxu0 0.0
        %3321 = vmatpush1.msra.mxu0 %v409
        %3322 = vmatprep.subr.mxu0 0.0
        %3323 = vmatpush1.msra.mxu0 %v408
        %3324 = vmatprep.subr.mxu0 0.0
        %3325 = vmatpush1.msra.mxu0 %v407
        %3326 = vmatprep.subr.mxu0 0.0
        %3327 = vmatpush1.msra.mxu0 %v406
        %3328 = vmatprep.subr.mxu0 0.0
        %3329 = vmatpush1.msra.mxu0 %v405
        %3330 = vmatprep.subr.mxu0 0.0
        %3331 = vmatpush2.msra.mxu0 0.0
        %3332 = vmatprep.subr.mxu0 0.0
        %3333 = vmatpush2.msra.mxu0 0.0
        %3334 = vmatprep.subr.mxu0 0.0
        %3335 = vmatpush2.msra.mxu0 0.0
        %3336 = vmatprep.subr.mxu0 0.0
        %3337 = vmatpush2.msra.mxu0 0.0
        %3338 = vmatprep.subr.mxu0 0.0
        %3339 = vmatpush2.msra.mxu0 0.0
        %3340 = vmatprep.subr.mxu0 0.0
        %3341 = vmatpush2.msra.mxu0 0.0
        %3342 = vmatprep.subr.mxu0 0.0
        %3343 = vmatpush2.msra.mxu0 0.0
        %3344 = vmatprep.subr.mxu0 0.0
        %3345 = vmatpush2.msra.mxu0 0.0
        %3346 = vmatprep.subr.mxu0 0.0
        %3347 = vmatpush2.msra.mxu0 0.0
        %3348 = vmatprep.subr.mxu0 0.0
        %3349 = vmatpush2.msra.mxu0 0.0
        %3350 = vmatprep.subr.mxu0 0.0
        %3351 = vmatpush2.msra.mxu0 0.0
        %3352 = vmatprep.subr.mxu0 0.0
        %3353 = vmatpush2.msra.mxu0 0.0
        %3354 = vmatprep.subr.mxu0 0.0
        %3355 = vmatpush2.msra.mxu0 0.0
        %3356 = vmatprep.subr.mxu0 0.0
        %3357 = vmatpush2.msra.mxu0 0.0
        %3358 = vmatprep.subr.mxu0 0.0
        %3359 = vmatpush2.msra.mxu0 0.0
        %3360 = vmatprep.subr.mxu0 0.0
        %3361 = vmatpush2.msra.mxu0 0.0
        %3362 = vmatprep.mubr.f32.mxu0 0.0
        %3363 = vmatmul.mubr.f32.gmra.mxu0 %v3275
        %v3364 = vpop.f32.mrf.mxu0
        %v3365 = vadd.f32 %v433, %v3364
        %v3366 = vpop.f32.mrf.mxu0
        %3367 = vmatprep.mubr.f32.mxu0 0.0
        %3368 = vmatmul.mubr.f32.gmra.mxu0 %v3278
        %v3369 = vpop.f32.mrf.mxu0
        %v3370 = vadd.f32 %v433, %v3369
        %v3371 = vpop.f32.mrf.mxu0
        %3372 = vmatprep.mubr.f32.mxu0 0.0
        %3373 = vmatmul.mubr.f32.gmra.mxu0 %v3281
        %v3374 = vpop.f32.mrf.mxu0
        %v3375 = vadd.f32 %v433, %v3374
        %v3376 = vpop.f32.mrf.mxu0
        %3377 = vmatprep.mubr.f32.mxu0 0.0
        %3378 = vmatmul.mubr.f32.gmra.mxu0 %v3284
        %v3379 = vpop.f32.mrf.mxu0
        %v3380 = vadd.f32 %v433, %v3379
        %v3381 = vpop.f32.mrf.mxu0
        %3382 = vmatprep.mubr.f32.mxu0 0.0
        %3383 = vmatmul.mubr.f32.gmra.mxu0 %v3287
        %v3384 = vpop.f32.mrf.mxu0
        %v3385 = vadd.f32 %v433, %v3384
        %v3386 = vpop.f32.mrf.mxu0
        %3387 = vmatprep.mubr.f32.mxu0 0.0
        %3388 = vmatmul.mubr.f32.gmra.mxu0 %v3290
        %v3389 = vpop.f32.mrf.mxu0
        %v3390 = vadd.f32 %v433, %v3389
        %v3391 = vpop.f32.mrf.mxu0
        %3392 = vmatprep.mubr.f32.mxu0 0.0
        %3393 = vmatmul.mubr.f32.gmra.mxu0 %v3293
        %v3394 = vpop.f32.mrf.mxu0
        %v3395 = vadd.f32 %v433, %v3394
        %v3396 = vpop.f32.mrf.mxu0
        %3397 = vmatprep.mubr.f32.mxu0 0.0
        %3398 = vmatmul.mubr.f32.gmra.mxu0 %v3296
        %v3399 = vpop.f32.mrf.mxu0
        %v3400 = vadd.f32 %v433, %v3399
        %v3401 = vpop.f32.mrf.mxu0
        %3402 = vdwg.mxu0
        %v3403 = vmax.f32 %v3365, 0.0
        %v3404 = vmax.f32 %v3370, 0.0
        %v3405 = vmax.f32 %v3375, 0.0
        %v3406 = vmax.f32 %v3380, 0.0
        %v3407 = vmax.f32 %v3385, 0.0
        %v3408 = vmax.f32 %v3390, 0.0
        %v3409 = vmax.f32 %v3395, 0.0
        %v3410 = vmax.f32 %v3400, 0.0
        %v3412 = vsel %vm678, %v3403, 0
        %v3415 = vsel %vm678, %v3404, 0
        %v3418 = vsel %vm678, %v3405, 0
        %v3421 = vsel %vm678, %v3406, 0
        %v3424 = vsel %vm678, %v3407, 0
        %v3427 = vsel %vm678, %v3408, 0
        %v3430 = vsel %vm678, %v3409, 0
        %v3433 = vsel %vm678, %v3410, 0
        %3435 = vmatprep.subr.mxu0 0.0
        %3436 = vmatpush1.msra.mxu0 0.0
        %3437 = vmatprep.subr.mxu0 0.0
        %3438 = vmatpush1.msra.mxu0 0.0
        %3439 = vmatprep.subr.mxu0 0.0
        %3440 = vmatpush1.msra.mxu0 0.0
        %3441 = vmatprep.subr.mxu0 0.0
        %3442 = vmatpush1.msra.mxu0 0.0
        %3443 = vmatprep.subr.mxu0 0.0
        %3444 = vmatpush1.msra.mxu0 0.0
        %3445 = vmatprep.subr.mxu0 0.0
        %3446 = vmatpush1.msra.mxu0 0.0
        %3447 = vmatprep.subr.mxu0 0.0
        %3448 = vmatpush1.msra.mxu0 0.0
        %3449 = vmatprep.subr.mxu0 0.0
        %3450 = vmatpush1.msra.mxu0 0.0
        %3451 = vmatprep.subr.mxu0 0.0
        %3452 = vmatpush1.msra.mxu0 %v839
        %3453 = vmatprep.subr.mxu0 0.0
        %3454 = vmatpush1.msra.mxu0 %v837
        %3455 = vmatprep.subr.mxu0 0.0
        %3456 = vmatpush1.msra.mxu0 %v835
        %3457 = vmatprep.subr.mxu0 0.0
        %3458 = vmatpush1.msra.mxu0 %v833
        %3459 = vmatprep.subr.mxu0 0.0
        %3460 = vmatpush1.msra.mxu0 %v831
        %3461 = vmatprep.subr.mxu0 0.0
        %3462 = vmatpush1.msra.mxu0 %v829
        %3463 = vmatprep.subr.mxu0 0.0
        %3464 = vmatpush1.msra.mxu0 %v827
        %3465 = vmatprep.subr.mxu0 0.0
        %3466 = vmatpush1.msra.mxu0 %v825
        %3467 = vmatprep.subr.mxu0 0.0
        %3468 = vmatpush2.msra.mxu0 0.0
        %3469 = vmatprep.subr.mxu0 0.0
        %3470 = vmatpush2.msra.mxu0 0.0
        %3471 = vmatprep.subr.mxu0 0.0
        %3472 = vmatpush2.msra.mxu0 0.0
        %3473 = vmatprep.subr.mxu0 0.0
        %3474 = vmatpush2.msra.mxu0 0.0
        %3475 = vmatprep.subr.mxu0 0.0
        %3476 = vmatpush2.msra.mxu0 0.0
        %3477 = vmatprep.subr.mxu0 0.0
        %3478 = vmatpush2.msra.mxu0 0.0
        %3479 = vmatprep.subr.mxu0 0.0
        %3480 = vmatpush2.msra.mxu0 0.0
        %3481 = vmatprep.subr.mxu0 0.0
        %3482 = vmatpush2.msra.mxu0 0.0
        %3483 = vmatprep.subr.mxu0 0.0
        %3484 = vmatpush2.msra.mxu0 0.0
        %3485 = vmatprep.subr.mxu0 0.0
        %3486 = vmatpush2.msra.mxu0 0.0
        %3487 = vmatprep.subr.mxu0 0.0
        %3488 = vmatpush2.msra.mxu0 0.0
        %3489 = vmatprep.subr.mxu0 0.0
        %3490 = vmatpush2.msra.mxu0 0.0
        %3491 = vmatprep.subr.mxu0 0.0
        %3492 = vmatpush2.msra.mxu0 0.0
        %3493 = vmatprep.subr.mxu0 0.0
        %3494 = vmatpush2.msra.mxu0 0.0
        %3495 = vmatprep.subr.mxu0 0.0
        %3496 = vmatpush2.msra.mxu0 0.0
        %3497 = vmatprep.subr.mxu0 0.0
        %3498 = vmatpush2.msra.mxu0 0.0
        %3499 = vmatprep.mubr.f32.mxu0 0.0
        %3500 = vmatmul.mubr.f32.gmra.mxu0 %v3412
        %v3501 = vpop.f32.mrf.mxu0
        %v3502 = vadd.f32 %v438, %v3501
        %v3503 = vpop.f32.mrf.mxu0
        %3504 = vmatprep.mubr.f32.mxu0 0.0
        %3505 = vmatmul.mubr.f32.gmra.mxu0 %v3415
        %v3506 = vpop.f32.mrf.mxu0
        %v3507 = vadd.f32 %v438, %v3506
        %v3508 = vpop.f32.mrf.mxu0
        %3509 = vmatprep.mubr.f32.mxu0 0.0
        %3510 = vmatmul.mubr.f32.gmra.mxu0 %v3418
        %v3511 = vpop.f32.mrf.mxu0
        %v3512 = vadd.f32 %v438, %v3511
        %v3513 = vpop.f32.mrf.mxu0
        %3514 = vmatprep.mubr.f32.mxu0 0.0
        %3515 = vmatmul.mubr.f32.gmra.mxu0 %v3421
        %v3516 = vpop.f32.mrf.mxu0
        %v3517 = vadd.f32 %v438, %v3516
        %v3518 = vpop.f32.mrf.mxu0
        %3519 = vmatprep.mubr.f32.mxu0 0.0
        %3520 = vmatmul.mubr.f32.gmra.mxu0 %v3424
        %v3521 = vpop.f32.mrf.mxu0
        %v3522 = vadd.f32 %v438, %v3521
        %v3523 = vpop.f32.mrf.mxu0
        %3524 = vmatprep.mubr.f32.mxu0 0.0
        %3525 = vmatmul.mubr.f32.gmra.mxu0 %v3427
        %v3526 = vpop.f32.mrf.mxu0
        %v3527 = vadd.f32 %v438, %v3526
        %v3528 = vpop.f32.mrf.mxu0
        %3529 = vmatprep.mubr.f32.mxu0 0.0
        %3530 = vmatmul.mubr.f32.gmra.mxu0 %v3430
        %v3531 = vpop.f32.mrf.mxu0
        %v3532 = vadd.f32 %v438, %v3531
        %v3533 = vpop.f32.mrf.mxu0
        %3534 = vmatprep.mubr.f32.mxu0 0.0
        %3535 = vmatmul.mubr.f32.gmra.mxu0 %v3433
        %v3536 = vpop.f32.mrf.mxu0
        %v3537 = vadd.f32 %v438, %v3536
        %v3538 = vpop.f32.mrf.mxu0
        %3539 = vdwg.mxu0
        %3540 = vmatprep.subr.mxu0 0.0
        %3541 = vmatpush1.msra.mxu0 0.0
        %3542 = vmatprep.subr.mxu0 0.0
        %3543 = vmatpush1.msra.mxu0 0.0
        %3544 = vmatprep.subr.mxu0 0.0
        %3545 = vmatpush1.msra.mxu0 0.0
        %3546 = vmatprep.subr.mxu0 0.0
        %3547 = vmatpush1.msra.mxu0 0.0
        %3548 = vmatprep.subr.mxu0 0.0
        %3549 = vmatpush1.msra.mxu0 0.0
        %3550 = vmatprep.subr.mxu0 0.0
        %3551 = vmatpush1.msra.mxu0 0.0
        %3552 = vmatprep.subr.mxu0 0.0
        %3553 = vmatpush1.msra.mxu0 0.0
        %3554 = vmatprep.subr.mxu0 0.0
        %3555 = vmatpush1.msra.mxu0 0.0
        %3556 = vmatprep.subr.mxu0 0.0
        %3557 = vmatpush1.msra.mxu0 %v3537
        %3558 = vmatprep.subr.mxu0 0.0
        %3559 = vmatpush1.msra.mxu0 %v3532
        %3560 = vmatprep.subr.mxu0 0.0
        %3561 = vmatpush1.msra.mxu0 %v3527
        %3562 = vmatprep.subr.mxu0 0.0
        %3563 = vmatpush1.msra.mxu0 %v3522
        %3564 = vmatprep.subr.mxu0 0.0
        %3565 = vmatpush1.msra.mxu0 %v3517
        %3566 = vmatprep.subr.mxu0 0.0
        %3567 = vmatpush1.msra.mxu0 %v3512
        %3568 = vmatprep.subr.mxu0 0.0
        %3569 = vmatpush1.msra.mxu0 %v3507
        %3570 = vmatprep.subr.mxu0 0.0
        %3571 = vmatpush1.msra.mxu0 %v3502
        %3572 = vmatprep.subr.mxu0 0.0
        %3573 = vmatpush2.msra.mxu0 0.0
        %3574 = vmatprep.subr.mxu0 0.0
        %3575 = vmatpush2.msra.mxu0 0.0
        %3576 = vmatprep.subr.mxu0 0.0
        %3577 = vmatpush2.msra.mxu0 0.0
        %3578 = vmatprep.subr.mxu0 0.0
        %3579 = vmatpush2.msra.mxu0 0.0
        %3580 = vmatprep.subr.mxu0 0.0
        %3581 = vmatpush2.msra.mxu0 0.0
        %3582 = vmatprep.subr.mxu0 0.0
        %3583 = vmatpush2.msra.mxu0 0.0
        %3584 = vmatprep.subr.mxu0 0.0
        %3585 = vmatpush2.msra.mxu0 0.0
        %3586 = vmatprep.subr.mxu0 0.0
        %3587 = vmatpush2.msra.mxu0 0.0
        %3588 = vmatprep.subr.mxu0 0.0
        %3589 = vmatpush2.msra.mxu0 0.0
        %3590 = vmatprep.subr.mxu0 0.0
        %3591 = vmatpush2.msra.mxu0 0.0
        %3592 = vmatprep.subr.mxu0 0.0
        %3593 = vmatpush2.msra.mxu0 0.0
        %3594 = vmatprep.subr.mxu0 0.0
        %3595 = vmatpush2.msra.mxu0 0.0
        %3596 = vmatprep.subr.mxu0 0.0
        %3597 = vmatpush2.msra.mxu0 0.0
        %3598 = vmatprep.subr.mxu0 0.0
        %3599 = vmatpush2.msra.mxu0 0.0
        %3600 = vmatprep.subr.mxu0 0.0
        %3601 = vmatpush2.msra.mxu0 0.0
        %3602 = vmatprep.subr.mxu0 0.0
        %3603 = vmatpush2.msra.mxu0 0.0
        %3604 = vmatprep.mubr.f32.mxu0 0.0
        %3605 = vmatmul.mubr.f32.gmra.mxu0 %v978
        %v3606 = vpop.f32.mrf.mxu0
        %v3607 = vadd.f32 0.0, %v3606
        %v3608 = vpop.f32.mrf.mxu0
        %3609 = vdwg.mxu0
        %v3610 = vsel %vm462, %v3607, %v3081
        %v3612 = vsel %vm678, %v3610, 0
        %3614 = vmatprep.subr.mxu0 0.0
        %3615 = vmatpush1.msra.mxu0 0.0
        %3616 = vmatprep.subr.mxu0 0.0
        %3617 = vmatpush1.msra.mxu0 0.0
        %3618 = vmatprep.subr.mxu0 0.0
        %3619 = vmatpush1.msra.mxu0 0.0
        %3620 = vmatprep.subr.mxu0 0.0
        %3621 = vmatpush1.msra.mxu0 0.0
        %3622 = vmatprep.subr.mxu0 0.0
        %3623 = vmatpush1.msra.mxu0 0.0
        %3624 = vmatprep.subr.mxu0 0.0
        %3625 = vmatpush1.msra.mxu0 0.0
        %3626 = vmatprep.subr.mxu0 0.0
        %3627 = vmatpush1.msra.mxu0 0.0
        %3628 = vmatprep.subr.mxu0 0.0
        %3629 = vmatpush1.msra.mxu0 0.0
        %3630 = vmatprep.subr.mxu0 0.0
        %3631 = vmatpush1.msra.mxu0 %v420
        %3632 = vmatprep.subr.mxu0 0.0
        %3633 = vmatpush1.msra.mxu0 %v419
        %3634 = vmatprep.subr.mxu0 0.0
        %3635 = vmatpush1.msra.mxu0 %v418
        %3636 = vmatprep.subr.mxu0 0.0
        %3637 = vmatpush1.msra.mxu0 %v417
        %3638 = vmatprep.subr.mxu0 0.0
        %3639 = vmatpush1.msra.mxu0 %v416
        %3640 = vmatprep.subr.mxu0 0.0
        %3641 = vmatpush1.msra.mxu0 %v415
        %3642 = vmatprep.subr.mxu0 0.0
        %3643 = vmatpush1.msra.mxu0 %v414
        %3644 = vmatprep.subr.mxu0 0.0
        %3645 = vmatpush1.msra.mxu0 %v413
        %3646 = vmatprep.subr.mxu0 0.0
        %3647 = vmatpush2.msra.mxu0 0.0
        %3648 = vmatprep.subr.mxu0 0.0
        %3649 = vmatpush2.msra.mxu0 0.0
        %3650 = vmatprep.subr.mxu0 0.0
        %3651 = vmatpush2.msra.mxu0 0.0
        %3652 = vmatprep.subr.mxu0 0.0
        %3653 = vmatpush2.msra.mxu0 0.0
        %3654 = vmatprep.subr.mxu0 0.0
        %3655 = vmatpush2.msra.mxu0 0.0
        %3656 = vmatprep.subr.mxu0 0.0
        %3657 = vmatpush2.msra.mxu0 0.0
        %3658 = vmatprep.subr.mxu0 0.0
        %3659 = vmatpush2.msra.mxu0 0.0
        %3660 = vmatprep.subr.mxu0 0.0
        %3661 = vmatpush2.msra.mxu0 0.0
        %3662 = vmatprep.subr.mxu0 0.0
        %3663 = vmatpush2.msra.mxu0 0.0
        %3664 = vmatprep.subr.mxu0 0.0
        %3665 = vmatpush2.msra.mxu0 0.0
        %3666 = vmatprep.subr.mxu0 0.0
        %3667 = vmatpush2.msra.mxu0 0.0
        %3668 = vmatprep.subr.mxu0 0.0
        %3669 = vmatpush2.msra.mxu0 0.0
        %3670 = vmatprep.subr.mxu0 0.0
        %3671 = vmatpush2.msra.mxu0 0.0
        %3672 = vmatprep.subr.mxu0 0.0
        %3673 = vmatpush2.msra.mxu0 0.0
        %3674 = vmatprep.subr.mxu0 0.0
        %3675 = vmatpush2.msra.mxu0 0.0
        %3676 = vmatprep.subr.mxu0 0.0
        %3677 = vmatpush2.msra.mxu0 0.0
        %3678 = vmatprep.mubr.f32.mxu0 0.0
        %3679 = vmatmul.mubr.f32.gmra.mxu0 %v3612
        %v3680 = vpop.f32.mrf.mxu0
        %v3681 = vadd.f32 0.0, %v3680
        %v3682 = vpop.f32.mrf.mxu0
        %3683 = vdwg.mxu0
        %v3684 = vadd.f32 %v3681, %v443
        %v3685 = vxor.u32 %v3684, 2147483648
        %v3686 = vmul.f32 %v3685, 1.442695
        %v3687 = vpow.pop %v3686
        %v3688 = vadd.f32 %v3687, 1.0
        %v3689 = vrcp.pop %v3688
        %v3690 = vmul.f32 1.0, %v3689
        %v3691 = vadd.f32 %v3681, %v1133
        %v3692 = vxor.u32 %v3691, 2147483648
        %v3693 = vmul.f32 %v3692, 1.442695
        %v3694 = vpow.pop %v3693
        %v3695 = vadd.f32 %v3694, 1.0
        %v3696 = vrcp.pop %v3695
        %v3697 = vmul.f32 1.0, %v3696
        %v3698 = vadd.f32 %v3681, %v1144
        %v3699 = vadd.f32 %v3681, %v1149
        %3701 = vrot.lane.b32.xlu0 %v3699, 32
        %v3702 = vpop.permute.xlu0 %3701
        %v3704 = vmul.f32 %v3690, %v3702
        %3706 = vrot.lane.b32.xlu0 %v3704, 64
        %v3707 = vpop.permute.xlu0 %3706
        %v3709 = vadd.f32 %v3698, %v3707
        %v3710 = vtanh.pop %v3709
        %v3711 = vsub.f32 1.0, %v3697
        %3713 = vrot.lane.b32.xlu0 %v3710, 96
        %v3714 = vpop.permute.xlu0 %3713
        %v3716 = vmul.f32 %v3711, %v3714
        %v3717 = vmul.f32 %v3697, %v3081
        %v3718 = vadd.f32 %v3716, %v3717
        %v3719 = vlaneseq
        %v3720 = vshrl.u32 %v3719, 7
        %v3721 = vsub.s32 0, %v3720
        %v3722 = vrot.slane %v459, %v3721
        %3724 = vrot.lane.b32.xlu0 %v3718, 96
        %v3725 = vpop.permute.xlu0 %3724
        %v3726 = vsel %vm462, %v3725, 0
        %3728 = vmatprep.subr.mxu0 0.0
        %3729 = vmatpush1.msra.mxu0 0.0
        %3730 = vmatprep.subr.mxu0 0.0
        %3731 = vmatpush1.msra.mxu0 0.0
        %3732 = vmatprep.subr.mxu0 0.0
        %3733 = vmatpush1.msra.mxu0 0.0
        %3734 = vmatprep.subr.mxu0 0.0
        %3735 = vmatpush1.msra.mxu0 0.0
        %3736 = vmatprep.subr.mxu0 0.0
        %3737 = vmatpush1.msra.mxu0 0.0
        %3738 = vmatprep.subr.mxu0 0.0
        %3739 = vmatpush1.msra.mxu0 0.0
        %3740 = vmatprep.subr.mxu0 0.0
        %3741 = vmatpush1.msra.mxu0 0.0
        %3742 = vmatprep.subr.mxu0 0.0
        %3743 = vmatpush1.msra.mxu0 0.0
        %3744 = vmatprep.subr.mxu0 0.0
        %3745 = vmatpush1.msra.mxu0 0.0
        %3746 = vmatprep.subr.mxu0 0.0
        %3747 = vmatpush1.msra.mxu0 0.0
        %3748 = vmatprep.subr.mxu0 0.0
        %3749 = vmatpush1.msra.mxu0 0.0
        %3750 = vmatprep.subr.mxu0 0.0
        %3751 = vmatpush1.msra.mxu0 0.0
        %3752 = vmatprep.subr.mxu0 0.0
        %3753 = vmatpush1.msra.mxu0 %v404
        %3754 = vmatprep.subr.mxu0 0.0
        %3755 = vmatpush1.msra.mxu0 %v403
        %3756 = vmatprep.subr.mxu0 0.0
        %3757 = vmatpush1.msra.mxu0 %v402
        %3758 = vmatprep.subr.mxu0 0.0
        %3759 = vmatpush1.msra.mxu0 %v401
        %3760 = vmatprep.subr.mxu0 0.0
        %3761 = vmatpush2.msra.mxu0 0.0
        %3762 = vmatprep.subr.mxu0 0.0
        %3763 = vmatpush2.msra.mxu0 0.0
        %3764 = vmatprep.subr.mxu0 0.0
        %3765 = vmatpush2.msra.mxu0 0.0
        %3766 = vmatprep.subr.mxu0 0.0
        %3767 = vmatpush2.msra.mxu0 0.0
        %3768 = vmatprep.subr.mxu0 0.0
        %3769 = vmatpush2.msra.mxu0 0.0
        %3770 = vmatprep.subr.mxu0 0.0
        %3771 = vmatpush2.msra.mxu0 0.0
        %3772 = vmatprep.subr.mxu0 0.0
        %3773 = vmatpush2.msra.mxu0 0.0
        %3774 = vmatprep.subr.mxu0 0.0
        %3775 = vmatpush2.msra.mxu0 0.0
        %3776 = vmatprep.subr.mxu0 0.0
        %3777 = vmatpush2.msra.mxu0 0.0
        %3778 = vmatprep.subr.mxu0 0.0
        %3779 = vmatpush2.msra.mxu0 0.0
        %3780 = vmatprep.subr.mxu0 0.0
        %3781 = vmatpush2.msra.mxu0 0.0
        %3782 = vmatprep.subr.mxu0 0.0
        %3783 = vmatpush2.msra.mxu0 0.0
        %3784 = vmatprep.subr.mxu0 0.0
        %3785 = vmatpush2.msra.mxu0 0.0
        %3786 = vmatprep.subr.mxu0 0.0
        %3787 = vmatpush2.msra.mxu0 0.0
        %3788 = vmatprep.subr.mxu0 0.0
        %3789 = vmatpush2.msra.mxu0 0.0
        %3790 = vmatprep.subr.mxu0 0.0
        %3791 = vmatpush2.msra.mxu0 0.0
        %3792 = vmatprep.mubr.f32.mxu0 0.0
        %3793 = vmatmul.mubr.f32.gmra.mxu0 %v3726
        %v3794 = vpop.f32.mrf.mxu0
        %v3795 = vadd.f32 %v3722, %v3794
        %v3796 = vpop.f32.mrf.mxu0
        %3797 = vdwg.mxu0
        %v3798 = vmax.f32 %v3795, 0.0
        %v3799 = vlaneseq
        %v3800 = vshrl.u32 %v3799, 7
        %v3801 = vsub.s32 0, %v3800
        %v3802 = vrot.slane %v460, %v3801
        %v3804 = vsel %vm678, %v3798, 0
        %3806 = vmatprep.subr.mxu0 0.0
        %3807 = vmatpush1.msra.mxu0 0.0
        %3808 = vmatprep.subr.mxu0 0.0
        %3809 = vmatpush1.msra.mxu0 0.0
        %3810 = vmatprep.subr.mxu0 0.0
        %3811 = vmatpush1.msra.mxu0 0.0
        %3812 = vmatprep.subr.mxu0 0.0
        %3813 = vmatpush1.msra.mxu0 0.0
        %3814 = vmatprep.subr.mxu0 0.0
        %3815 = vmatpush1.msra.mxu0 0.0
        %3816 = vmatprep.subr.mxu0 0.0
        %3817 = vmatpush1.msra.mxu0 0.0
        %3818 = vmatprep.subr.mxu0 0.0
        %3819 = vmatpush1.msra.mxu0 0.0
        %3820 = vmatprep.subr.mxu0 0.0
        %3821 = vmatpush1.msra.mxu0 0.0
        %3822 = vmatprep.subr.mxu0 0.0
        %3823 = vmatpush1.msra.mxu0 %v428
        %3824 = vmatprep.subr.mxu0 0.0
        %3825 = vmatpush1.msra.mxu0 %v427
        %3826 = vmatprep.subr.mxu0 0.0
        %3827 = vmatpush1.msra.mxu0 %v426
        %3828 = vmatprep.subr.mxu0 0.0
        %3829 = vmatpush1.msra.mxu0 %v425
        %3830 = vmatprep.subr.mxu0 0.0
        %3831 = vmatpush1.msra.mxu0 %v424
        %3832 = vmatprep.subr.mxu0 0.0
        %3833 = vmatpush1.msra.mxu0 %v423
        %3834 = vmatprep.subr.mxu0 0.0
        %3835 = vmatpush1.msra.mxu0 %v422
        %3836 = vmatprep.subr.mxu0 0.0
        %3837 = vmatpush1.msra.mxu0 %v421
        %3838 = vmatprep.subr.mxu0 0.0
        %3839 = vmatpush2.msra.mxu0 0.0
        %3840 = vmatprep.subr.mxu0 0.0
        %3841 = vmatpush2.msra.mxu0 0.0
        %3842 = vmatprep.subr.mxu0 0.0
        %3843 = vmatpush2.msra.mxu0 0.0
        %3844 = vmatprep.subr.mxu0 0.0
        %3845 = vmatpush2.msra.mxu0 0.0
        %3846 = vmatprep.subr.mxu0 0.0
        %3847 = vmatpush2.msra.mxu0 0.0
        %3848 = vmatprep.subr.mxu0 0.0
        %3849 = vmatpush2.msra.mxu0 0.0
        %3850 = vmatprep.subr.mxu0 0.0
        %3851 = vmatpush2.msra.mxu0 0.0
        %3852 = vmatprep.subr.mxu0 0.0
        %3853 = vmatpush2.msra.mxu0 0.0
        %3854 = vmatprep.subr.mxu0 0.0
        %3855 = vmatpush2.msra.mxu0 0.0
        %3856 = vmatprep.subr.mxu0 0.0
        %3857 = vmatpush2.msra.mxu0 0.0
        %3858 = vmatprep.subr.mxu0 0.0
        %3859 = vmatpush2.msra.mxu0 0.0
        %3860 = vmatprep.subr.mxu0 0.0
        %3861 = vmatpush2.msra.mxu0 0.0
        %3862 = vmatprep.subr.mxu0 0.0
        %3863 = vmatpush2.msra.mxu0 0.0
        %3864 = vmatprep.subr.mxu0 0.0
        %3865 = vmatpush2.msra.mxu0 0.0
        %3866 = vmatprep.subr.mxu0 0.0
        %3867 = vmatpush2.msra.mxu0 0.0
        %3868 = vmatprep.subr.mxu0 0.0
        %3869 = vmatpush2.msra.mxu0 0.0
        %3870 = vmatprep.mubr.f32.mxu0 0.0
        %3871 = vmatmul.mubr.f32.gmra.mxu0 %v3804
        %v3872 = vpop.f32.mrf.mxu0
        %v3873 = vadd.f32 %v3802, %v3872
        %v3874 = vpop.f32.mrf.mxu0
        %3875 = vdwg.mxu0
        %v3876 = vmax.f32 %v3873, 0.0
        %v3877 = vlaneseq
        %v3878 = vshrl.u32 %v3877, 7
        %v3879 = vsub.s32 0, %v3878
        %v3880 = vrot.slane %v461, %v3879
        %3889 = vrot.lane.b32.xlu0 %v421, 64
        %v3890 = vpop.permute.xlu0 %3889
        %3891 = vrot.lane.b32.xlu0 %v422, 64
        %v3892 = vpop.permute.xlu0 %3891
        %3893 = vrot.lane.b32.xlu0 %v423, 64
        %v3894 = vpop.permute.xlu0 %3893
        %3895 = vrot.lane.b32.xlu0 %v424, 64
        %v3896 = vpop.permute.xlu0 %3895
        %3897 = vrot.lane.b32.xlu0 %v425, 64
        %v3898 = vpop.permute.xlu0 %3897
        %3899 = vrot.lane.b32.xlu0 %v426, 64
        %v3900 = vpop.permute.xlu0 %3899
        %3901 = vrot.lane.b32.xlu0 %v427, 64
        %v3902 = vpop.permute.xlu0 %3901
        %3903 = vrot.lane.b32.xlu0 %v428, 64
        %v3904 = vpop.permute.xlu0 %3903
        %v3914 = vsel %vm678, %v3876, 0
        %3916 = vmatprep.subr.mxu0 0.0
        %3917 = vmatpush1.msra.mxu0 0.0
        %3918 = vmatprep.subr.mxu0 0.0
        %3919 = vmatpush1.msra.mxu0 0.0
        %3920 = vmatprep.subr.mxu0 0.0
        %3921 = vmatpush1.msra.mxu0 0.0
        %3922 = vmatprep.subr.mxu0 0.0
        %3923 = vmatpush1.msra.mxu0 0.0
        %3924 = vmatprep.subr.mxu0 0.0
        %3925 = vmatpush1.msra.mxu0 0.0
        %3926 = vmatprep.subr.mxu0 0.0
        %3927 = vmatpush1.msra.mxu0 0.0
        %3928 = vmatprep.subr.mxu0 0.0
        %3929 = vmatpush1.msra.mxu0 0.0
        %3930 = vmatprep.subr.mxu0 0.0
        %3931 = vmatpush1.msra.mxu0 0.0
        %3932 = vmatprep.subr.mxu0 0.0
        %3933 = vmatpush1.msra.mxu0 %v3904
        %3934 = vmatprep.subr.mxu0 0.0
        %3935 = vmatpush1.msra.mxu0 %v3902
        %3936 = vmatprep.subr.mxu0 0.0
        %3937 = vmatpush1.msra.mxu0 %v3900
        %3938 = vmatprep.subr.mxu0 0.0
        %3939 = vmatpush1.msra.mxu0 %v3898
        %3940 = vmatprep.subr.mxu0 0.0
        %3941 = vmatpush1.msra.mxu0 %v3896
        %3942 = vmatprep.subr.mxu0 0.0
        %3943 = vmatpush1.msra.mxu0 %v3894
        %3944 = vmatprep.subr.mxu0 0.0
        %3945 = vmatpush1.msra.mxu0 %v3892
        %3946 = vmatprep.subr.mxu0 0.0
        %3947 = vmatpush1.msra.mxu0 %v3890
        %3948 = vmatprep.subr.mxu0 0.0
        %3949 = vmatpush2.msra.mxu0 0.0
        %3950 = vmatprep.subr.mxu0 0.0
        %3951 = vmatpush2.msra.mxu0 0.0
        %3952 = vmatprep.subr.mxu0 0.0
        %3953 = vmatpush2.msra.mxu0 0.0
        %3954 = vmatprep.subr.mxu0 0.0
        %3955 = vmatpush2.msra.mxu0 0.0
        %3956 = vmatprep.subr.mxu0 0.0
        %3957 = vmatpush2.msra.mxu0 0.0
        %3958 = vmatprep.subr.mxu0 0.0
        %3959 = vmatpush2.msra.mxu0 0.0
        %3960 = vmatprep.subr.mxu0 0.0
        %3961 = vmatpush2.msra.mxu0 0.0
        %3962 = vmatprep.subr.mxu0 0.0
        %3963 = vmatpush2.msra.mxu0 0.0
        %3964 = vmatprep.subr.mxu0 0.0
        %3965 = vmatpush2.msra.mxu0 0.0
        %3966 = vmatprep.subr.mxu0 0.0
        %3967 = vmatpush2.msra.mxu0 0.0
        %3968 = vmatprep.subr.mxu0 0.0
        %3969 = vmatpush2.msra.mxu0 0.0
        %3970 = vmatprep.subr.mxu0 0.0
        %3971 = vmatpush2.msra.mxu0 0.0
        %3972 = vmatprep.subr.mxu0 0.0
        %3973 = vmatpush2.msra.mxu0 0.0
        %3974 = vmatprep.subr.mxu0 0.0
        %3975 = vmatpush2.msra.mxu0 0.0
        %3976 = vmatprep.subr.mxu0 0.0
        %3977 = vmatpush2.msra.mxu0 0.0
        %3978 = vmatprep.subr.mxu0 0.0
        %3979 = vmatpush2.msra.mxu0 0.0
        %3980 = vmatprep.mubr.f32.mxu0 0.0
        %3981 = vmatmul.mubr.f32.gmra.mxu0 %v3914
        %v3982 = vpop.f32.mrf.mxu0
        %v3983 = vadd.f32 %v3880, %v3982
        %v3984 = vpop.f32.mrf.mxu0
        %3985 = vdwg.mxu0
        %vm3986 = vcmask 15360
        %v3987 = vsel %vm3986, %v3983, -inf
        %3988 = vmax.xlane.f32.xlu0 %v3987
        %v3989 = vpop.xlane.xlu0 %3988
        %v3990 = vsub.f32 %v3983, %v3989
        %v3991 = vmul.f32 %v3990, 1.442695
        %v3992 = vpow.pop %v3991
        %v3993 = vsel %vm3986, %v3992, 0.0
        %3994 = vadd.xlane.f32.xlu0 %v3993
        %v3995 = vpop.xlane.xlu0 %3994
        %v3996 = vrcp.pop %v3995
        %v3997 = vmul.f32 %v3992, %v3996
        %3998 = vst.msk [vmem:[%s379] sm:$0xff] %vm3986, %v3997
        %p3999 = scmp.lt.s32.totalorder %s24, 3
        %s4000 = scalar_select %p3999, %s24, 3
        %s4001 = smul.addr %s4000, 8
        %s4002 = scalar_lea.vmem %s8, %s4001
        // Predicated region
        $region73: #{tpu_custom_call.1} parent=51 // pred_check
          %p4003 = pneg %p215
        $region74: #{tpu_custom_call.1} parent=51 // pred_check_branch
          %4005 = sbr.rel (%p4003) target = $region76
        $region75: #{tpu_custom_call.1} parent=51 // pred_region
          _
        $region76: #{tpu_custom_call.1} parent=51 // pred_fallthru
          _
      $region52: #{tpu_custom_call.1} parent=5 // pred_fallthru
        _
      %p4006 = scmp.le.s32.totalorder 2, %s19
      // Predicated region
      $region77: #{tpu_custom_call.1} parent=5 // pred_check
        %p4007 = pneg %p4006
      $region78: #{tpu_custom_call.1} parent=5 // pred_check_branch
        %4009 = sbr.rel (%p4007) target = $region80
      $region79: #{tpu_custom_call.1} parent=5 // pred_region
        %s4010 = ssub.s32 %s19, 2
        // Predicated region
        $region81: #{tpu_custom_call.1} parent=79 // pred_check
          %p4011 = pneg %p221
        $region82: #{tpu_custom_call.1} parent=79 // pred_check_branch
          %4013 = sbr.rel (%p4011) target = $region84
        $region83: #{tpu_custom_call.1} parent=79 // pred_region
          %p4014 = scmp.lt.s32.totalorder %s25, 3
          %s4015 = scalar_select %p4014, %s25, 3
          %s4016 = smul.addr %s4015, 8
          %s4017 = scalar_lea.vmem %s8, %s4016
        $region84: #{tpu_custom_call.1} parent=79 // pred_fallthru
          _
      $region80: #{tpu_custom_call.1} parent=5 // pred_fallthru
        _
    $region6: #{tpu_custom_call.1} parent=1 // loop_footer
      %s23 = sadd.s32 1, %s19
    $region7: #{tpu_custom_call.1} parent=1 // loop_footer_branch
      %18 = sbr.rel target = $region3
    $region8: #{tpu_custom_call.1} parent=1 // loop_exit
      _
    %4018 = vsyncpa [#allocation3], 1
    %s4019 = scalar_lea.sflag [#allocation3], 1
    %4020 = vsyncpa %s4019, 1
    %4021 = vsyncpa [#allocation5], 1
    %4022 = vsyncpa [#allocation8], 1

</llo_original>
